<compile_context>
chip_gen: v7x
topology: tpu7x:2x2x1
jax: 0.10.0
libtpu: 0.0.40
codegen_flags: <defaults>
</compile_context>

<pallas_src>
import functools

import jax
import jax.numpy as jnp
from jax import lax
from jax.experimental import pallas as pl
from jax.experimental.pallas import tpu as pltpu


def gnn_kernel(x_ref, adj_ref, w1_ref, w2_ref, w5g_ref, w5l_ref, w6_ref,
               w7_ref, o_ref, *, T):
    # Tiles: x (G,N,F), adj (G,N,N) [bf16]; weights are full, unblocked.
    G, N, F = x_ref.shape
    E = w2_ref.shape[0]
    GN = G * N

    x = x_ref[...].reshape(GN, F).astype(jnp.float32)    # (GN, F)
    adj = adj_ref[...].astype(jnp.float32)               # (G, N, N), upcast once
    w1 = w1_ref[...].astype(jnp.float32)                 # (F, E)
    w2 = w2_ref[...].astype(jnp.float32)                 # (E, E)
    w5g = w5g_ref[...].astype(jnp.float32)               # (1, E)  (W5 rows [:E])
    w5l = w5l_ref[...].astype(jnp.float32)               # (1, E)  (W5 rows [E:])
    w6 = w6_ref[...].astype(jnp.float32)                 # (E, E)
    w7 = w7_ref[...].astype(jnp.float32)                 # (E, E)

    # Loop-invariant node-feature term.  For tiny F a K=F MXU contraction
    # wastes the systolic depth -> do F broadcast-FMAs on the VPU instead.
    if F <= 8:
        xw1 = x[:, 0:1] * w1[0:1, :]
        for f in range(1, F):
            xw1 = xw1 + x[:, f:f + 1] * w1[f:f + 1, :]
    else:
        xw1 = jnp.dot(x, w1, preferred_element_type=jnp.float32)  # (GN, E)

    def body(t, mu):                                      # mu: (GN, E) f32
        mu3 = mu.reshape(G, N, E)                         # leading-dim split (free)
        agg = jnp.einsum('gij,gje->gie', adj, mu3,
                         preferred_element_type=jnp.float32)   # (G, N, E)
        msg = jnp.dot(agg.reshape(GN, E), w2,
                      preferred_element_type=jnp.float32)      # (GN, E) stacked MXU
        return jax.nn.relu(xw1 + msg)

    mu = lax.fori_loop(0, T, body, jnp.zeros((GN, E), jnp.float32),
                       unroll=(T <= 8))

    # Readout: per-graph summed embedding + per-node embedding.
    mu3 = mu.reshape(G, N, E)
    g = jnp.sum(mu3, axis=1)                                        # (G, E)
    g_emb = jnp.dot(g, w6, preferred_element_type=jnp.float32)      # (G, E)
    l_emb = jnp.dot(mu, w7, preferred_element_type=jnp.float32)     # (GN, E)

    # q = relu([g_emb, l_emb]) @ W5  ==  relu(g_emb)@W5[:E] + relu(l_emb)@W5[E:]
    s_g = jnp.sum(jax.nn.relu(g_emb) * w5g, axis=-1, keepdims=True)     # (G, 1)
    s_l = jnp.sum(jax.nn.relu(l_emb).reshape(G, N, E) * w5l, axis=-1)   # (G, N)
    q = s_l + s_g                                                       # (G, N)

    o_ref[...] = jax.nn.sigmoid(q).astype(o_ref.dtype)


def _pick_group(B, N, target_rows=128):
    """Largest divisor of B with G*N <= target_rows (MXU row occupancy)."""
    g = max(1, min(B, target_rows // max(N, 1)))
    while B % g:
        g -= 1
    return g


def gnn_predict(Xv, adj, params, *, T=4, graphs_per_step=None):
    """Pallas forward pass. Xv: (B, N, F) node features, adj: (B, N, N)."""
    B, N, F = Xv.shape
    E = params["w1"].shape[1]
    G = graphs_per_step if graphs_per_step is not None else _pick_group(B, N)
    assert B % G == 0, (B, G)

    Xv = Xv.astype(jnp.float32)
    # 0/1 adjacency is exact in bf16: halves adj DMA bytes + VMEM footprint.
    adj_bf16 = adj.astype(jnp.bfloat16)

    w1 = params["w1"].astype(jnp.float32)
    w2 = params["w2"].astype(jnp.float32)
    w5 = params["w5"].astype(jnp.float32)          # (2E, 1)
    w6 = params["w6"].astype(jnp.float32)
    w7 = params["w7"].astype(jnp.float32)
    w5g = w5[:E, 0].reshape(1, E)                  # multiplies the global embedding
    w5l = w5[E:, 0].reshape(1, E)                  # multiplies the per-node embedding

    kernel = functools.partial(gnn_kernel, T=T)
    out2d = pl.pallas_call(
        kernel,
        out_shape=jax.ShapeDtypeStruct((B, N), jnp.float32),
        grid=(B // G,),
        in_specs=[
            pl.BlockSpec((G, N, F), lambda b: (b, 0, 0)),   # Xv
            pl.BlockSpec((G, N, N), lambda b: (b, 0, 0)),   # adjacency (bf16)
            pl.BlockSpec((F, E), lambda b: (0, 0)),         # W1
            pl.BlockSpec((E, E), lambda b: (0, 0)),         # W2
            pl.BlockSpec((1, E), lambda b: (0, 0)),         # W5 global half
            pl.BlockSpec((1, E), lambda b: (0, 0)),         # W5 local half
            pl.BlockSpec((E, E), lambda b: (0, 0)),         # W6
            pl.BlockSpec((E, E), lambda b: (0, 0)),         # W7
        ],
        out_specs=pl.BlockSpec((G, N), lambda b: (b, 0)),   # dense (G,N) store
        compiler_params=pltpu.CompilerParams(
            dimension_semantics=("parallel",)),
    )(Xv, adj_bf16, w1, w2, w5g, w5l, w6, w7)

    return out2d[..., None]                                 # (B, N, 1)


def gnn_predict_reference(Xv, adj, params, *, T=4):
    """Pure-JAX reference of the same forward pass (float32)."""
    x = Xv.astype(jnp.float32)
    a = adj.astype(jnp.float32)
    w1 = params["w1"].astype(jnp.float32)
    w2 = params["w2"].astype(jnp.float32)
    w5 = params["w5"].astype(jnp.float32)
    w6 = params["w6"].astype(jnp.float32)
    w7 = params["w7"].astype(jnp.float32)

    xw1 = jnp.einsum("bnf,fe->bne", x, w1)
    mu = jnp.zeros_like(xw1)
    for _ in range(T):
        mu = jax.nn.relu(xw1 + jnp.einsum("bij,bje->bie", a, mu) @ w2)
    g_emb = mu.sum(axis=1, keepdims=True) @ w6              # (B, 1, E)
    l_emb = mu @ w7                                         # (B, N, E)
    cat = jnp.concatenate(
        [jnp.broadcast_to(g_emb, l_emb.shape), l_emb], axis=-1)
    q = jax.nn.relu(cat) @ w5                               # (B, N, 1)
    return jax.nn.sigmoid(q)


def init_params(key, feat_dim, emb_dim, w_scale=0.01):
    """Deterministic 'normal' init matching init_method='normal', w_scale=0.01."""
    k1, k2, k5, k6, k7 = jax.random.split(key, 5)
    return {
        "w1": w_scale * jax.random.normal(k1, (feat_dim, emb_dim), jnp.float32),
        "w2": w_scale * jax.random.normal(k2, (emb_dim, emb_dim), jnp.float32),
        "w5": w_scale * jax.random.normal(k5, (2 * emb_dim, 1), jnp.float32),
        "w6": w_scale * jax.random.normal(k6, (emb_dim, emb_dim), jnp.float32),
        "w7": w_scale * jax.random.normal(k7, (emb_dim, emb_dim), jnp.float32),
    }


if __name__ == "__main__":
    B, N, F, E, T = 16, 16, 2, 32, 4   # 8 graphs stacked per grid step -> M=128

    key = jax.random.PRNGKey(0)
    k_x, k_a, k_p = jax.random.split(key, 3)

    # Node features Xv: (B, N, F)
    Xv = jax.random.normal(k_x, (B, N, F), jnp.float32)

    # Random symmetric unweighted adjacency, no self loops: (B, N, N)
    upper = (jax.random.uniform(k_a, (B, N, N)) < 0.3).astype(jnp.float32)
    upper = jnp.triu(upper, k=1)
    adj = upper + jnp.swapaxes(upper, -1, -2)

    params = init_params(k_p, F, E)

    out = gnn_predict(Xv, adj, params, T=T)
    jax.block_until_ready(out)

    ref = gnn_predict_reference(Xv, adj, params, T=T)
    assert out.shape == (B, N, 1)
    assert bool(jnp.all(jnp.isfinite(out)))
    assert bool(jnp.allclose(out, ref, rtol=1e-4, atol=1e-5)), \
        float(jnp.max(jnp.abs(out - ref)))
    print("KERNEL_OK")
</pallas_src>

<mosaic_0001>
module attributes {stable_mosaic.version = 11 : i64} {
  func.func @gnn_kernel(%arg0: i32, %arg1: memref<8x16x2xf32, #tpu.memory_space<vmem>>, %arg2: memref<8x16x16xbf16, #tpu.memory_space<vmem>>, %arg3: memref<2x32xf32, #tpu.memory_space<vmem>>, %arg4: memref<32x32xf32, #tpu.memory_space<vmem>>, %arg5: memref<1x32xf32, #tpu.memory_space<vmem>>, %arg6: memref<1x32xf32, #tpu.memory_space<vmem>>, %arg7: memref<32x32xf32, #tpu.memory_space<vmem>>, %arg8: memref<32x32xf32, #tpu.memory_space<vmem>>, %arg9: memref<8x16xf32, #tpu.memory_space<vmem>>) attributes {dimension_semantics = [#tpu.dimension_semantics<parallel>], iteration_bounds = array<i64: 2>, scalar_prefetch = 0 : i64, scratch_operands = 0 : i64, tpu.core_type = #tpu.core_type<tc>, window_params = [{transform_indices = @transform_0, window_bounds = array<i64: 8, 16, 2>}, {transform_indices = @transform_1, window_bounds = array<i64: 8, 16, 16>}, {pipeline_mode = #tpu.pipeline_mode<synchronous>, transform_indices = @transform_2, window_bounds = array<i64: 2, 32>}, {pipeline_mode = #tpu.pipeline_mode<synchronous>, transform_indices = @transform_3, window_bounds = array<i64: 32, 32>}, {pipeline_mode = #tpu.pipeline_mode<synchronous>, transform_indices = @transform_4, window_bounds = array<i64: 1, 32>}, {pipeline_mode = #tpu.pipeline_mode<synchronous>, transform_indices = @transform_5, window_bounds = array<i64: 1, 32>}, {pipeline_mode = #tpu.pipeline_mode<synchronous>, transform_indices = @transform_6, window_bounds = array<i64: 32, 32>}, {pipeline_mode = #tpu.pipeline_mode<synchronous>, transform_indices = @transform_7, window_bounds = array<i64: 32, 32>}, {transform_indices = @transform_8, window_bounds = array<i64: 8, 16>}]} {
    %c0 = arith.constant 0 : index
    %c0_0 = arith.constant 0 : index
    %c0_1 = arith.constant 0 : index
    %0 = vector.load %arg1[%c0, %c0_0, %c0_1] : memref<8x16x2xf32, #tpu.memory_space<vmem>>, vector<8x16x2xf32>
    %1 = vector.shape_cast %0 : vector<8x16x2xf32> to vector<128x2xf32>
    %c0_2 = arith.constant 0 : index
    %c0_3 = arith.constant 0 : index
    %c0_4 = arith.constant 0 : index
    %2 = vector.load %arg2[%c0_2, %c0_3, %c0_4] : memref<8x16x16xbf16, #tpu.memory_space<vmem>>, vector<8x16x16xbf16>
    %3 = arith.extf %2 : vector<8x16x16xbf16> to vector<8x16x16xf32>
    %c0_5 = arith.constant 0 : index
    %c0_6 = arith.constant 0 : index
    %4 = vector.load %arg3[%c0_5, %c0_6] : memref<2x32xf32, #tpu.memory_space<vmem>>, vector<2x32xf32>
    %c0_7 = arith.constant 0 : index
    %c0_8 = arith.constant 0 : index
    %5 = vector.load %arg4[%c0_7, %c0_8] : memref<32x32xf32, #tpu.memory_space<vmem>>, vector<32x32xf32>
    %c0_9 = arith.constant 0 : index
    %c0_10 = arith.constant 0 : index
    %6 = vector.load %arg5[%c0_9, %c0_10] : memref<1x32xf32, #tpu.memory_space<vmem>>, vector<1x32xf32>
    %c0_11 = arith.constant 0 : index
    %c0_12 = arith.constant 0 : index
    %7 = vector.load %arg6[%c0_11, %c0_12] : memref<1x32xf32, #tpu.memory_space<vmem>>, vector<1x32xf32>
    %c0_13 = arith.constant 0 : index
    %c0_14 = arith.constant 0 : index
    %8 = vector.load %arg7[%c0_13, %c0_14] : memref<32x32xf32, #tpu.memory_space<vmem>>, vector<32x32xf32>
    %c0_15 = arith.constant 0 : index
    %c0_16 = arith.constant 0 : index
    %9 = vector.load %arg8[%c0_15, %c0_16] : memref<32x32xf32, #tpu.memory_space<vmem>>, vector<32x32xf32>
    %10 = vector.extract_strided_slice %1 {offsets = [0, 0], sizes = [128, 1], strides = [1, 1]} : vector<128x2xf32> to vector<128x1xf32>
    %11 = vector.extract_strided_slice %4 {offsets = [0, 0], sizes = [1, 32], strides = [1, 1]} : vector<2x32xf32> to vector<1x32xf32>
    %12 = vector.broadcast %10 : vector<128x1xf32> to vector<128x32xf32>
    %13 = vector.broadcast %11 : vector<1x32xf32> to vector<128x32xf32>
    %14 = arith.mulf %12, %13 : vector<128x32xf32>
    %15 = vector.extract_strided_slice %1 {offsets = [0, 1], sizes = [128, 1], strides = [1, 1]} : vector<128x2xf32> to vector<128x1xf32>
    %16 = vector.extract_strided_slice %4 {offsets = [1, 0], sizes = [1, 32], strides = [1, 1]} : vector<2x32xf32> to vector<1x32xf32>
    %17 = vector.broadcast %15 : vector<128x1xf32> to vector<128x32xf32>
    %18 = vector.broadcast %16 : vector<1x32xf32> to vector<128x32xf32>
    %19 = arith.mulf %17, %18 : vector<128x32xf32>
    %20 = arith.addf %14, %19 : vector<128x32xf32>
    %cst = arith.constant 0.000000e+00 : f32
    %21 = vector.broadcast %cst : f32 to vector<128x32xf32>
    %c0_i32 = arith.constant 0 : i32
    %22 = vector.shape_cast %21 : vector<128x32xf32> to vector<8x16x32xf32>
    "tpu.trace_start"() <{level = 10 : i32, message = "gij,gje->gie"}> : () -> ()
    %cst_17 = arith.constant dense<0.000000e+00> : vector<8x16x32xf32>
    %23 = tpu.matmul %3, %22, %cst_17 {dimension_numbers = #tpu.dot_dimension_numbers<[2], [1], [1], [2], [0, 0, 0, 1, 1, 2], [0], [0]>} : vector<8x16x16xf32>, vector<8x16x32xf32>, vector<8x16x32xf32> -> vector<8x16x32xf32>
    "tpu.trace_stop"() : () -> ()
    %24 = vector.shape_cast %23 : vector<8x16x32xf32> to vector<128x32xf32>
    %cst_18 = arith.constant dense<0.000000e+00> : vector<128x32xf32>
    %25 = tpu.matmul %24, %5, %cst_18 {dimension_numbers = #tpu.dot_dimension_numbers<[1], [0], [0], [1], [0, 0, 1, 1], [], []>} : vector<128x32xf32>, vector<32x32xf32>, vector<128x32xf32> -> vector<128x32xf32>
    %26 = arith.addf %20, %25 : vector<128x32xf32>
    %cst_19 = arith.constant 0.000000e+00 : f32
    %27 = vector.broadcast %cst_19 : f32 to vector<128x32xf32>
    %28 = arith.maximumf %26, %27 : vector<128x32xf32>
    %c1_i32 = arith.constant 1 : i32
    %29 = vector.shape_cast %28 : vector<128x32xf32> to vector<8x16x32xf32>
    "tpu.trace_start"() <{level = 10 : i32, message = "gij,gje->gie"}> : () -> ()
    %cst_20 = arith.constant dense<0.000000e+00> : vector<8x16x32xf32>
    %30 = tpu.matmul %3, %29, %cst_20 {dimension_numbers = #tpu.dot_dimension_numbers<[2], [1], [1], [2], [0, 0, 0, 1, 1, 2], [0], [0]>} : vector<8x16x16xf32>, vector<8x16x32xf32>, vector<8x16x32xf32> -> vector<8x16x32xf32>
    "tpu.trace_stop"() : () -> ()
    %31 = vector.shape_cast %30 : vector<8x16x32xf32> to vector<128x32xf32>
    %cst_21 = arith.constant dense<0.000000e+00> : vector<128x32xf32>
    %32 = tpu.matmul %31, %5, %cst_21 {dimension_numbers = #tpu.dot_dimension_numbers<[1], [0], [0], [1], [0, 0, 1, 1], [], []>} : vector<128x32xf32>, vector<32x32xf32>, vector<128x32xf32> -> vector<128x32xf32>
    %33 = arith.addf %20, %32 : vector<128x32xf32>
    %cst_22 = arith.constant 0.000000e+00 : f32
    %34 = vector.broadcast %cst_22 : f32 to vector<128x32xf32>
    %35 = arith.maximumf %33, %34 : vector<128x32xf32>
    %c2_i32 = arith.constant 2 : i32
    %36 = vector.shape_cast %35 : vector<128x32xf32> to vector<8x16x32xf32>
    "tpu.trace_start"() <{level = 10 : i32, message = "gij,gje->gie"}> : () -> ()
    %cst_23 = arith.constant dense<0.000000e+00> : vector<8x16x32xf32>
    %37 = tpu.matmul %3, %36, %cst_23 {dimension_numbers = #tpu.dot_dimension_numbers<[2], [1], [1], [2], [0, 0, 0, 1, 1, 2], [0], [0]>} : vector<8x16x16xf32>, vector<8x16x32xf32>, vector<8x16x32xf32> -> vector<8x16x32xf32>
    "tpu.trace_stop"() : () -> ()
    %38 = vector.shape_cast %37 : vector<8x16x32xf32> to vector<128x32xf32>
    %cst_24 = arith.constant dense<0.000000e+00> : vector<128x32xf32>
    %39 = tpu.matmul %38, %5, %cst_24 {dimension_numbers = #tpu.dot_dimension_numbers<[1], [0], [0], [1], [0, 0, 1, 1], [], []>} : vector<128x32xf32>, vector<32x32xf32>, vector<128x32xf32> -> vector<128x32xf32>
    %40 = arith.addf %20, %39 : vector<128x32xf32>
    %cst_25 = arith.constant 0.000000e+00 : f32
    %41 = vector.broadcast %cst_25 : f32 to vector<128x32xf32>
    %42 = arith.maximumf %40, %41 : vector<128x32xf32>
    %c3_i32 = arith.constant 3 : i32
    %43 = vector.shape_cast %42 : vector<128x32xf32> to vector<8x16x32xf32>
    "tpu.trace_start"() <{level = 10 : i32, message = "gij,gje->gie"}> : () -> ()
    %cst_26 = arith.constant dense<0.000000e+00> : vector<8x16x32xf32>
    %44 = tpu.matmul %3, %43, %cst_26 {dimension_numbers = #tpu.dot_dimension_numbers<[2], [1], [1], [2], [0, 0, 0, 1, 1, 2], [0], [0]>} : vector<8x16x16xf32>, vector<8x16x32xf32>, vector<8x16x32xf32> -> vector<8x16x32xf32>
    "tpu.trace_stop"() : () -> ()
    %45 = vector.shape_cast %44 : vector<8x16x32xf32> to vector<128x32xf32>
    %cst_27 = arith.constant dense<0.000000e+00> : vector<128x32xf32>
    %46 = tpu.matmul %45, %5, %cst_27 {dimension_numbers = #tpu.dot_dimension_numbers<[1], [0], [0], [1], [0, 0, 1, 1], [], []>} : vector<128x32xf32>, vector<32x32xf32>, vector<128x32xf32> -> vector<128x32xf32>
    %47 = arith.addf %20, %46 : vector<128x32xf32>
    %cst_28 = arith.constant 0.000000e+00 : f32
    %48 = vector.broadcast %cst_28 : f32 to vector<128x32xf32>
    %49 = arith.maximumf %47, %48 : vector<128x32xf32>
    %50 = vector.shape_cast %49 : vector<128x32xf32> to vector<8x16x32xf32>
    %cst_29 = arith.constant dense<0.000000e+00> : vector<8x32xf32>
    %51 = vector.multi_reduction <add>, %50, %cst_29 [1] : vector<8x16x32xf32> to vector<8x32xf32>
    %cst_30 = arith.constant dense<0.000000e+00> : vector<8x32xf32>
    %52 = tpu.matmul %51, %8, %cst_30 {dimension_numbers = #tpu.dot_dimension_numbers<[1], [0], [0], [1], [0, 0, 1, 1], [], []>} : vector<8x32xf32>, vector<32x32xf32>, vector<8x32xf32> -> vector<8x32xf32>
    %cst_31 = arith.constant dense<0.000000e+00> : vector<128x32xf32>
    %53 = tpu.matmul %49, %9, %cst_31 {dimension_numbers = #tpu.dot_dimension_numbers<[1], [0], [0], [1], [0, 0, 1, 1], [], []>} : vector<128x32xf32>, vector<32x32xf32>, vector<128x32xf32> -> vector<128x32xf32>
    %cst_32 = arith.constant 0.000000e+00 : f32
    %54 = vector.broadcast %cst_32 : f32 to vector<8x32xf32>
    %55 = arith.maximumf %52, %54 : vector<8x32xf32>
    %56 = vector.broadcast %6 : vector<1x32xf32> to vector<8x32xf32>
    %57 = arith.mulf %55, %56 : vector<8x32xf32>
    %cst_33 = arith.constant dense<0.000000e+00> : vector<8xf32>
    %58 = vector.multi_reduction <add>, %57, %cst_33 [1] : vector<8x32xf32> to vector<8xf32>
    %59 = vector.shape_cast %58 : vector<8xf32> to vector<8x1xf32>
    %cst_34 = arith.constant 0.000000e+00 : f32
    %60 = vector.broadcast %cst_34 : f32 to vector<128x32xf32>
    %61 = arith.maximumf %53, %60 : vector<128x32xf32>
    %62 = vector.shape_cast %61 : vector<128x32xf32> to vector<8x16x32xf32>
    %63 = vector.shape_cast %7 : vector<1x32xf32> to vector<1x1x32xf32>
    %64 = vector.broadcast %63 : vector<1x1x32xf32> to vector<8x16x32xf32>
    %65 = arith.mulf %62, %64 : vector<8x16x32xf32>
    %cst_35 = arith.constant dense<0.000000e+00> : vector<8x16xf32>
    %66 = vector.multi_reduction <add>, %65, %cst_35 [2] : vector<8x16x32xf32> to vector<8x16xf32>
    %67 = vector.broadcast %59 : vector<8x1xf32> to vector<8x16xf32>
    %68 = arith.addf %66, %67 : vector<8x16xf32>
    %69 = arith.negf %68 : vector<8x16xf32>
    %70 = math.exp %69 : vector<8x16xf32>
    %cst_36 = arith.constant 1.000000e+00 : f32
    %71 = vector.broadcast %cst_36 : f32 to vector<8x16xf32>
    %72 = arith.addf %71, %70 : vector<8x16xf32>
    %73 = arith.divf %71, %72 : vector<8x16xf32>
    %c0_37 = arith.constant 0 : index
    %c0_38 = arith.constant 0 : index
    %74 = vector.load %arg9[%c0_37, %c0_38] : memref<8x16xf32, #tpu.memory_space<vmem>>, vector<8x16xf32>
    tpu.vector_store %arg9[%c0_37, %c0_38], %73 {strides = array<i32>} : memref<8x16xf32, #tpu.memory_space<vmem>>, vector<8x16xf32>,
    return
  }
  func.func @transform_0(%arg0: i32) -> (i32, i32, i32) {
    %c0_i32 = arith.constant 0 : i32
    %c0_i32_0 = arith.constant 0 : i32
    %c0_i32_1 = arith.constant 0 : i32
    return %arg0, %c0_i32, %c0_i32_0 : i32, i32, i32
  }
  func.func @transform_1(%arg0: i32) -> (i32, i32, i32) {
    %c0_i32 = arith.constant 0 : i32
    %c0_i32_0 = arith.constant 0 : i32
    %c0_i32_1 = arith.constant 0 : i32
    return %arg0, %c0_i32, %c0_i32_0 : i32, i32, i32
  }
  func.func @transform_2(%arg0: i32) -> (i32, i32) {
    %c0_i32 = arith.constant 0 : i32
    %c0_i32_0 = arith.constant 0 : i32
    %c0_i32_1 = arith.constant 0 : i32
    return %c0_i32, %c0_i32_0 : i32, i32
  }
  func.func @transform_3(%arg0: i32) -> (i32, i32) {
    %c0_i32 = arith.constant 0 : i32
    %c0_i32_0 = arith.constant 0 : i32
    %c0_i32_1 = arith.constant 0 : i32
    return %c0_i32, %c0_i32_0 : i32, i32
  }
  func.func @transform_4(%arg0: i32) -> (i32, i32) {
    %c0_i32 = arith.constant 0 : i32
    %c0_i32_0 = arith.constant 0 : i32
    %c0_i32_1 = arith.constant 0 : i32
    return %c0_i32, %c0_i32_0 : i32, i32
  }
  func.func @transform_5(%arg0: i32) -> (i32, i32) {
    %c0_i32 = arith.constant 0 : i32
    %c0_i32_0 = arith.constant 0 : i32
    %c0_i32_1 = arith.constant 0 : i32
    return %c0_i32, %c0_i32_0 : i32, i32
  }
  func.func @transform_6(%arg0: i32) -> (i32, i32) {
    %c0_i32 = arith.constant 0 : i32
    %c0_i32_0 = arith.constant 0 : i32
    %c0_i32_1 = arith.constant 0 : i32
    return %c0_i32, %c0_i32_0 : i32, i32
  }
  func.func @transform_7(%arg0: i32) -> (i32, i32) {
    %c0_i32 = arith.constant 0 : i32
    %c0_i32_0 = arith.constant 0 : i32
    %c0_i32_1 = arith.constant 0 : i32
    return %c0_i32, %c0_i32_0 : i32, i32
  }
  func.func @transform_8(%arg0: i32) -> (i32, i32) {
    %c0_i32 = arith.constant 0 : i32
    %c0_i32_0 = arith.constant 0 : i32
    return %arg0, %c0_i32 : i32, i32
  }
}

</mosaic_0001>

<llo_original>
// kernel: tpu_custom_call.1
$region0: #{tpu_custom_call.1}
  #allocation0 [shape = 'u32[]', space=smem, size = 0x4, offset = 0x4, fixed_abs, tag = 'smem constant byte address 0x4 - core index']
  #allocation1 [shape = 'u32[144,128]{1,0:T(1,128)}', space=vmem, size = 0x12000, scoped, tag = 'internal scratch']
  %s0 = inlined_call_operand.vmem [shape: f32[16,16,2], index: 0, kind: input, shape index: {}]
  %s1 = inlined_call_operand.vmem [shape: bf16[16,16,16], index: 1, kind: input, shape index: {}]
  %s2 = inlined_call_operand.vmem [shape: f32[2,32], index: 2, kind: input, shape index: {}]
  %s3 = inlined_call_operand.vmem [shape: f32[32,32], index: 3, kind: input, shape index: {}]
  %s4 = inlined_call_operand.vmem [shape: f32[1,32], index: 4, kind: input, shape index: {}]
  %s5 = inlined_call_operand.vmem [shape: f32[1,32], index: 5, kind: input, shape index: {}]
  %s6 = inlined_call_operand.vmem [shape: f32[32,32], index: 6, kind: input, shape index: {}]
  %s7 = inlined_call_operand.vmem [shape: f32[32,32], index: 7, kind: input, shape index: {}]
  %s8 = inlined_call_operand.hbm [shape: f32[16,16], index: 8, kind: output, shape index: {}]
  %s9 = sld [smem:[#allocation0]]
  $region65: #{tpu_custom_call.1} parent=0
    _
  %s11 = ssub.s32 1, %s9
  %s12 = scalar_select 0, %s11, %s9
  $region1: #{tpu_custom_call.1} parent=0
    #allocation2 [shape = 'u8[8192]{0}', space=vmem, size = 0x2000, scoped, tag = 'output window, operand 0']
    #allocation3 [shape = 's32[2]{0}', space=sflag, size = 0x8, scoped, tag = 'scoped memory for tpu_custom_call.1']
    %13 = vsyncpa [#allocation3], 0
    %s14 = scalar_lea.sflag [#allocation3], 1
    %15 = vsyncpa %s14, 0
    loop: start=0, step=1, limit=4
    $region2: #{tpu_custom_call.1} parent=1 // loop_pre_header
      _
    $region3: #{tpu_custom_call.1} parent=1 // loop_header
      %s17 = sphi 0, %s21
      %p18 = scmp.ge.s32.totalorder %s17, 4
      %s27 = sphi 0, %s29
      %s30 = sphi 0, %s27
      %s31 = sphi 0, %s30
      %s47 = sphi 0, %s31
      %s53 = sphi 0, %s55
      %s56 = sphi 0, %s53
      %s57 = sphi 0, %s56
      %s73 = sphi 0, %s57
      %s77 = sphi 0, %s77
      %s79 = sphi 0, %s77
      %s80 = sphi 0, %s79
      %s94 = sphi 0, %s80
      %s98 = sphi 0, %s98
      %s100 = sphi 0, %s98
      %s101 = sphi 0, %s100
      %s115 = sphi 0, %s101
      %s119 = sphi 0, %s119
      %s121 = sphi 0, %s119
      %s122 = sphi 0, %s121
      %s136 = sphi 0, %s122
      %s140 = sphi 0, %s140
      %s142 = sphi 0, %s140
      %s143 = sphi 0, %s142
      %s157 = sphi 0, %s143
      %s161 = sphi 0, %s161
      %s163 = sphi 0, %s161
      %s164 = sphi 0, %s163
      %s178 = sphi 0, %s164
      %s182 = sphi 0, %s182
      %s184 = sphi 0, %s182
      %s185 = sphi 0, %s184
      %s199 = sphi 0, %s185
      %s205 = sphi 0, %s207
      %s208 = sphi 0, %s205
      %s209 = sphi 0, %s208
      %s225 = sphi 0, %s209
    $region4: #{tpu_custom_call.1} parent=1 // loop_header_branch
      %20 = sbr.rel (%p18) target = $region8
    $region5: #{tpu_custom_call.1} parent=1 // loop_body
      %s22 = ssub.s32 %s17, 1
      %s23 = ssub.s32 %s17, 2
      %s24 = sadd.s32 %s17, 1
      %s25 = ssub.s32 %s17, %s24
      %p26 = scmp.eq.s32.totalorder %s25, 0
      %s28 = sadd.s32 %s27, 1
      %s29 = scalar_select %p26, %s27, %s28
      %p32 = pneg %p26
      %p33 = scmp.eq.s32.totalorder %s17, 1
      %p34 = por %p32, %p33
      %p35 = scmp.ne.s32.totalorder %s27, %s30
      %p36 = scmp.eq.s32.totalorder %s17, 0
      %p37 = por %p35, %p36
      %p38 = scmp.ne.s32.totalorder %s27, %s30
      %p39 = scmp.eq.s32.totalorder %s22, 1
      %p40 = por %p38, %p39
      %p41 = scmp.ne.s32.totalorder %s30, %s31
      %p42 = scmp.eq.s32.totalorder %s22, 0
      %p43 = por %p41, %p42
      %p44 = scmp.ne.s32.totalorder %s30, %s31
      %p45 = scmp.eq.s32.totalorder %s23, 1
      %p46 = por %p44, %p45
      %p48 = scmp.ne.s32.totalorder %s31, %s47
      %p49 = scmp.eq.s32.totalorder %s23, 0
      %p50 = por %p48, %p49
      %s51 = ssub.s32 %s17, %s24
      %p52 = scmp.eq.s32.totalorder %s51, 0
      %s54 = sadd.s32 %s53, 1
      %s55 = scalar_select %p52, %s53, %s54
      %p58 = pneg %p52
      %p59 = scmp.eq.s32.totalorder %s17, 1
      %p60 = por %p58, %p59
      %p61 = scmp.ne.s32.totalorder %s53, %s56
      %p62 = scmp.eq.s32.totalorder %s17, 0
      %p63 = por %p61, %p62
      %p64 = scmp.ne.s32.totalorder %s53, %s56
      %p65 = scmp.eq.s32.totalorder %s22, 1
      %p66 = por %p64, %p65
      %p67 = scmp.ne.s32.totalorder %s56, %s57
      %p68 = scmp.eq.s32.totalorder %s22, 0
      %p69 = por %p67, %p68
      %p70 = scmp.ne.s32.totalorder %s56, %s57
      %p71 = scmp.eq.s32.totalorder %s23, 1
      %p72 = por %p70, %p71
      %p74 = scmp.ne.s32.totalorder %s57, %s73
      %p75 = scmp.eq.s32.totalorder %s23, 0
      %p76 = por %p74, %p75
      %s78 = sadd.s32 %s77, 1
      %p81 = scmp.eq.s32.totalorder %s17, 1
      %p82 = scmp.ne.s32.totalorder %s77, %s79
      %p83 = scmp.eq.s32.totalorder %s17, 0
      %p84 = por %p82, %p83
      %p85 = scmp.ne.s32.totalorder %s77, %s79
      %p86 = scmp.eq.s32.totalorder %s22, 1
      %p87 = por %p85, %p86
      %p88 = scmp.ne.s32.totalorder %s79, %s80
      %p89 = scmp.eq.s32.totalorder %s22, 0
      %p90 = por %p88, %p89
      %p91 = scmp.ne.s32.totalorder %s79, %s80
      %p92 = scmp.eq.s32.totalorder %s23, 1
      %p93 = por %p91, %p92
      %p95 = scmp.ne.s32.totalorder %s80, %s94
      %p96 = scmp.eq.s32.totalorder %s23, 0
      %p97 = por %p95, %p96
      %s99 = sadd.s32 %s98, 1
      %p102 = scmp.eq.s32.totalorder %s17, 1
      %p103 = scmp.ne.s32.totalorder %s98, %s100
      %p104 = scmp.eq.s32.totalorder %s17, 0
      %p105 = por %p103, %p104
      %p106 = scmp.ne.s32.totalorder %s98, %s100
      %p107 = scmp.eq.s32.totalorder %s22, 1
      %p108 = por %p106, %p107
      %p109 = scmp.ne.s32.totalorder %s100, %s101
      %p110 = scmp.eq.s32.totalorder %s22, 0
      %p111 = por %p109, %p110
      %p112 = scmp.ne.s32.totalorder %s100, %s101
      %p113 = scmp.eq.s32.totalorder %s23, 1
      %p114 = por %p112, %p113
      %p116 = scmp.ne.s32.totalorder %s101, %s115
      %p117 = scmp.eq.s32.totalorder %s23, 0
      %p118 = por %p116, %p117
      %s120 = sadd.s32 %s119, 1
      %p123 = scmp.eq.s32.totalorder %s17, 1
      %p124 = scmp.ne.s32.totalorder %s119, %s121
      %p125 = scmp.eq.s32.totalorder %s17, 0
      %p126 = por %p124, %p125
      %p127 = scmp.ne.s32.totalorder %s119, %s121
      %p128 = scmp.eq.s32.totalorder %s22, 1
      %p129 = por %p127, %p128
      %p130 = scmp.ne.s32.totalorder %s121, %s122
      %p131 = scmp.eq.s32.totalorder %s22, 0
      %p132 = por %p130, %p131
      %p133 = scmp.ne.s32.totalorder %s121, %s122
      %p134 = scmp.eq.s32.totalorder %s23, 1
      %p135 = por %p133, %p134
      %p137 = scmp.ne.s32.totalorder %s122, %s136
      %p138 = scmp.eq.s32.totalorder %s23, 0
      %p139 = por %p137, %p138
      %s141 = sadd.s32 %s140, 1
      %p144 = scmp.eq.s32.totalorder %s17, 1
      %p145 = scmp.ne.s32.totalorder %s140, %s142
      %p146 = scmp.eq.s32.totalorder %s17, 0
      %p147 = por %p145, %p146
      %p148 = scmp.ne.s32.totalorder %s140, %s142
      %p149 = scmp.eq.s32.totalorder %s22, 1
      %p150 = por %p148, %p149
      %p151 = scmp.ne.s32.totalorder %s142, %s143
      %p152 = scmp.eq.s32.totalorder %s22, 0
      %p153 = por %p151, %p152
      %p154 = scmp.ne.s32.totalorder %s142, %s143
      %p155 = scmp.eq.s32.totalorder %s23, 1
      %p156 = por %p154, %p155
      %p158 = scmp.ne.s32.totalorder %s143, %s157
      %p159 = scmp.eq.s32.totalorder %s23, 0
      %p160 = por %p158, %p159
      %s162 = sadd.s32 %s161, 1
      %p165 = scmp.eq.s32.totalorder %s17, 1
      %p166 = scmp.ne.s32.totalorder %s161, %s163
      %p167 = scmp.eq.s32.totalorder %s17, 0
      %p168 = por %p166, %p167
      %p169 = scmp.ne.s32.totalorder %s161, %s163
      %p170 = scmp.eq.s32.totalorder %s22, 1
      %p171 = por %p169, %p170
      %p172 = scmp.ne.s32.totalorder %s163, %s164
      %p173 = scmp.eq.s32.totalorder %s22, 0
      %p174 = por %p172, %p173
      %p175 = scmp.ne.s32.totalorder %s163, %s164
      %p176 = scmp.eq.s32.totalorder %s23, 1
      %p177 = por %p175, %p176
      %p179 = scmp.ne.s32.totalorder %s164, %s178
      %p180 = scmp.eq.s32.totalorder %s23, 0
      %p181 = por %p179, %p180
      %s183 = sadd.s32 %s182, 1
      %p186 = scmp.eq.s32.totalorder %s17, 1
      %p187 = scmp.ne.s32.totalorder %s182, %s184
      %p188 = scmp.eq.s32.totalorder %s17, 0
      %p189 = por %p187, %p188
      %p190 = scmp.ne.s32.totalorder %s182, %s184
      %p191 = scmp.eq.s32.totalorder %s22, 1
      %p192 = por %p190, %p191
      %p193 = scmp.ne.s32.totalorder %s184, %s185
      %p194 = scmp.eq.s32.totalorder %s22, 0
      %p195 = por %p193, %p194
      %p196 = scmp.ne.s32.totalorder %s184, %s185
      %p197 = scmp.eq.s32.totalorder %s23, 1
      %p198 = por %p196, %p197
      %p200 = scmp.ne.s32.totalorder %s185, %s199
      %p201 = scmp.eq.s32.totalorder %s23, 0
      %p202 = por %p200, %p201
      %s203 = ssub.s32 %s17, %s24
      %p204 = scmp.eq.s32.totalorder %s203, 0
      %s206 = sadd.s32 %s205, 1
      %s207 = scalar_select %p204, %s205, %s206
      %p210 = pneg %p204
      %p211 = scmp.eq.s32.totalorder %s17, 1
      %p212 = por %p210, %p211
      %p213 = scmp.ne.s32.totalorder %s205, %s208
      %p214 = scmp.eq.s32.totalorder %s17, 0
      %p215 = por %p213, %p214
      %p216 = scmp.ne.s32.totalorder %s205, %s208
      %p217 = scmp.eq.s32.totalorder %s22, 1
      %p218 = por %p216, %p217
      %p219 = scmp.ne.s32.totalorder %s208, %s209
      %p220 = scmp.eq.s32.totalorder %s22, 0
      %p221 = por %p219, %p220
      %p222 = scmp.ne.s32.totalorder %s208, %s209
      %p223 = scmp.eq.s32.totalorder %s23, 1
      %p224 = por %p222, %p223
      %p226 = scmp.ne.s32.totalorder %s209, %s225
      %p227 = scmp.eq.s32.totalorder %s23, 0
      %p228 = por %p226, %p227
      %p229 = scmp.le.s32.totalorder 1, %s17
      %p230 = scmp.lt.s32.totalorder %s17, 3
      %p231 = pnand %p229, %p230
      %p232 = pneg %p231
      // Predicated region
      $region9: #{tpu_custom_call.1} parent=5 // pred_check
        _
      $region10: #{tpu_custom_call.1} parent=5 // pred_check_branch
        %234 = sbr.rel (%p231) target = $region12
      $region11: #{tpu_custom_call.1} parent=5 // pred_region
        %s235 = ssub.s32 %s17, 1
        // Predicated region
        $region13: #{tpu_custom_call.1} parent=11 // pred_check
          %p236 = pneg %p90
        $region14: #{tpu_custom_call.1} parent=11 // pred_check_branch
          %238 = sbr.rel (%p236) target = $region16
        $region15: #{tpu_custom_call.1} parent=11 // pred_region
          _
        $region16: #{tpu_custom_call.1} parent=11 // pred_fallthru
          _
        // Predicated region
        $region17: #{tpu_custom_call.1} parent=11 // pred_check
          %p239 = pneg %p111
        $region18: #{tpu_custom_call.1} parent=11 // pred_check_branch
          %241 = sbr.rel (%p239) target = $region20
        $region19: #{tpu_custom_call.1} parent=11 // pred_region
          _
        $region20: #{tpu_custom_call.1} parent=11 // pred_fallthru
          _
        // Predicated region
        $region21: #{tpu_custom_call.1} parent=11 // pred_check
          %p242 = pneg %p132
        $region22: #{tpu_custom_call.1} parent=11 // pred_check_branch
          %244 = sbr.rel (%p242) target = $region24
        $region23: #{tpu_custom_call.1} parent=11 // pred_region
          _
        $region24: #{tpu_custom_call.1} parent=11 // pred_fallthru
          _
        // Predicated region
        $region25: #{tpu_custom_call.1} parent=11 // pred_check
          %p245 = pneg %p153
        $region26: #{tpu_custom_call.1} parent=11 // pred_check_branch
          %247 = sbr.rel (%p245) target = $region28
        $region27: #{tpu_custom_call.1} parent=11 // pred_region
          _
        $region28: #{tpu_custom_call.1} parent=11 // pred_fallthru
          _
        // Predicated region
        $region29: #{tpu_custom_call.1} parent=11 // pred_check
          %p248 = pneg %p174
        $region30: #{tpu_custom_call.1} parent=11 // pred_check_branch
          %250 = sbr.rel (%p248) target = $region32
        $region31: #{tpu_custom_call.1} parent=11 // pred_region
          _
        $region32: #{tpu_custom_call.1} parent=11 // pred_fallthru
          _
        // Predicated region
        $region33: #{tpu_custom_call.1} parent=11 // pred_check
          %p251 = pneg %p195
        $region34: #{tpu_custom_call.1} parent=11 // pred_check_branch
          %253 = sbr.rel (%p251) target = $region36
        $region35: #{tpu_custom_call.1} parent=11 // pred_region
          _
        $region36: #{tpu_custom_call.1} parent=11 // pred_fallthru
          _
      $region12: #{tpu_custom_call.1} parent=5 // pred_fallthru
        _
      %p254 = scmp.lt.s32.totalorder %s17, 2
      // Predicated region
      $region37: #{tpu_custom_call.1} parent=5 // pred_check
        %p255 = pneg %p254
      $region38: #{tpu_custom_call.1} parent=5 // pred_check_branch
        %257 = sbr.rel (%p255) target = $region40
      $region39: #{tpu_custom_call.1} parent=5 // pred_region
        // Predicated region
        $region41: #{tpu_custom_call.1} parent=39 // pred_check
          %p258 = pneg %p37
        $region42: #{tpu_custom_call.1} parent=39 // pred_check_branch
          %260 = sbr.rel (%p258) target = $region44
        $region43: #{tpu_custom_call.1} parent=39 // pred_region
          %s261 = smul.u32 8, %s17
          %p262 = scmp.lt.s32.totalorder %s261, 15
          %s263 = scalar_select %p262, %s261, 15
          %s264 = smul.addr %s263, 2
          %s265 = smul.addr %s264, 8
          %s266 = scalar_lea.vmem %s0, %s265
          %s267 = smul.u32 8, %s17
        $region44: #{tpu_custom_call.1} parent=39 // pred_fallthru
          _
        // Predicated region
        $region45: #{tpu_custom_call.1} parent=39 // pred_check
          %p268 = pneg %p63
        $region46: #{tpu_custom_call.1} parent=39 // pred_check_branch
          %270 = sbr.rel (%p268) target = $region48
        $region47: #{tpu_custom_call.1} parent=39 // pred_region
          %s271 = smul.u32 8, %s17
          %p272 = scmp.lt.s32.totalorder %s271, 15
          %s273 = scalar_select %p272, %s271, 15
          %s274 = smul.addr %s273, 2
          %s275 = smul.addr %s274, 4
          %s276 = scalar_lea.vmem %s1, %s275
          %s277 = smul.u32 8, %s17
        $region48: #{tpu_custom_call.1} parent=39 // pred_fallthru
          _
      $region40: #{tpu_custom_call.1} parent=5 // pred_fallthru
        _
      %p278 = scmp.le.s32.totalorder 1, %s17
      %p279 = scmp.lt.s32.totalorder %s17, 3
      %p280 = pnand %p278, %p279
      %p281 = pneg %p280
      // Predicated region
      $region49: #{tpu_custom_call.1} parent=5 // pred_check
        _
      $region50: #{tpu_custom_call.1} parent=5 // pred_check_branch
        %283 = sbr.rel (%p280) target = $region52
      $region51: #{tpu_custom_call.1} parent=5 // pred_region
        %s284 = ssub.s32 %s17, 1
        %s285 = smul.u32 8, %s22
        %p286 = scmp.lt.s32.totalorder %s285, 15
        %s287 = scalar_select %p286, %s285, 15
        %s288 = smul.addr %s287, 2
        %s289 = smul.addr %s288, 8
        %s290 = scalar_lea.vmem %s0, %s289
        %p291 = pneg %p43
        %p292 = pneg %p40
        %s293 = smul.u32 8, %s22
        %p294 = scmp.lt.s32.totalorder %s293, 15
        %s295 = scalar_select %p294, %s293, 15
        %s296 = smul.addr %s295, 2
        %s297 = smul.addr %s296, 4
        %s298 = scalar_lea.vmem %s1, %s297
        %p299 = pneg %p69
        %p300 = pneg %p66
        %p301 = pneg %p90
        %p302 = pneg %p87
        %p303 = pneg %p111
        %p304 = pneg %p108
        %p305 = pneg %p132
        %p306 = pneg %p129
        %p307 = pneg %p153
        %p308 = pneg %p150
        %p309 = pneg %p174
        %p310 = pneg %p171
        %p311 = pneg %p195
        %p312 = pneg %p192
        %p313 = pneg %p221
        %p314 = pneg %p218
        %s315 = sand.u32 %s208, 1
        %s316 = scalar_lea.sflag [#allocation3], %s315
        %s317 = sand.u32 %s208, 1
        %s318 = smul.addr %s317, 8
        %s319 = scalar_lea.vmem [#allocation2], %s318
        %s320 = smul.u32 8, %s22
        %p321 = scmp.lt.s32.totalorder %s320, 15
        %s322 = scalar_select %p321, %s320, 15
        %s323 = smul.addr %s322, 2
        %s324 = smul.addr %s323, 8
        %s325 = scalar_lea.vmem %s0, %s324
        %s326 = smul.u32 8, %s22
        %s327 = smul.u32 8, %s22
        %p328 = scmp.lt.s32.totalorder %s327, 15
        %s329 = scalar_select %p328, %s327, 15
        %s330 = smul.addr %s329, 2
        %s331 = smul.addr %s330, 4
        %s332 = scalar_lea.vmem %s1, %s331
        %s333 = smul.u32 8, %s22
        %v334 = vld [vmem:[%s325] sm:$0xff]
        %v335 = vld [vmem:[%s325 + $0x8] sm:$0xff]
        %v336 = vld [vmem:[%s325 + $0x10] sm:$0xff]
        %v337 = vld [vmem:[%s325 + $0x18] sm:$0xff]
        %v338 = vld [vmem:[%s325 + $0x20] sm:$0xff]
        %v339 = vld [vmem:[%s325 + $0x28] sm:$0xff]
        %v340 = vld [vmem:[%s325 + $0x30] sm:$0xff]
        %v341 = vld [vmem:[%s325 + $0x38] sm:$0xff]
        %v342 = vld [vmem:[%s325 + $0x40] sm:$0xff]
        %v343 = vld [vmem:[%s325 + $0x48] sm:$0xff]
        %v344 = vld [vmem:[%s325 + $0x50] sm:$0xff]
        %v345 = vld [vmem:[%s325 + $0x58] sm:$0xff]
        %v346 = vld [vmem:[%s325 + $0x60] sm:$0xff]
        %v347 = vld [vmem:[%s325 + $0x68] sm:$0xff]
        %v348 = vld [vmem:[%s325 + $0x70] sm:$0xff]
        %v349 = vld [vmem:[%s325 + $0x78] sm:$0xff]
        %v350 = vld [vmem:[%s332] sm:$0xf]
        %v351 = vld [vmem:[%s332 + $0x4] sm:$0xf]
        %v352 = vld [vmem:[%s332 + $0x8] sm:$0xf]
        %v353 = vld [vmem:[%s332 + $0xc] sm:$0xf]
        %v354 = vld [vmem:[%s332 + $0x10] sm:$0xf]
        %v355 = vld [vmem:[%s332 + $0x14] sm:$0xf]
        %v356 = vld [vmem:[%s332 + $0x18] sm:$0xf]
        %v357 = vld [vmem:[%s332 + $0x1c] sm:$0xf]
        %v358 = vld [vmem:[%s332 + $0x20] sm:$0xf]
        %v359 = vld [vmem:[%s332 + $0x24] sm:$0xf]
        %v360 = vld [vmem:[%s332 + $0x28] sm:$0xf]
        %v361 = vld [vmem:[%s332 + $0x2c] sm:$0xf]
        %v362 = vld [vmem:[%s332 + $0x30] sm:$0xf]
        %v363 = vld [vmem:[%s332 + $0x34] sm:$0xf]
        %v364 = vld [vmem:[%s332 + $0x38] sm:$0xf]
        %v365 = vld [vmem:[%s332 + $0x3c] sm:$0xf]
        %v366 = vunpack.c.l.bf16 %v350
        %v367 = vunpack.c.l.bf16 %v351
        %v368 = vunpack.c.l.bf16 %v352
        %v369 = vunpack.c.l.bf16 %v353
        %v370 = vunpack.c.l.bf16 %v354
        %v371 = vunpack.c.l.bf16 %v355
        %v372 = vunpack.c.l.bf16 %v356
        %v373 = vunpack.c.l.bf16 %v357
        %v374 = vunpack.c.l.bf16 %v358
        %v375 = vunpack.c.l.bf16 %v359
        %v376 = vunpack.c.l.bf16 %v360
        %v377 = vunpack.c.l.bf16 %v361
        %v378 = vunpack.c.l.bf16 %v362
        %v379 = vunpack.c.l.bf16 %v363
        %v380 = vunpack.c.l.bf16 %v364
        %v381 = vunpack.c.l.bf16 %v365
        %v382 = vld [vmem:[%s2] sm:$0x3]
        %v383 = vld [vmem:[%s3] sm:$0xff]
        %v384 = vld [vmem:[%s3 + $0x8] sm:$0xff]
        %v385 = vld [vmem:[%s3 + $0x10] sm:$0xff]
        %v386 = vld [vmem:[%s3 + $0x18] sm:$0xff]
        %v387 = vld [vmem:[%s4] sm:$0x1]
        %v388 = vld [vmem:[%s5] sm:$0x1]
        %v389 = vld [vmem:[%s6] sm:$0xff]
        %v390 = vld [vmem:[%s6 + $0x8] sm:$0xff]
        %v391 = vld [vmem:[%s6 + $0x10] sm:$0xff]
        %v392 = vld [vmem:[%s6 + $0x18] sm:$0xff]
        %v393 = vld [vmem:[%s7] sm:$0xff]
        %v394 = vld [vmem:[%s7 + $0x8] sm:$0xff]
        %v395 = vld [vmem:[%s7 + $0x10] sm:$0xff]
        %v396 = vld [vmem:[%s7 + $0x18] sm:$0xff]
        %398 = vset.pattern.permute.xlu0 0
        %399 = vperm.xlu0 %398, %v334
        %v400 = vpop.permute.xlu0 %399
        %403 = vset.pattern.permute.xlu0 0
        %404 = vperm.xlu0 %403, %v335
        %v405 = vpop.permute.xlu0 %404
        %408 = vset.pattern.permute.xlu0 0
        %409 = vperm.xlu0 %408, %v336
        %v410 = vpop.permute.xlu0 %409
        %413 = vset.pattern.permute.xlu0 0
        %414 = vperm.xlu0 %413, %v337
        %v415 = vpop.permute.xlu0 %414
        %418 = vset.pattern.permute.xlu0 0
        %419 = vperm.xlu0 %418, %v338
        %v420 = vpop.permute.xlu0 %419
        %423 = vset.pattern.permute.xlu0 0
        %424 = vperm.xlu0 %423, %v339
        %v425 = vpop.permute.xlu0 %424
        %428 = vset.pattern.permute.xlu0 0
        %429 = vperm.xlu0 %428, %v340
        %v430 = vpop.permute.xlu0 %429
        %433 = vset.pattern.permute.xlu0 0
        %434 = vperm.xlu0 %433, %v341
        %v435 = vpop.permute.xlu0 %434
        %438 = vset.pattern.permute.xlu0 0
        %439 = vperm.xlu0 %438, %v342
        %v440 = vpop.permute.xlu0 %439
        %443 = vset.pattern.permute.xlu0 0
        %444 = vperm.xlu0 %443, %v343
        %v445 = vpop.permute.xlu0 %444
        %448 = vset.pattern.permute.xlu0 0
        %449 = vperm.xlu0 %448, %v344
        %v450 = vpop.permute.xlu0 %449
        %453 = vset.pattern.permute.xlu0 0
        %454 = vperm.xlu0 %453, %v345
        %v455 = vpop.permute.xlu0 %454
        %458 = vset.pattern.permute.xlu0 0
        %459 = vperm.xlu0 %458, %v346
        %v460 = vpop.permute.xlu0 %459
        %463 = vset.pattern.permute.xlu0 0
        %464 = vperm.xlu0 %463, %v347
        %v465 = vpop.permute.xlu0 %464
        %468 = vset.pattern.permute.xlu0 0
        %469 = vperm.xlu0 %468, %v348
        %v470 = vpop.permute.xlu0 %469
        %473 = vset.pattern.permute.xlu0 0
        %474 = vperm.xlu0 %473, %v349
        %v475 = vpop.permute.xlu0 %474
        %v477 = vlaneseq
        %v478 = vshrl.u32 %v477, 7
        %v479 = vsub.s32 0, %v478
        %v480 = vrot.slane %v382, %v479
        %v481 = vmul.f32 %v400, %v480
        %v482 = vmul.f32 %v405, %v480
        %v483 = vmul.f32 %v410, %v480
        %v484 = vmul.f32 %v415, %v480
        %v485 = vmul.f32 %v420, %v480
        %v486 = vmul.f32 %v425, %v480
        %v487 = vmul.f32 %v430, %v480
        %v488 = vmul.f32 %v435, %v480
        %v489 = vmul.f32 %v440, %v480
        %v490 = vmul.f32 %v445, %v480
        %v491 = vmul.f32 %v450, %v480
        %v492 = vmul.f32 %v455, %v480
        %v493 = vmul.f32 %v460, %v480
        %v494 = vmul.f32 %v465, %v480
        %v495 = vmul.f32 %v470, %v480
        %v496 = vmul.f32 %v475, %v480
        %497 = vset.pattern.permute.xlu0 1
        %498 = vperm.xlu0 %497, %v334
        %v499 = vpop.permute.xlu0 %498
        %501 = vset.pattern.permute.xlu0 1
        %502 = vperm.xlu0 %501, %v335
        %v503 = vpop.permute.xlu0 %502
        %505 = vset.pattern.permute.xlu0 1
        %506 = vperm.xlu0 %505, %v336
        %v507 = vpop.permute.xlu0 %506
        %509 = vset.pattern.permute.xlu0 1
        %510 = vperm.xlu0 %509, %v337
        %v511 = vpop.permute.xlu0 %510
        %513 = vset.pattern.permute.xlu0 1
        %514 = vperm.xlu0 %513, %v338
        %v515 = vpop.permute.xlu0 %514
        %517 = vset.pattern.permute.xlu0 1
        %518 = vperm.xlu0 %517, %v339
        %v519 = vpop.permute.xlu0 %518
        %521 = vset.pattern.permute.xlu0 1
        %522 = vperm.xlu0 %521, %v340
        %v523 = vpop.permute.xlu0 %522
        %525 = vset.pattern.permute.xlu0 1
        %526 = vperm.xlu0 %525, %v341
        %v527 = vpop.permute.xlu0 %526
        %529 = vset.pattern.permute.xlu0 1
        %530 = vperm.xlu0 %529, %v342
        %v531 = vpop.permute.xlu0 %530
        %533 = vset.pattern.permute.xlu0 1
        %534 = vperm.xlu0 %533, %v343
        %v535 = vpop.permute.xlu0 %534
        %537 = vset.pattern.permute.xlu0 1
        %538 = vperm.xlu0 %537, %v344
        %v539 = vpop.permute.xlu0 %538
        %541 = vset.pattern.permute.xlu0 1
        %542 = vperm.xlu0 %541, %v345
        %v543 = vpop.permute.xlu0 %542
        %545 = vset.pattern.permute.xlu0 1
        %546 = vperm.xlu0 %545, %v346
        %v547 = vpop.permute.xlu0 %546
        %549 = vset.pattern.permute.xlu0 1
        %550 = vperm.xlu0 %549, %v347
        %v551 = vpop.permute.xlu0 %550
        %553 = vset.pattern.permute.xlu0 1
        %554 = vperm.xlu0 %553, %v348
        %v555 = vpop.permute.xlu0 %554
        %557 = vset.pattern.permute.xlu0 1
        %558 = vperm.xlu0 %557, %v349
        %v559 = vpop.permute.xlu0 %558
        %v561 = vlaneseq
        %v562 = vshrl.u32 %v561, 7
        %v563 = vsub.s32 1, %v562
        %v564 = vrot.slane %v382, %v563
        %v565 = vmul.f32 %v499, %v564
        %v566 = vmul.f32 %v503, %v564
        %v567 = vmul.f32 %v507, %v564
        %v568 = vmul.f32 %v511, %v564
        %v569 = vmul.f32 %v515, %v564
        %v570 = vmul.f32 %v519, %v564
        %v571 = vmul.f32 %v523, %v564
        %v572 = vmul.f32 %v527, %v564
        %v573 = vmul.f32 %v531, %v564
        %v574 = vmul.f32 %v535, %v564
        %v575 = vmul.f32 %v539, %v564
        %v576 = vmul.f32 %v543, %v564
        %v577 = vmul.f32 %v547, %v564
        %v578 = vmul.f32 %v551, %v564
        %v579 = vmul.f32 %v555, %v564
        %v580 = vmul.f32 %v559, %v564
        %v581 = vadd.f32 %v481, %v565
        %v582 = vadd.f32 %v482, %v566
        %v583 = vadd.f32 %v483, %v567
        %v584 = vadd.f32 %v484, %v568
        %v585 = vadd.f32 %v485, %v569
        %v586 = vadd.f32 %v486, %v570
        %v587 = vadd.f32 %v487, %v571
        %v588 = vadd.f32 %v488, %v572
        %v589 = vadd.f32 %v489, %v573
        %v590 = vadd.f32 %v490, %v574
        %v591 = vadd.f32 %v491, %v575
        %v592 = vadd.f32 %v492, %v576
        %v593 = vadd.f32 %v493, %v577
        %v594 = vadd.f32 %v494, %v578
        %v595 = vadd.f32 %v495, %v579
        %v596 = vadd.f32 %v496, %v580
        %vm597 = vcmask 130048
        %v599 = vsel %vm597, %v366, 0
        %v602 = vsel %vm597, %v367, 0
        %604 = vmatprep.subr.mxu0 0.0
        %605 = vmatpush1.msra.mxu0 0.0
        %606 = vmatprep.subr.mxu0 0.0
        %607 = vmatpush1.msra.mxu0 0.0
        %608 = vmatprep.subr.mxu0 0.0
        %609 = vmatpush1.msra.mxu0 0.0
        %610 = vmatprep.subr.mxu0 0.0
        %611 = vmatpush1.msra.mxu0 0.0
        %612 = vmatprep.subr.mxu0 0.0
        %613 = vmatpush1.msra.mxu0 0.0
        %614 = vmatprep.subr.mxu0 0.0
        %615 = vmatpush1.msra.mxu0 0.0
        %616 = vmatprep.subr.mxu0 0.0
        %617 = vmatpush1.msra.mxu0 0.0
        %618 = vmatprep.subr.mxu0 0.0
        %619 = vmatpush1.msra.mxu0 0.0
        %620 = vmatprep.subr.mxu0 0.0
        %621 = vmatpush1.msra.mxu0 0.0
        %622 = vmatprep.subr.mxu0 0.0
        %623 = vmatpush1.msra.mxu0 0.0
        %624 = vmatprep.subr.mxu0 0.0
        %625 = vmatpush1.msra.mxu0 0.0
        %626 = vmatprep.subr.mxu0 0.0
        %627 = vmatpush1.msra.mxu0 0.0
        %628 = vmatprep.subr.mxu0 0.0
        %629 = vmatpush1.msra.mxu0 0.0
        %630 = vmatprep.subr.mxu0 0.0
        %631 = vmatpush1.msra.mxu0 0.0
        %632 = vmatprep.subr.mxu0 0.0
        %633 = vmatpush1.msra.mxu0 0.0
        %634 = vmatprep.subr.mxu0 0.0
        %635 = vmatpush1.msra.mxu0 0.0
        %636 = vmatprep.subr.mxu0 0.0
        %637 = vmatpush1.msra.mxu0 0.0
        %638 = vmatprep.subr.mxu0 0.0
        %639 = vmatpush1.msra.mxu0 0.0
        %640 = vmatprep.subr.mxu0 0.0
        %641 = vmatpush1.msra.mxu0 0.0
        %642 = vmatprep.subr.mxu0 0.0
        %643 = vmatpush1.msra.mxu0 0.0
        %644 = vmatprep.subr.mxu0 0.0
        %645 = vmatpush1.msra.mxu0 0.0
        %646 = vmatprep.subr.mxu0 0.0
        %647 = vmatpush1.msra.mxu0 0.0
        %648 = vmatprep.subr.mxu0 0.0
        %649 = vmatpush1.msra.mxu0 0.0
        %650 = vmatprep.subr.mxu0 0.0
        %651 = vmatpush1.msra.mxu0 0.0
        %652 = vmatprep.subr.mxu0 0.0
        %653 = vmatpush1.msra.mxu0 0.0
        %654 = vmatprep.subr.mxu0 0.0
        %655 = vmatpush1.msra.mxu0 0.0
        %656 = vmatprep.subr.mxu0 0.0
        %657 = vmatpush1.msra.mxu0 0.0
        %658 = vmatprep.subr.mxu0 0.0
        %659 = vmatpush1.msra.mxu0 0.0
        %660 = vmatprep.subr.mxu0 0.0
        %661 = vmatpush1.msra.mxu0 0.0
        %662 = vmatprep.subr.mxu0 0.0
        %663 = vmatpush1.msra.mxu0 0.0
        %664 = vmatprep.subr.mxu0 0.0
        %665 = vmatpush1.msra.mxu0 0.0
        %666 = vmatprep.subr.mxu0 0.0
        %667 = vmatpush1.msra.mxu0 0.0
        %668 = vmatprep.mubr.f32.mxu0 0.0
        %669 = vmatmul.mubr.f32.gmra.mrb[0].mxu0 %v599
        %v670 = vpop.f32.mrb[0].mxu0
        %v671 = vadd.f32 0.0, %v670
        %v672 = vpop.f32.mrb[0].mxu0
        %673 = vmatprep.mubr.f32.mxu0 0.0
        %674 = vmatmul.mubr.f32.gmra.mrb[0].mxu0 %v602
        %v675 = vpop.f32.mrb[0].mxu0
        %v676 = vadd.f32 0.0, %v675
        %v677 = vpop.f32.mrb[0].mxu0
        %678 = vdwg.mxu0
        %v680 = vsel %vm597, %v368, 0
        %v683 = vsel %vm597, %v369, 0
        %685 = vmatprep.subr.mxu0 0.0
        %686 = vmatpush1.msra.mxu0 0.0
        %687 = vmatprep.subr.mxu0 0.0
        %688 = vmatpush1.msra.mxu0 0.0
        %689 = vmatprep.subr.mxu0 0.0
        %690 = vmatpush1.msra.mxu0 0.0
        %691 = vmatprep.subr.mxu0 0.0
        %692 = vmatpush1.msra.mxu0 0.0
        %693 = vmatprep.subr.mxu0 0.0
        %694 = vmatpush1.msra.mxu0 0.0
        %695 = vmatprep.subr.mxu0 0.0
        %696 = vmatpush1.msra.mxu0 0.0
        %697 = vmatprep.subr.mxu0 0.0
        %698 = vmatpush1.msra.mxu0 0.0
        %699 = vmatprep.subr.mxu0 0.0
        %700 = vmatpush1.msra.mxu0 0.0
        %701 = vmatprep.subr.mxu0 0.0
        %702 = vmatpush1.msra.mxu0 0.0
        %703 = vmatprep.subr.mxu0 0.0
        %704 = vmatpush1.msra.mxu0 0.0
        %705 = vmatprep.subr.mxu0 0.0
        %706 = vmatpush1.msra.mxu0 0.0
        %707 = vmatprep.subr.mxu0 0.0
        %708 = vmatpush1.msra.mxu0 0.0
        %709 = vmatprep.subr.mxu0 0.0
        %710 = vmatpush1.msra.mxu0 0.0
        %711 = vmatprep.subr.mxu0 0.0
        %712 = vmatpush1.msra.mxu0 0.0
        %713 = vmatprep.subr.mxu0 0.0
        %714 = vmatpush1.msra.mxu0 0.0
        %715 = vmatprep.subr.mxu0 0.0
        %716 = vmatpush1.msra.mxu0 0.0
        %717 = vmatprep.subr.mxu0 0.0
        %718 = vmatpush1.msra.mxu0 0.0
        %719 = vmatprep.subr.mxu0 0.0
        %720 = vmatpush1.msra.mxu0 0.0
        %721 = vmatprep.subr.mxu0 0.0
        %722 = vmatpush1.msra.mxu0 0.0
        %723 = vmatprep.subr.mxu0 0.0
        %724 = vmatpush1.msra.mxu0 0.0
        %725 = vmatprep.subr.mxu0 0.0
        %726 = vmatpush1.msra.mxu0 0.0
        %727 = vmatprep.subr.mxu0 0.0
        %728 = vmatpush1.msra.mxu0 0.0
        %729 = vmatprep.subr.mxu0 0.0
        %730 = vmatpush1.msra.mxu0 0.0
        %731 = vmatprep.subr.mxu0 0.0
        %732 = vmatpush1.msra.mxu0 0.0
        %733 = vmatprep.subr.mxu0 0.0
        %734 = vmatpush1.msra.mxu0 0.0
        %735 = vmatprep.subr.mxu0 0.0
        %736 = vmatpush1.msra.mxu0 0.0
        %737 = vmatprep.subr.mxu0 0.0
        %738 = vmatpush1.msra.mxu0 0.0
        %739 = vmatprep.subr.mxu0 0.0
        %740 = vmatpush1.msra.mxu0 0.0
        %741 = vmatprep.subr.mxu0 0.0
        %742 = vmatpush1.msra.mxu0 0.0
        %743 = vmatprep.subr.mxu0 0.0
        %744 = vmatpush1.msra.mxu0 0.0
        %745 = vmatprep.subr.mxu0 0.0
        %746 = vmatpush1.msra.mxu0 0.0
        %747 = vmatprep.subr.mxu0 0.0
        %748 = vmatpush1.msra.mxu0 0.0
        %749 = vmatprep.mubr.f32.mxu0 0.0
        %750 = vmatmul.mubr.f32.gmra.mrb[0].mxu0 %v680
        %v751 = vpop.f32.mrb[0].mxu0
        %v752 = vadd.f32 0.0, %v751
        %v753 = vpop.f32.mrb[0].mxu0
        %754 = vmatprep.mubr.f32.mxu0 0.0
        %755 = vmatmul.mubr.f32.gmra.mrb[0].mxu0 %v683
        %v756 = vpop.f32.mrb[0].mxu0
        %v757 = vadd.f32 0.0, %v756
        %v758 = vpop.f32.mrb[0].mxu0
        %759 = vdwg.mxu0
        %v761 = vsel %vm597, %v370, 0
        %v764 = vsel %vm597, %v371, 0
        %766 = vmatprep.subr.mxu0 0.0
        %767 = vmatpush1.msra.mxu0 0.0
        %768 = vmatprep.subr.mxu0 0.0
        %769 = vmatpush1.msra.mxu0 0.0
        %770 = vmatprep.subr.mxu0 0.0
        %771 = vmatpush1.msra.mxu0 0.0
        %772 = vmatprep.subr.mxu0 0.0
        %773 = vmatpush1.msra.mxu0 0.0
        %774 = vmatprep.subr.mxu0 0.0
        %775 = vmatpush1.msra.mxu0 0.0
        %776 = vmatprep.subr.mxu0 0.0
        %777 = vmatpush1.msra.mxu0 0.0
        %778 = vmatprep.subr.mxu0 0.0
        %779 = vmatpush1.msra.mxu0 0.0
        %780 = vmatprep.subr.mxu0 0.0
        %781 = vmatpush1.msra.mxu0 0.0
        %782 = vmatprep.subr.mxu0 0.0
        %783 = vmatpush1.msra.mxu0 0.0
        %784 = vmatprep.subr.mxu0 0.0
        %785 = vmatpush1.msra.mxu0 0.0
        %786 = vmatprep.subr.mxu0 0.0
        %787 = vmatpush1.msra.mxu0 0.0
        %788 = vmatprep.subr.mxu0 0.0
        %789 = vmatpush1.msra.mxu0 0.0
        %790 = vmatprep.subr.mxu0 0.0
        %791 = vmatpush1.msra.mxu0 0.0
        %792 = vmatprep.subr.mxu0 0.0
        %793 = vmatpush1.msra.mxu0 0.0
        %794 = vmatprep.subr.mxu0 0.0
        %795 = vmatpush1.msra.mxu0 0.0
        %796 = vmatprep.subr.mxu0 0.0
        %797 = vmatpush1.msra.mxu0 0.0
        %798 = vmatprep.subr.mxu0 0.0
        %799 = vmatpush1.msra.mxu0 0.0
        %800 = vmatprep.subr.mxu0 0.0
        %801 = vmatpush1.msra.mxu0 0.0
        %802 = vmatprep.subr.mxu0 0.0
        %803 = vmatpush1.msra.mxu0 0.0
        %804 = vmatprep.subr.mxu0 0.0
        %805 = vmatpush1.msra.mxu0 0.0
        %806 = vmatprep.subr.mxu0 0.0
        %807 = vmatpush1.msra.mxu0 0.0
        %808 = vmatprep.subr.mxu0 0.0
        %809 = vmatpush1.msra.mxu0 0.0
        %810 = vmatprep.subr.mxu0 0.0
        %811 = vmatpush1.msra.mxu0 0.0
        %812 = vmatprep.subr.mxu0 0.0
        %813 = vmatpush1.msra.mxu0 0.0
        %814 = vmatprep.subr.mxu0 0.0
        %815 = vmatpush1.msra.mxu0 0.0
        %816 = vmatprep.subr.mxu0 0.0
        %817 = vmatpush1.msra.mxu0 0.0
        %818 = vmatprep.subr.mxu0 0.0
        %819 = vmatpush1.msra.mxu0 0.0
        %820 = vmatprep.subr.mxu0 0.0
        %821 = vmatpush1.msra.mxu0 0.0
        %822 = vmatprep.subr.mxu0 0.0
        %823 = vmatpush1.msra.mxu0 0.0
        %824 = vmatprep.subr.mxu0 0.0
        %825 = vmatpush1.msra.mxu0 0.0
        %826 = vmatprep.subr.mxu0 0.0
        %827 = vmatpush1.msra.mxu0 0.0
        %828 = vmatprep.subr.mxu0 0.0
        %829 = vmatpush1.msra.mxu0 0.0
        %830 = vmatprep.mubr.f32.mxu0 0.0
        %831 = vmatmul.mubr.f32.gmra.mrb[0].mxu0 %v761
        %v832 = vpop.f32.mrb[0].mxu0
        %v833 = vadd.f32 0.0, %v832
        %v834 = vpop.f32.mrb[0].mxu0
        %835 = vmatprep.mubr.f32.mxu0 0.0
        %836 = vmatmul.mubr.f32.gmra.mrb[0].mxu0 %v764
        %v837 = vpop.f32.mrb[0].mxu0
        %v838 = vadd.f32 0.0, %v837
        %v839 = vpop.f32.mrb[0].mxu0
        %840 = vdwg.mxu0
        %v842 = vsel %vm597, %v372, 0
        %v845 = vsel %vm597, %v373, 0
        %847 = vmatprep.subr.mxu0 0.0
        %848 = vmatpush1.msra.mxu0 0.0
        %849 = vmatprep.subr.mxu0 0.0
        %850 = vmatpush1.msra.mxu0 0.0
        %851 = vmatprep.subr.mxu0 0.0
        %852 = vmatpush1.msra.mxu0 0.0
        %853 = vmatprep.subr.mxu0 0.0
        %854 = vmatpush1.msra.mxu0 0.0
        %855 = vmatprep.subr.mxu0 0.0
        %856 = vmatpush1.msra.mxu0 0.0
        %857 = vmatprep.subr.mxu0 0.0
        %858 = vmatpush1.msra.mxu0 0.0
        %859 = vmatprep.subr.mxu0 0.0
        %860 = vmatpush1.msra.mxu0 0.0
        %861 = vmatprep.subr.mxu0 0.0
        %862 = vmatpush1.msra.mxu0 0.0
        %863 = vmatprep.subr.mxu0 0.0
        %864 = vmatpush1.msra.mxu0 0.0
        %865 = vmatprep.subr.mxu0 0.0
        %866 = vmatpush1.msra.mxu0 0.0
        %867 = vmatprep.subr.mxu0 0.0
        %868 = vmatpush1.msra.mxu0 0.0
        %869 = vmatprep.subr.mxu0 0.0
        %870 = vmatpush1.msra.mxu0 0.0
        %871 = vmatprep.subr.mxu0 0.0
        %872 = vmatpush1.msra.mxu0 0.0
        %873 = vmatprep.subr.mxu0 0.0
        %874 = vmatpush1.msra.mxu0 0.0
        %875 = vmatprep.subr.mxu0 0.0
        %876 = vmatpush1.msra.mxu0 0.0
        %877 = vmatprep.subr.mxu0 0.0
        %878 = vmatpush1.msra.mxu0 0.0
        %879 = vmatprep.subr.mxu0 0.0
        %880 = vmatpush1.msra.mxu0 0.0
        %881 = vmatprep.subr.mxu0 0.0
        %882 = vmatpush1.msra.mxu0 0.0
        %883 = vmatprep.subr.mxu0 0.0
        %884 = vmatpush1.msra.mxu0 0.0
        %885 = vmatprep.subr.mxu0 0.0
        %886 = vmatpush1.msra.mxu0 0.0
        %887 = vmatprep.subr.mxu0 0.0
        %888 = vmatpush1.msra.mxu0 0.0
        %889 = vmatprep.subr.mxu0 0.0
        %890 = vmatpush1.msra.mxu0 0.0
        %891 = vmatprep.subr.mxu0 0.0
        %892 = vmatpush1.msra.mxu0 0.0
        %893 = vmatprep.subr.mxu0 0.0
        %894 = vmatpush1.msra.mxu0 0.0
        %895 = vmatprep.subr.mxu0 0.0
        %896 = vmatpush1.msra.mxu0 0.0
        %897 = vmatprep.subr.mxu0 0.0
        %898 = vmatpush1.msra.mxu0 0.0
        %899 = vmatprep.subr.mxu0 0.0
        %900 = vmatpush1.msra.mxu0 0.0
        %901 = vmatprep.subr.mxu0 0.0
        %902 = vmatpush1.msra.mxu0 0.0
        %903 = vmatprep.subr.mxu0 0.0
        %904 = vmatpush1.msra.mxu0 0.0
        %905 = vmatprep.subr.mxu0 0.0
        %906 = vmatpush1.msra.mxu0 0.0
        %907 = vmatprep.subr.mxu0 0.0
        %908 = vmatpush1.msra.mxu0 0.0
        %909 = vmatprep.subr.mxu0 0.0
        %910 = vmatpush1.msra.mxu0 0.0
        %911 = vmatprep.mubr.f32.mxu0 0.0
        %912 = vmatmul.mubr.f32.gmra.mrb[0].mxu0 %v842
        %v913 = vpop.f32.mrb[0].mxu0
        %v914 = vadd.f32 0.0, %v913
        %v915 = vpop.f32.mrb[0].mxu0
        %916 = vmatprep.mubr.f32.mxu0 0.0
        %917 = vmatmul.mubr.f32.gmra.mrb[0].mxu0 %v845
        %v918 = vpop.f32.mrb[0].mxu0
        %v919 = vadd.f32 0.0, %v918
        %v920 = vpop.f32.mrb[0].mxu0
        %921 = vdwg.mxu0
        %v923 = vsel %vm597, %v374, 0
        %v926 = vsel %vm597, %v375, 0
        %928 = vmatprep.subr.mxu0 0.0
        %929 = vmatpush1.msra.mxu0 0.0
        %930 = vmatprep.subr.mxu0 0.0
        %931 = vmatpush1.msra.mxu0 0.0
        %932 = vmatprep.subr.mxu0 0.0
        %933 = vmatpush1.msra.mxu0 0.0
        %934 = vmatprep.subr.mxu0 0.0
        %935 = vmatpush1.msra.mxu0 0.0
        %936 = vmatprep.subr.mxu0 0.0
        %937 = vmatpush1.msra.mxu0 0.0
        %938 = vmatprep.subr.mxu0 0.0
        %939 = vmatpush1.msra.mxu0 0.0
        %940 = vmatprep.subr.mxu0 0.0
        %941 = vmatpush1.msra.mxu0 0.0
        %942 = vmatprep.subr.mxu0 0.0
        %943 = vmatpush1.msra.mxu0 0.0
        %944 = vmatprep.subr.mxu0 0.0
        %945 = vmatpush1.msra.mxu0 0.0
        %946 = vmatprep.subr.mxu0 0.0
        %947 = vmatpush1.msra.mxu0 0.0
        %948 = vmatprep.subr.mxu0 0.0
        %949 = vmatpush1.msra.mxu0 0.0
        %950 = vmatprep.subr.mxu0 0.0
        %951 = vmatpush1.msra.mxu0 0.0
        %952 = vmatprep.subr.mxu0 0.0
        %953 = vmatpush1.msra.mxu0 0.0
        %954 = vmatprep.subr.mxu0 0.0
        %955 = vmatpush1.msra.mxu0 0.0
        %956 = vmatprep.subr.mxu0 0.0
        %957 = vmatpush1.msra.mxu0 0.0
        %958 = vmatprep.subr.mxu0 0.0
        %959 = vmatpush1.msra.mxu0 0.0
        %960 = vmatprep.subr.mxu0 0.0
        %961 = vmatpush1.msra.mxu0 0.0
        %962 = vmatprep.subr.mxu0 0.0
        %963 = vmatpush1.msra.mxu0 0.0
        %964 = vmatprep.subr.mxu0 0.0
        %965 = vmatpush1.msra.mxu0 0.0
        %966 = vmatprep.subr.mxu0 0.0
        %967 = vmatpush1.msra.mxu0 0.0
        %968 = vmatprep.subr.mxu0 0.0
        %969 = vmatpush1.msra.mxu0 0.0
        %970 = vmatprep.subr.mxu0 0.0
        %971 = vmatpush1.msra.mxu0 0.0
        %972 = vmatprep.subr.mxu0 0.0
        %973 = vmatpush1.msra.mxu0 0.0
        %974 = vmatprep.subr.mxu0 0.0
        %975 = vmatpush1.msra.mxu0 0.0
        %976 = vmatprep.subr.mxu0 0.0
        %977 = vmatpush1.msra.mxu0 0.0
        %978 = vmatprep.subr.mxu0 0.0
        %979 = vmatpush1.msra.mxu0 0.0
        %980 = vmatprep.subr.mxu0 0.0
        %981 = vmatpush1.msra.mxu0 0.0
        %982 = vmatprep.subr.mxu0 0.0
        %983 = vmatpush1.msra.mxu0 0.0
        %984 = vmatprep.subr.mxu0 0.0
        %985 = vmatpush1.msra.mxu0 0.0
        %986 = vmatprep.subr.mxu0 0.0
        %987 = vmatpush1.msra.mxu0 0.0
        %988 = vmatprep.subr.mxu0 0.0
        %989 = vmatpush1.msra.mxu0 0.0
        %990 = vmatprep.subr.mxu0 0.0
        %991 = vmatpush1.msra.mxu0 0.0
        %992 = vmatprep.mubr.f32.mxu0 0.0
        %993 = vmatmul.mubr.f32.gmra.mrb[0].mxu0 %v923
        %v994 = vpop.f32.mrb[0].mxu0
        %v995 = vadd.f32 0.0, %v994
        %v996 = vpop.f32.mrb[0].mxu0
        %997 = vmatprep.mubr.f32.mxu0 0.0
        %998 = vmatmul.mubr.f32.gmra.mrb[0].mxu0 %v926
        %v999 = vpop.f32.mrb[0].mxu0
        %v1000 = vadd.f32 0.0, %v999
        %v1001 = vpop.f32.mrb[0].mxu0
        %1002 = vdwg.mxu0
        %v1004 = vsel %vm597, %v376, 0
        %v1007 = vsel %vm597, %v377, 0
        %1009 = vmatprep.subr.mxu0 0.0
        %1010 = vmatpush1.msra.mxu0 0.0
        %1011 = vmatprep.subr.mxu0 0.0
        %1012 = vmatpush1.msra.mxu0 0.0
        %1013 = vmatprep.subr.mxu0 0.0
        %1014 = vmatpush1.msra.mxu0 0.0
        %1015 = vmatprep.subr.mxu0 0.0
        %1016 = vmatpush1.msra.mxu0 0.0
        %1017 = vmatprep.subr.mxu0 0.0
        %1018 = vmatpush1.msra.mxu0 0.0
        %1019 = vmatprep.subr.mxu0 0.0
        %1020 = vmatpush1.msra.mxu0 0.0
        %1021 = vmatprep.subr.mxu0 0.0
        %1022 = vmatpush1.msra.mxu0 0.0
        %1023 = vmatprep.subr.mxu0 0.0
        %1024 = vmatpush1.msra.mxu0 0.0
        %1025 = vmatprep.subr.mxu0 0.0
        %1026 = vmatpush1.msra.mxu0 0.0
        %1027 = vmatprep.subr.mxu0 0.0
        %1028 = vmatpush1.msra.mxu0 0.0
        %1029 = vmatprep.subr.mxu0 0.0
        %1030 = vmatpush1.msra.mxu0 0.0
        %1031 = vmatprep.subr.mxu0 0.0
        %1032 = vmatpush1.msra.mxu0 0.0
        %1033 = vmatprep.subr.mxu0 0.0
        %1034 = vmatpush1.msra.mxu0 0.0
        %1035 = vmatprep.subr.mxu0 0.0
        %1036 = vmatpush1.msra.mxu0 0.0
        %1037 = vmatprep.subr.mxu0 0.0
        %1038 = vmatpush1.msra.mxu0 0.0
        %1039 = vmatprep.subr.mxu0 0.0
        %1040 = vmatpush1.msra.mxu0 0.0
        %1041 = vmatprep.subr.mxu0 0.0
        %1042 = vmatpush1.msra.mxu0 0.0
        %1043 = vmatprep.subr.mxu0 0.0
        %1044 = vmatpush1.msra.mxu0 0.0
        %1045 = vmatprep.subr.mxu0 0.0
        %1046 = vmatpush1.msra.mxu0 0.0
        %1047 = vmatprep.subr.mxu0 0.0
        %1048 = vmatpush1.msra.mxu0 0.0
        %1049 = vmatprep.subr.mxu0 0.0
        %1050 = vmatpush1.msra.mxu0 0.0
        %1051 = vmatprep.subr.mxu0 0.0
        %1052 = vmatpush1.msra.mxu0 0.0
        %1053 = vmatprep.subr.mxu0 0.0
        %1054 = vmatpush1.msra.mxu0 0.0
        %1055 = vmatprep.subr.mxu0 0.0
        %1056 = vmatpush1.msra.mxu0 0.0
        %1057 = vmatprep.subr.mxu0 0.0
        %1058 = vmatpush1.msra.mxu0 0.0
        %1059 = vmatprep.subr.mxu0 0.0
        %1060 = vmatpush1.msra.mxu0 0.0
        %1061 = vmatprep.subr.mxu0 0.0
        %1062 = vmatpush1.msra.mxu0 0.0
        %1063 = vmatprep.subr.mxu0 0.0
        %1064 = vmatpush1.msra.mxu0 0.0
        %1065 = vmatprep.subr.mxu0 0.0
        %1066 = vmatpush1.msra.mxu0 0.0
        %1067 = vmatprep.subr.mxu0 0.0
        %1068 = vmatpush1.msra.mxu0 0.0
        %1069 = vmatprep.subr.mxu0 0.0
        %1070 = vmatpush1.msra.mxu0 0.0
        %1071 = vmatprep.subr.mxu0 0.0
        %1072 = vmatpush1.msra.mxu0 0.0
        %1073 = vmatprep.mubr.f32.mxu0 0.0
        %1074 = vmatmul.mubr.f32.gmra.mrb[0].mxu0 %v1004
        %v1075 = vpop.f32.mrb[0].mxu0
        %v1076 = vadd.f32 0.0, %v1075
        %v1077 = vpop.f32.mrb[0].mxu0
        %1078 = vmatprep.mubr.f32.mxu0 0.0
        %1079 = vmatmul.mubr.f32.gmra.mrb[0].mxu0 %v1007
        %v1080 = vpop.f32.mrb[0].mxu0
        %v1081 = vadd.f32 0.0, %v1080
        %v1082 = vpop.f32.mrb[0].mxu0
        %1083 = vdwg.mxu0
        %v1085 = vsel %vm597, %v378, 0
        %v1088 = vsel %vm597, %v379, 0
        %1090 = vmatprep.subr.mxu0 0.0
        %1091 = vmatpush1.msra.mxu0 0.0
        %1092 = vmatprep.subr.mxu0 0.0
        %1093 = vmatpush1.msra.mxu0 0.0
        %1094 = vmatprep.subr.mxu0 0.0
        %1095 = vmatpush1.msra.mxu0 0.0
        %1096 = vmatprep.subr.mxu0 0.0
        %1097 = vmatpush1.msra.mxu0 0.0
        %1098 = vmatprep.subr.mxu0 0.0
        %1099 = vmatpush1.msra.mxu0 0.0
        %1100 = vmatprep.subr.mxu0 0.0
        %1101 = vmatpush1.msra.mxu0 0.0
        %1102 = vmatprep.subr.mxu0 0.0
        %1103 = vmatpush1.msra.mxu0 0.0
        %1104 = vmatprep.subr.mxu0 0.0
        %1105 = vmatpush1.msra.mxu0 0.0
        %1106 = vmatprep.subr.mxu0 0.0
        %1107 = vmatpush1.msra.mxu0 0.0
        %1108 = vmatprep.subr.mxu0 0.0
        %1109 = vmatpush1.msra.mxu0 0.0
        %1110 = vmatprep.subr.mxu0 0.0
        %1111 = vmatpush1.msra.mxu0 0.0
        %1112 = vmatprep.subr.mxu0 0.0
        %1113 = vmatpush1.msra.mxu0 0.0
        %1114 = vmatprep.subr.mxu0 0.0
        %1115 = vmatpush1.msra.mxu0 0.0
        %1116 = vmatprep.subr.mxu0 0.0
        %1117 = vmatpush1.msra.mxu0 0.0
        %1118 = vmatprep.subr.mxu0 0.0
        %1119 = vmatpush1.msra.mxu0 0.0
        %1120 = vmatprep.subr.mxu0 0.0
        %1121 = vmatpush1.msra.mxu0 0.0
        %1122 = vmatprep.subr.mxu0 0.0
        %1123 = vmatpush1.msra.mxu0 0.0
        %1124 = vmatprep.subr.mxu0 0.0
        %1125 = vmatpush1.msra.mxu0 0.0
        %1126 = vmatprep.subr.mxu0 0.0
        %1127 = vmatpush1.msra.mxu0 0.0
        %1128 = vmatprep.subr.mxu0 0.0
        %1129 = vmatpush1.msra.mxu0 0.0
        %1130 = vmatprep.subr.mxu0 0.0
        %1131 = vmatpush1.msra.mxu0 0.0
        %1132 = vmatprep.subr.mxu0 0.0
        %1133 = vmatpush1.msra.mxu0 0.0
        %1134 = vmatprep.subr.mxu0 0.0
        %1135 = vmatpush1.msra.mxu0 0.0
        %1136 = vmatprep.subr.mxu0 0.0
        %1137 = vmatpush1.msra.mxu0 0.0
        %1138 = vmatprep.subr.mxu0 0.0
        %1139 = vmatpush1.msra.mxu0 0.0
        %1140 = vmatprep.subr.mxu0 0.0
        %1141 = vmatpush1.msra.mxu0 0.0
        %1142 = vmatprep.subr.mxu0 0.0
        %1143 = vmatpush1.msra.mxu0 0.0
        %1144 = vmatprep.subr.mxu0 0.0
        %1145 = vmatpush1.msra.mxu0 0.0
        %1146 = vmatprep.subr.mxu0 0.0
        %1147 = vmatpush1.msra.mxu0 0.0
        %1148 = vmatprep.subr.mxu0 0.0
        %1149 = vmatpush1.msra.mxu0 0.0
        %1150 = vmatprep.subr.mxu0 0.0
        %1151 = vmatpush1.msra.mxu0 0.0
        %1152 = vmatprep.subr.mxu0 0.0
        %1153 = vmatpush1.msra.mxu0 0.0
        %1154 = vmatprep.mubr.f32.mxu0 0.0
        %1155 = vmatmul.mubr.f32.gmra.mrb[0].mxu0 %v1085
        %v1156 = vpop.f32.mrb[0].mxu0
        %v1157 = vadd.f32 0.0, %v1156
        %v1158 = vpop.f32.mrb[0].mxu0
        %1159 = vmatprep.mubr.f32.mxu0 0.0
        %1160 = vmatmul.mubr.f32.gmra.mrb[0].mxu0 %v1088
        %v1161 = vpop.f32.mrb[0].mxu0
        %v1162 = vadd.f32 0.0, %v1161
        %v1163 = vpop.f32.mrb[0].mxu0
        %1164 = vdwg.mxu0
        %v1166 = vsel %vm597, %v380, 0
        %v1169 = vsel %vm597, %v381, 0
        %1171 = vmatprep.subr.mxu0 0.0
        %1172 = vmatpush1.msra.mxu0 0.0
        %1173 = vmatprep.subr.mxu0 0.0
        %1174 = vmatpush1.msra.mxu0 0.0
        %1175 = vmatprep.subr.mxu0 0.0
        %1176 = vmatpush1.msra.mxu0 0.0
        %1177 = vmatprep.subr.mxu0 0.0
        %1178 = vmatpush1.msra.mxu0 0.0
        %1179 = vmatprep.subr.mxu0 0.0
        %1180 = vmatpush1.msra.mxu0 0.0
        %1181 = vmatprep.subr.mxu0 0.0
        %1182 = vmatpush1.msra.mxu0 0.0
        %1183 = vmatprep.subr.mxu0 0.0
        %1184 = vmatpush1.msra.mxu0 0.0
        %1185 = vmatprep.subr.mxu0 0.0
        %1186 = vmatpush1.msra.mxu0 0.0
        %1187 = vmatprep.subr.mxu0 0.0
        %1188 = vmatpush1.msra.mxu0 0.0
        %1189 = vmatprep.subr.mxu0 0.0
        %1190 = vmatpush1.msra.mxu0 0.0
        %1191 = vmatprep.subr.mxu0 0.0
        %1192 = vmatpush1.msra.mxu0 0.0
        %1193 = vmatprep.subr.mxu0 0.0
        %1194 = vmatpush1.msra.mxu0 0.0
        %1195 = vmatprep.subr.mxu0 0.0
        %1196 = vmatpush1.msra.mxu0 0.0
        %1197 = vmatprep.subr.mxu0 0.0
        %1198 = vmatpush1.msra.mxu0 0.0
        %1199 = vmatprep.subr.mxu0 0.0
        %1200 = vmatpush1.msra.mxu0 0.0
        %1201 = vmatprep.subr.mxu0 0.0
        %1202 = vmatpush1.msra.mxu0 0.0
        %1203 = vmatprep.subr.mxu0 0.0
        %1204 = vmatpush1.msra.mxu0 0.0
        %1205 = vmatprep.subr.mxu0 0.0
        %1206 = vmatpush1.msra.mxu0 0.0
        %1207 = vmatprep.subr.mxu0 0.0
        %1208 = vmatpush1.msra.mxu0 0.0
        %1209 = vmatprep.subr.mxu0 0.0
        %1210 = vmatpush1.msra.mxu0 0.0
        %1211 = vmatprep.subr.mxu0 0.0
        %1212 = vmatpush1.msra.mxu0 0.0
        %1213 = vmatprep.subr.mxu0 0.0
        %1214 = vmatpush1.msra.mxu0 0.0
        %1215 = vmatprep.subr.mxu0 0.0
        %1216 = vmatpush1.msra.mxu0 0.0
        %1217 = vmatprep.subr.mxu0 0.0
        %1218 = vmatpush1.msra.mxu0 0.0
        %1219 = vmatprep.subr.mxu0 0.0
        %1220 = vmatpush1.msra.mxu0 0.0
        %1221 = vmatprep.subr.mxu0 0.0
        %1222 = vmatpush1.msra.mxu0 0.0
        %1223 = vmatprep.subr.mxu0 0.0
        %1224 = vmatpush1.msra.mxu0 0.0
        %1225 = vmatprep.subr.mxu0 0.0
        %1226 = vmatpush1.msra.mxu0 0.0
        %1227 = vmatprep.subr.mxu0 0.0
        %1228 = vmatpush1.msra.mxu0 0.0
        %1229 = vmatprep.subr.mxu0 0.0
        %1230 = vmatpush1.msra.mxu0 0.0
        %1231 = vmatprep.subr.mxu0 0.0
        %1232 = vmatpush1.msra.mxu0 0.0
        %1233 = vmatprep.subr.mxu0 0.0
        %1234 = vmatpush1.msra.mxu0 0.0
        %1235 = vmatprep.mubr.f32.mxu0 0.0
        %1236 = vmatmul.mubr.f32.gmra.mrb[0].mxu0 %v1166
        %v1237 = vpop.f32.mrb[0].mxu0
        %v1238 = vadd.f32 0.0, %v1237
        %v1239 = vpop.f32.mrb[0].mxu0
        %1240 = vmatprep.mubr.f32.mxu0 0.0
        %1241 = vmatmul.mubr.f32.gmra.mrb[0].mxu0 %v1169
        %v1242 = vpop.f32.mrb[0].mxu0
        %v1243 = vadd.f32 0.0, %v1242
        %v1244 = vpop.f32.mrb[0].mxu0
        %1245 = vdwg.mxu0
        %vm1246 = vcmask 261120
        %v1248 = vsel %vm1246, %v671, 0
        %v1251 = vsel %vm1246, %v676, 0
        %v1254 = vsel %vm1246, %v752, 0
        %v1257 = vsel %vm1246, %v757, 0
        %v1260 = vsel %vm1246, %v833, 0
        %v1263 = vsel %vm1246, %v838, 0
        %v1266 = vsel %vm1246, %v914, 0
        %v1269 = vsel %vm1246, %v919, 0
        %v1272 = vsel %vm1246, %v995, 0
        %v1275 = vsel %vm1246, %v1000, 0
        %v1278 = vsel %vm1246, %v1076, 0
        %v1281 = vsel %vm1246, %v1081, 0
        %v1284 = vsel %vm1246, %v1157, 0
        %v1287 = vsel %vm1246, %v1162, 0
        %v1290 = vsel %vm1246, %v1238, 0
        %v1293 = vsel %vm1246, %v1243, 0
        %1295 = vmatprep.subr.mxu0 0.0
        %1296 = vmatpush1.msra.mxu0 %v383
        %1297 = vmatprep.subr.mxu0 0.0
        %1298 = vmatpush1.msra.mxu0 %v384
        %1299 = vmatprep.subr.mxu0 0.0
        %1300 = vmatpush1.msra.mxu0 %v385
        %1301 = vmatprep.subr.mxu0 0.0
        %1302 = vmatpush1.msra.mxu0 %v386
        %1303 = vmatprep.subr.mxu0 0.0
        %1304 = vmatpush1.msra.mxu0 0.0
        %1305 = vmatprep.subr.mxu0 0.0
        %1306 = vmatpush1.msra.mxu0 0.0
        %1307 = vmatprep.subr.mxu0 0.0
        %1308 = vmatpush1.msra.mxu0 0.0
        %1309 = vmatprep.subr.mxu0 0.0
        %1310 = vmatpush1.msra.mxu0 0.0
        %1311 = vmatprep.subr.mxu0 0.0
        %1312 = vmatpush1.msra.mxu0 0.0
        %1313 = vmatprep.subr.mxu0 0.0
        %1314 = vmatpush1.msra.mxu0 0.0
        %1315 = vmatprep.subr.mxu0 0.0
        %1316 = vmatpush1.msra.mxu0 0.0
        %1317 = vmatprep.subr.mxu0 0.0
        %1318 = vmatpush1.msra.mxu0 0.0
        %1319 = vmatprep.subr.mxu0 0.0
        %1320 = vmatpush1.msra.mxu0 0.0
        %1321 = vmatprep.subr.mxu0 0.0
        %1322 = vmatpush1.msra.mxu0 0.0
        %1323 = vmatprep.subr.mxu0 0.0
        %1324 = vmatpush1.msra.mxu0 0.0
        %1325 = vmatprep.subr.mxu0 0.0
        %1326 = vmatpush1.msra.mxu0 0.0
        %1327 = vmatprep.subr.mxu0 0.0
        %1328 = vmatpush1.msra.mxu0 0.0
        %1329 = vmatprep.subr.mxu0 0.0
        %1330 = vmatpush1.msra.mxu0 0.0
        %1331 = vmatprep.subr.mxu0 0.0
        %1332 = vmatpush1.msra.mxu0 0.0
        %1333 = vmatprep.subr.mxu0 0.0
        %1334 = vmatpush1.msra.mxu0 0.0
        %1335 = vmatprep.subr.mxu0 0.0
        %1336 = vmatpush1.msra.mxu0 0.0
        %1337 = vmatprep.subr.mxu0 0.0
        %1338 = vmatpush1.msra.mxu0 0.0
        %1339 = vmatprep.subr.mxu0 0.0
        %1340 = vmatpush1.msra.mxu0 0.0
        %1341 = vmatprep.subr.mxu0 0.0
        %1342 = vmatpush1.msra.mxu0 0.0
        %1343 = vmatprep.subr.mxu0 0.0
        %1344 = vmatpush1.msra.mxu0 0.0
        %1345 = vmatprep.subr.mxu0 0.0
        %1346 = vmatpush1.msra.mxu0 0.0
        %1347 = vmatprep.subr.mxu0 0.0
        %1348 = vmatpush1.msra.mxu0 0.0
        %1349 = vmatprep.subr.mxu0 0.0
        %1350 = vmatpush1.msra.mxu0 0.0
        %1351 = vmatprep.subr.mxu0 0.0
        %1352 = vmatpush1.msra.mxu0 0.0
        %1353 = vmatprep.subr.mxu0 0.0
        %1354 = vmatpush1.msra.mxu0 0.0
        %1355 = vmatprep.subr.mxu0 0.0
        %1356 = vmatpush1.msra.mxu0 0.0
        %1357 = vmatprep.subr.mxu0 0.0
        %1358 = vmatpush1.msra.mxu0 0.0
        %1359 = vmatprep.mubr.f32.mxu0 0.0
        %1360 = vmatmul.mubr.f32.gmra.mrb[0].mxu0 %v1248
        %v1361 = vpop.f32.mrb[0].mxu0
        %v1362 = vadd.f32 0.0, %v1361
        %v1363 = vpop.f32.mrb[0].mxu0
        %1364 = vmatprep.mubr.f32.mxu0 0.0
        %1365 = vmatmul.mubr.f32.gmra.mrb[0].mxu0 %v1251
        %v1366 = vpop.f32.mrb[0].mxu0
        %v1367 = vadd.f32 0.0, %v1366
        %v1368 = vpop.f32.mrb[0].mxu0
        %1369 = vmatprep.mubr.f32.mxu0 0.0
        %1370 = vmatmul.mubr.f32.gmra.mrb[0].mxu0 %v1254
        %v1371 = vpop.f32.mrb[0].mxu0
        %v1372 = vadd.f32 0.0, %v1371
        %v1373 = vpop.f32.mrb[0].mxu0
        %1374 = vmatprep.mubr.f32.mxu0 0.0
        %1375 = vmatmul.mubr.f32.gmra.mrb[0].mxu0 %v1257
        %v1376 = vpop.f32.mrb[0].mxu0
        %v1377 = vadd.f32 0.0, %v1376
        %v1378 = vpop.f32.mrb[0].mxu0
        %1379 = vmatprep.mubr.f32.mxu0 0.0
        %1380 = vmatmul.mubr.f32.gmra.mrb[0].mxu0 %v1260
        %v1381 = vpop.f32.mrb[0].mxu0
        %v1382 = vadd.f32 0.0, %v1381
        %v1383 = vpop.f32.mrb[0].mxu0
        %1384 = vmatprep.mubr.f32.mxu0 0.0
        %1385 = vmatmul.mubr.f32.gmra.mrb[0].mxu0 %v1263
        %v1386 = vpop.f32.mrb[0].mxu0
        %v1387 = vadd.f32 0.0, %v1386
        %v1388 = vpop.f32.mrb[0].mxu0
        %1389 = vmatprep.mubr.f32.mxu0 0.0
        %1390 = vmatmul.mubr.f32.gmra.mrb[0].mxu0 %v1266
        %v1391 = vpop.f32.mrb[0].mxu0
        %v1392 = vadd.f32 0.0, %v1391
        %v1393 = vpop.f32.mrb[0].mxu0
        %1394 = vmatprep.mubr.f32.mxu0 0.0
        %1395 = vmatmul.mubr.f32.gmra.mrb[0].mxu0 %v1269
        %v1396 = vpop.f32.mrb[0].mxu0
        %v1397 = vadd.f32 0.0, %v1396
        %v1398 = vpop.f32.mrb[0].mxu0
        %1399 = vmatprep.mubr.f32.mxu0 0.0
        %1400 = vmatmul.mubr.f32.gmra.mrb[0].mxu0 %v1272
        %v1401 = vpop.f32.mrb[0].mxu0
        %v1402 = vadd.f32 0.0, %v1401
        %v1403 = vpop.f32.mrb[0].mxu0
        %1404 = vmatprep.mubr.f32.mxu0 0.0
        %1405 = vmatmul.mubr.f32.gmra.mrb[0].mxu0 %v1275
        %v1406 = vpop.f32.mrb[0].mxu0
        %v1407 = vadd.f32 0.0, %v1406
        %v1408 = vpop.f32.mrb[0].mxu0
        %1409 = vmatprep.mubr.f32.mxu0 0.0
        %1410 = vmatmul.mubr.f32.gmra.mrb[0].mxu0 %v1278
        %v1411 = vpop.f32.mrb[0].mxu0
        %v1412 = vadd.f32 0.0, %v1411
        %v1413 = vpop.f32.mrb[0].mxu0
        %1414 = vmatprep.mubr.f32.mxu0 0.0
        %1415 = vmatmul.mubr.f32.gmra.mrb[0].mxu0 %v1281
        %v1416 = vpop.f32.mrb[0].mxu0
        %v1417 = vadd.f32 0.0, %v1416
        %v1418 = vpop.f32.mrb[0].mxu0
        %1419 = vmatprep.mubr.f32.mxu0 0.0
        %1420 = vmatmul.mubr.f32.gmra.mrb[0].mxu0 %v1284
        %v1421 = vpop.f32.mrb[0].mxu0
        %v1422 = vadd.f32 0.0, %v1421
        %v1423 = vpop.f32.mrb[0].mxu0
        %1424 = vmatprep.mubr.f32.mxu0 0.0
        %1425 = vmatmul.mubr.f32.gmra.mrb[0].mxu0 %v1287
        %v1426 = vpop.f32.mrb[0].mxu0
        %v1427 = vadd.f32 0.0, %v1426
        %v1428 = vpop.f32.mrb[0].mxu0
        %1429 = vmatprep.mubr.f32.mxu0 0.0
        %1430 = vmatmul.mubr.f32.gmra.mrb[0].mxu0 %v1290
        %v1431 = vpop.f32.mrb[0].mxu0
        %v1432 = vadd.f32 0.0, %v1431
        %v1433 = vpop.f32.mrb[0].mxu0
        %1434 = vmatprep.mubr.f32.mxu0 0.0
        %1435 = vmatmul.mubr.f32.gmra.mrb[0].mxu0 %v1293
        %v1436 = vpop.f32.mrb[0].mxu0
        %v1437 = vadd.f32 0.0, %v1436
        %v1438 = vpop.f32.mrb[0].mxu0
        %1439 = vdwg.mxu0
        %v1440 = vadd.f32 %v581, %v1362
        %v1441 = vadd.f32 %v582, %v1367
        %v1442 = vadd.f32 %v583, %v1372
        %v1443 = vadd.f32 %v584, %v1377
        %v1444 = vadd.f32 %v585, %v1382
        %v1445 = vadd.f32 %v586, %v1387
        %v1446 = vadd.f32 %v587, %v1392
        %v1447 = vadd.f32 %v588, %v1397
        %v1448 = vadd.f32 %v589, %v1402
        %v1449 = vadd.f32 %v590, %v1407
        %v1450 = vadd.f32 %v591, %v1412
        %v1451 = vadd.f32 %v592, %v1417
        %v1452 = vadd.f32 %v593, %v1422
        %v1453 = vadd.f32 %v594, %v1427
        %v1454 = vadd.f32 %v595, %v1432
        %v1455 = vadd.f32 %v596, %v1437
        %v1456 = vmax.f32 %v1440, 0.0
        %v1457 = vmax.f32 %v1441, 0.0
        %v1458 = vmax.f32 %v1442, 0.0
        %v1459 = vmax.f32 %v1443, 0.0
        %v1460 = vmax.f32 %v1444, 0.0
        %v1461 = vmax.f32 %v1445, 0.0
        %v1462 = vmax.f32 %v1446, 0.0
        %v1463 = vmax.f32 %v1447, 0.0
        %v1464 = vmax.f32 %v1448, 0.0
        %v1465 = vmax.f32 %v1449, 0.0
        %v1466 = vmax.f32 %v1450, 0.0
        %v1467 = vmax.f32 %v1451, 0.0
        %v1468 = vmax.f32 %v1452, 0.0
        %v1469 = vmax.f32 %v1453, 0.0
        %v1470 = vmax.f32 %v1454, 0.0
        %v1471 = vmax.f32 %v1455, 0.0
        %1472 = vmatprep.subr.mxu0 0.0
        %1473 = vmatpush1.msra.mxu0 %v1456
        %1474 = vmatprep.subr.mxu0 0.0
        %1475 = vmatpush1.msra.mxu0 %v1457
        %1476 = vmatprep.subr.mxu0 0.0
        %1477 = vmatpush1.msra.mxu0 0.0
        %1478 = vmatprep.subr.mxu0 0.0
        %1479 = vmatpush1.msra.mxu0 0.0
        %1480 = vmatprep.subr.mxu0 0.0
        %1481 = vmatpush1.msra.mxu0 0.0
        %1482 = vmatprep.subr.mxu0 0.0
        %1483 = vmatpush1.msra.mxu0 0.0
        %1484 = vmatprep.subr.mxu0 0.0
        %1485 = vmatpush1.msra.mxu0 0.0
        %1486 = vmatprep.subr.mxu0 0.0
        %1487 = vmatpush1.msra.mxu0 0.0
        %1488 = vmatprep.subr.mxu0 0.0
        %1489 = vmatpush1.msra.mxu0 0.0
        %1490 = vmatprep.subr.mxu0 0.0
        %1491 = vmatpush1.msra.mxu0 0.0
        %1492 = vmatprep.subr.mxu0 0.0
        %1493 = vmatpush1.msra.mxu0 0.0
        %1494 = vmatprep.subr.mxu0 0.0
        %1495 = vmatpush1.msra.mxu0 0.0
        %1496 = vmatprep.subr.mxu0 0.0
        %1497 = vmatpush1.msra.mxu0 0.0
        %1498 = vmatprep.subr.mxu0 0.0
        %1499 = vmatpush1.msra.mxu0 0.0
        %1500 = vmatprep.subr.mxu0 0.0
        %1501 = vmatpush1.msra.mxu0 0.0
        %1502 = vmatprep.subr.mxu0 0.0
        %1503 = vmatpush1.msra.mxu0 0.0
        %1504 = vmatprep.subr.mxu0 0.0
        %1505 = vmatpush1.msra.mxu0 0.0
        %1506 = vmatprep.subr.mxu0 0.0
        %1507 = vmatpush1.msra.mxu0 0.0
        %1508 = vmatprep.subr.mxu0 0.0
        %1509 = vmatpush1.msra.mxu0 0.0
        %1510 = vmatprep.subr.mxu0 0.0
        %1511 = vmatpush1.msra.mxu0 0.0
        %1512 = vmatprep.subr.mxu0 0.0
        %1513 = vmatpush1.msra.mxu0 0.0
        %1514 = vmatprep.subr.mxu0 0.0
        %1515 = vmatpush1.msra.mxu0 0.0
        %1516 = vmatprep.subr.mxu0 0.0
        %1517 = vmatpush1.msra.mxu0 0.0
        %1518 = vmatprep.subr.mxu0 0.0
        %1519 = vmatpush1.msra.mxu0 0.0
        %1520 = vmatprep.subr.mxu0 0.0
        %1521 = vmatpush1.msra.mxu0 0.0
        %1522 = vmatprep.subr.mxu0 0.0
        %1523 = vmatpush1.msra.mxu0 0.0
        %1524 = vmatprep.subr.mxu0 0.0
        %1525 = vmatpush1.msra.mxu0 0.0
        %1526 = vmatprep.subr.mxu0 0.0
        %1527 = vmatpush1.msra.mxu0 0.0
        %1528 = vmatprep.subr.mxu0 0.0
        %1529 = vmatpush1.msra.mxu0 0.0
        %1530 = vmatprep.subr.mxu0 0.0
        %1531 = vmatpush1.msra.mxu0 0.0
        %1532 = vmatprep.subr.mxu0 0.0
        %1533 = vmatpush1.msra.mxu0 0.0
        %1534 = vmatprep.subr.mxu0 0.0
        %1535 = vmatpush1.msra.mxu0 0.0
        %1536 = vmatprep.mubr.f32.mxu0 0.0
        %1537 = vmatmul.mubr.f32.gmra.mrb[0].mxu0 %v599
        %v1538 = vpop.f32.mrb[0].mxu0
        %v1539 = vadd.f32 0.0, %v1538
        %v1540 = vpop.f32.mrb[0].mxu0
        %1541 = vmatprep.mubr.f32.mxu0 0.0
        %1542 = vmatmul.mubr.f32.gmra.mrb[0].mxu0 %v602
        %v1543 = vpop.f32.mrb[0].mxu0
        %v1544 = vadd.f32 0.0, %v1543
        %v1545 = vpop.f32.mrb[0].mxu0
        %1546 = vdwg.mxu0
        %1547 = vmatprep.subr.mxu0 0.0
        %1548 = vmatpush1.msra.mxu0 %v1458
        %1549 = vmatprep.subr.mxu0 0.0
        %1550 = vmatpush1.msra.mxu0 %v1459
        %1551 = vmatprep.subr.mxu0 0.0
        %1552 = vmatpush1.msra.mxu0 0.0
        %1553 = vmatprep.subr.mxu0 0.0
        %1554 = vmatpush1.msra.mxu0 0.0
        %1555 = vmatprep.subr.mxu0 0.0
        %1556 = vmatpush1.msra.mxu0 0.0
        %1557 = vmatprep.subr.mxu0 0.0
        %1558 = vmatpush1.msra.mxu0 0.0
        %1559 = vmatprep.subr.mxu0 0.0
        %1560 = vmatpush1.msra.mxu0 0.0
        %1561 = vmatprep.subr.mxu0 0.0
        %1562 = vmatpush1.msra.mxu0 0.0
        %1563 = vmatprep.subr.mxu0 0.0
        %1564 = vmatpush1.msra.mxu0 0.0
        %1565 = vmatprep.subr.mxu0 0.0
        %1566 = vmatpush1.msra.mxu0 0.0
        %1567 = vmatprep.subr.mxu0 0.0
        %1568 = vmatpush1.msra.mxu0 0.0
        %1569 = vmatprep.subr.mxu0 0.0
        %1570 = vmatpush1.msra.mxu0 0.0
        %1571 = vmatprep.subr.mxu0 0.0
        %1572 = vmatpush1.msra.mxu0 0.0
        %1573 = vmatprep.subr.mxu0 0.0
        %1574 = vmatpush1.msra.mxu0 0.0
        %1575 = vmatprep.subr.mxu0 0.0
        %1576 = vmatpush1.msra.mxu0 0.0
        %1577 = vmatprep.subr.mxu0 0.0
        %1578 = vmatpush1.msra.mxu0 0.0
        %1579 = vmatprep.subr.mxu0 0.0
        %1580 = vmatpush1.msra.mxu0 0.0
        %1581 = vmatprep.subr.mxu0 0.0
        %1582 = vmatpush1.msra.mxu0 0.0
        %1583 = vmatprep.subr.mxu0 0.0
        %1584 = vmatpush1.msra.mxu0 0.0
        %1585 = vmatprep.subr.mxu0 0.0
        %1586 = vmatpush1.msra.mxu0 0.0
        %1587 = vmatprep.subr.mxu0 0.0
        %1588 = vmatpush1.msra.mxu0 0.0
        %1589 = vmatprep.subr.mxu0 0.0
        %1590 = vmatpush1.msra.mxu0 0.0
        %1591 = vmatprep.subr.mxu0 0.0
        %1592 = vmatpush1.msra.mxu0 0.0
        %1593 = vmatprep.subr.mxu0 0.0
        %1594 = vmatpush1.msra.mxu0 0.0
        %1595 = vmatprep.subr.mxu0 0.0
        %1596 = vmatpush1.msra.mxu0 0.0
        %1597 = vmatprep.subr.mxu0 0.0
        %1598 = vmatpush1.msra.mxu0 0.0
        %1599 = vmatprep.subr.mxu0 0.0
        %1600 = vmatpush1.msra.mxu0 0.0
        %1601 = vmatprep.subr.mxu0 0.0
        %1602 = vmatpush1.msra.mxu0 0.0
        %1603 = vmatprep.subr.mxu0 0.0
        %1604 = vmatpush1.msra.mxu0 0.0
        %1605 = vmatprep.subr.mxu0 0.0
        %1606 = vmatpush1.msra.mxu0 0.0
        %1607 = vmatprep.subr.mxu0 0.0
        %1608 = vmatpush1.msra.mxu0 0.0
        %1609 = vmatprep.subr.mxu0 0.0
        %1610 = vmatpush1.msra.mxu0 0.0
        %1611 = vmatprep.mubr.f32.mxu0 0.0
        %1612 = vmatmul.mubr.f32.gmra.mrb[0].mxu0 %v680
        %v1613 = vpop.f32.mrb[0].mxu0
        %v1614 = vadd.f32 0.0, %v1613
        %v1615 = vpop.f32.mrb[0].mxu0
        %1616 = vmatprep.mubr.f32.mxu0 0.0
        %1617 = vmatmul.mubr.f32.gmra.mrb[0].mxu0 %v683
        %v1618 = vpop.f32.mrb[0].mxu0
        %v1619 = vadd.f32 0.0, %v1618
        %v1620 = vpop.f32.mrb[0].mxu0
        %1621 = vdwg.mxu0
        %1622 = vmatprep.subr.mxu0 0.0
        %1623 = vmatpush1.msra.mxu0 %v1460
        %1624 = vmatprep.subr.mxu0 0.0
        %1625 = vmatpush1.msra.mxu0 %v1461
        %1626 = vmatprep.subr.mxu0 0.0
        %1627 = vmatpush1.msra.mxu0 0.0
        %1628 = vmatprep.subr.mxu0 0.0
        %1629 = vmatpush1.msra.mxu0 0.0
        %1630 = vmatprep.subr.mxu0 0.0
        %1631 = vmatpush1.msra.mxu0 0.0
        %1632 = vmatprep.subr.mxu0 0.0
        %1633 = vmatpush1.msra.mxu0 0.0
        %1634 = vmatprep.subr.mxu0 0.0
        %1635 = vmatpush1.msra.mxu0 0.0
        %1636 = vmatprep.subr.mxu0 0.0
        %1637 = vmatpush1.msra.mxu0 0.0
        %1638 = vmatprep.subr.mxu0 0.0
        %1639 = vmatpush1.msra.mxu0 0.0
        %1640 = vmatprep.subr.mxu0 0.0
        %1641 = vmatpush1.msra.mxu0 0.0
        %1642 = vmatprep.subr.mxu0 0.0
        %1643 = vmatpush1.msra.mxu0 0.0
        %1644 = vmatprep.subr.mxu0 0.0
        %1645 = vmatpush1.msra.mxu0 0.0
        %1646 = vmatprep.subr.mxu0 0.0
        %1647 = vmatpush1.msra.mxu0 0.0
        %1648 = vmatprep.subr.mxu0 0.0
        %1649 = vmatpush1.msra.mxu0 0.0
        %1650 = vmatprep.subr.mxu0 0.0
        %1651 = vmatpush1.msra.mxu0 0.0
        %1652 = vmatprep.subr.mxu0 0.0
        %1653 = vmatpush1.msra.mxu0 0.0
        %1654 = vmatprep.subr.mxu0 0.0
        %1655 = vmatpush1.msra.mxu0 0.0
        %1656 = vmatprep.subr.mxu0 0.0
        %1657 = vmatpush1.msra.mxu0 0.0
        %1658 = vmatprep.subr.mxu0 0.0
        %1659 = vmatpush1.msra.mxu0 0.0
        %1660 = vmatprep.subr.mxu0 0.0
        %1661 = vmatpush1.msra.mxu0 0.0
        %1662 = vmatprep.subr.mxu0 0.0
        %1663 = vmatpush1.msra.mxu0 0.0
        %1664 = vmatprep.subr.mxu0 0.0
        %1665 = vmatpush1.msra.mxu0 0.0
        %1666 = vmatprep.subr.mxu0 0.0
        %1667 = vmatpush1.msra.mxu0 0.0
        %1668 = vmatprep.subr.mxu0 0.0
        %1669 = vmatpush1.msra.mxu0 0.0
        %1670 = vmatprep.subr.mxu0 0.0
        %1671 = vmatpush1.msra.mxu0 0.0
        %1672 = vmatprep.subr.mxu0 0.0
        %1673 = vmatpush1.msra.mxu0 0.0
        %1674 = vmatprep.subr.mxu0 0.0
        %1675 = vmatpush1.msra.mxu0 0.0
        %1676 = vmatprep.subr.mxu0 0.0
        %1677 = vmatpush1.msra.mxu0 0.0
        %1678 = vmatprep.subr.mxu0 0.0
        %1679 = vmatpush1.msra.mxu0 0.0
        %1680 = vmatprep.subr.mxu0 0.0
        %1681 = vmatpush1.msra.mxu0 0.0
        %1682 = vmatprep.subr.mxu0 0.0
        %1683 = vmatpush1.msra.mxu0 0.0
        %1684 = vmatprep.subr.mxu0 0.0
        %1685 = vmatpush1.msra.mxu0 0.0
        %1686 = vmatprep.mubr.f32.mxu0 0.0
        %1687 = vmatmul.mubr.f32.gmra.mrb[0].mxu0 %v761
        %v1688 = vpop.f32.mrb[0].mxu0
        %v1689 = vadd.f32 0.0, %v1688
        %v1690 = vpop.f32.mrb[0].mxu0
        %1691 = vmatprep.mubr.f32.mxu0 0.0
        %1692 = vmatmul.mubr.f32.gmra.mrb[0].mxu0 %v764
        %v1693 = vpop.f32.mrb[0].mxu0
        %v1694 = vadd.f32 0.0, %v1693
        %v1695 = vpop.f32.mrb[0].mxu0
        %1696 = vdwg.mxu0
        %1697 = vmatprep.subr.mxu0 0.0
        %1698 = vmatpush1.msra.mxu0 %v1462
        %1699 = vmatprep.subr.mxu0 0.0
        %1700 = vmatpush1.msra.mxu0 %v1463
        %1701 = vmatprep.subr.mxu0 0.0
        %1702 = vmatpush1.msra.mxu0 0.0
        %1703 = vmatprep.subr.mxu0 0.0
        %1704 = vmatpush1.msra.mxu0 0.0
        %1705 = vmatprep.subr.mxu0 0.0
        %1706 = vmatpush1.msra.mxu0 0.0
        %1707 = vmatprep.subr.mxu0 0.0
        %1708 = vmatpush1.msra.mxu0 0.0
        %1709 = vmatprep.subr.mxu0 0.0
        %1710 = vmatpush1.msra.mxu0 0.0
        %1711 = vmatprep.subr.mxu0 0.0
        %1712 = vmatpush1.msra.mxu0 0.0
        %1713 = vmatprep.subr.mxu0 0.0
        %1714 = vmatpush1.msra.mxu0 0.0
        %1715 = vmatprep.subr.mxu0 0.0
        %1716 = vmatpush1.msra.mxu0 0.0
        %1717 = vmatprep.subr.mxu0 0.0
        %1718 = vmatpush1.msra.mxu0 0.0
        %1719 = vmatprep.subr.mxu0 0.0
        %1720 = vmatpush1.msra.mxu0 0.0
        %1721 = vmatprep.subr.mxu0 0.0
        %1722 = vmatpush1.msra.mxu0 0.0
        %1723 = vmatprep.subr.mxu0 0.0
        %1724 = vmatpush1.msra.mxu0 0.0
        %1725 = vmatprep.subr.mxu0 0.0
        %1726 = vmatpush1.msra.mxu0 0.0
        %1727 = vmatprep.subr.mxu0 0.0
        %1728 = vmatpush1.msra.mxu0 0.0
        %1729 = vmatprep.subr.mxu0 0.0
        %1730 = vmatpush1.msra.mxu0 0.0
        %1731 = vmatprep.subr.mxu0 0.0
        %1732 = vmatpush1.msra.mxu0 0.0
        %1733 = vmatprep.subr.mxu0 0.0
        %1734 = vmatpush1.msra.mxu0 0.0
        %1735 = vmatprep.subr.mxu0 0.0
        %1736 = vmatpush1.msra.mxu0 0.0
        %1737 = vmatprep.subr.mxu0 0.0
        %1738 = vmatpush1.msra.mxu0 0.0
        %1739 = vmatprep.subr.mxu0 0.0
        %1740 = vmatpush1.msra.mxu0 0.0
        %1741 = vmatprep.subr.mxu0 0.0
        %1742 = vmatpush1.msra.mxu0 0.0
        %1743 = vmatprep.subr.mxu0 0.0
        %1744 = vmatpush1.msra.mxu0 0.0
        %1745 = vmatprep.subr.mxu0 0.0
        %1746 = vmatpush1.msra.mxu0 0.0
        %1747 = vmatprep.subr.mxu0 0.0
        %1748 = vmatpush1.msra.mxu0 0.0
        %1749 = vmatprep.subr.mxu0 0.0
        %1750 = vmatpush1.msra.mxu0 0.0
        %1751 = vmatprep.subr.mxu0 0.0
        %1752 = vmatpush1.msra.mxu0 0.0
        %1753 = vmatprep.subr.mxu0 0.0
        %1754 = vmatpush1.msra.mxu0 0.0
        %1755 = vmatprep.subr.mxu0 0.0
        %1756 = vmatpush1.msra.mxu0 0.0
        %1757 = vmatprep.subr.mxu0 0.0
        %1758 = vmatpush1.msra.mxu0 0.0
        %1759 = vmatprep.subr.mxu0 0.0
        %1760 = vmatpush1.msra.mxu0 0.0
        %1761 = vmatprep.mubr.f32.mxu0 0.0
        %1762 = vmatmul.mubr.f32.gmra.mrb[0].mxu0 %v842
        %v1763 = vpop.f32.mrb[0].mxu0
        %v1764 = vadd.f32 0.0, %v1763
        %v1765 = vpop.f32.mrb[0].mxu0
        %1766 = vmatprep.mubr.f32.mxu0 0.0
        %1767 = vmatmul.mubr.f32.gmra.mrb[0].mxu0 %v845
        %v1768 = vpop.f32.mrb[0].mxu0
        %v1769 = vadd.f32 0.0, %v1768
        %v1770 = vpop.f32.mrb[0].mxu0
        %1771 = vdwg.mxu0
        %1772 = vmatprep.subr.mxu0 0.0
        %1773 = vmatpush1.msra.mxu0 %v1464
        %1774 = vmatprep.subr.mxu0 0.0
        %1775 = vmatpush1.msra.mxu0 %v1465
        %1776 = vmatprep.subr.mxu0 0.0
        %1777 = vmatpush1.msra.mxu0 0.0
        %1778 = vmatprep.subr.mxu0 0.0
        %1779 = vmatpush1.msra.mxu0 0.0
        %1780 = vmatprep.subr.mxu0 0.0
        %1781 = vmatpush1.msra.mxu0 0.0
        %1782 = vmatprep.subr.mxu0 0.0
        %1783 = vmatpush1.msra.mxu0 0.0
        %1784 = vmatprep.subr.mxu0 0.0
        %1785 = vmatpush1.msra.mxu0 0.0
        %1786 = vmatprep.subr.mxu0 0.0
        %1787 = vmatpush1.msra.mxu0 0.0
        %1788 = vmatprep.subr.mxu0 0.0
        %1789 = vmatpush1.msra.mxu0 0.0
        %1790 = vmatprep.subr.mxu0 0.0
        %1791 = vmatpush1.msra.mxu0 0.0
        %1792 = vmatprep.subr.mxu0 0.0
        %1793 = vmatpush1.msra.mxu0 0.0
        %1794 = vmatprep.subr.mxu0 0.0
        %1795 = vmatpush1.msra.mxu0 0.0
        %1796 = vmatprep.subr.mxu0 0.0
        %1797 = vmatpush1.msra.mxu0 0.0
        %1798 = vmatprep.subr.mxu0 0.0
        %1799 = vmatpush1.msra.mxu0 0.0
        %1800 = vmatprep.subr.mxu0 0.0
        %1801 = vmatpush1.msra.mxu0 0.0
        %1802 = vmatprep.subr.mxu0 0.0
        %1803 = vmatpush1.msra.mxu0 0.0
        %1804 = vmatprep.subr.mxu0 0.0
        %1805 = vmatpush1.msra.mxu0 0.0
        %1806 = vmatprep.subr.mxu0 0.0
        %1807 = vmatpush1.msra.mxu0 0.0
        %1808 = vmatprep.subr.mxu0 0.0
        %1809 = vmatpush1.msra.mxu0 0.0
        %1810 = vmatprep.subr.mxu0 0.0
        %1811 = vmatpush1.msra.mxu0 0.0
        %1812 = vmatprep.subr.mxu0 0.0
        %1813 = vmatpush1.msra.mxu0 0.0
        %1814 = vmatprep.subr.mxu0 0.0
        %1815 = vmatpush1.msra.mxu0 0.0
        %1816 = vmatprep.subr.mxu0 0.0
        %1817 = vmatpush1.msra.mxu0 0.0
        %1818 = vmatprep.subr.mxu0 0.0
        %1819 = vmatpush1.msra.mxu0 0.0
        %1820 = vmatprep.subr.mxu0 0.0
        %1821 = vmatpush1.msra.mxu0 0.0
        %1822 = vmatprep.subr.mxu0 0.0
        %1823 = vmatpush1.msra.mxu0 0.0
        %1824 = vmatprep.subr.mxu0 0.0
        %1825 = vmatpush1.msra.mxu0 0.0
        %1826 = vmatprep.subr.mxu0 0.0
        %1827 = vmatpush1.msra.mxu0 0.0
        %1828 = vmatprep.subr.mxu0 0.0
        %1829 = vmatpush1.msra.mxu0 0.0
        %1830 = vmatprep.subr.mxu0 0.0
        %1831 = vmatpush1.msra.mxu0 0.0
        %1832 = vmatprep.subr.mxu0 0.0
        %1833 = vmatpush1.msra.mxu0 0.0
        %1834 = vmatprep.subr.mxu0 0.0
        %1835 = vmatpush1.msra.mxu0 0.0
        %1836 = vmatprep.mubr.f32.mxu0 0.0
        %1837 = vmatmul.mubr.f32.gmra.mrb[0].mxu0 %v923
        %v1838 = vpop.f32.mrb[0].mxu0
        %v1839 = vadd.f32 0.0, %v1838
        %v1840 = vpop.f32.mrb[0].mxu0
        %1841 = vmatprep.mubr.f32.mxu0 0.0
        %1842 = vmatmul.mubr.f32.gmra.mrb[0].mxu0 %v926
        %v1843 = vpop.f32.mrb[0].mxu0
        %v1844 = vadd.f32 0.0, %v1843
        %v1845 = vpop.f32.mrb[0].mxu0
        %1846 = vdwg.mxu0
        %1847 = vmatprep.subr.mxu0 0.0
        %1848 = vmatpush1.msra.mxu0 %v1466
        %1849 = vmatprep.subr.mxu0 0.0
        %1850 = vmatpush1.msra.mxu0 %v1467
        %1851 = vmatprep.subr.mxu0 0.0
        %1852 = vmatpush1.msra.mxu0 0.0
        %1853 = vmatprep.subr.mxu0 0.0
        %1854 = vmatpush1.msra.mxu0 0.0
        %1855 = vmatprep.subr.mxu0 0.0
        %1856 = vmatpush1.msra.mxu0 0.0
        %1857 = vmatprep.subr.mxu0 0.0
        %1858 = vmatpush1.msra.mxu0 0.0
        %1859 = vmatprep.subr.mxu0 0.0
        %1860 = vmatpush1.msra.mxu0 0.0
        %1861 = vmatprep.subr.mxu0 0.0
        %1862 = vmatpush1.msra.mxu0 0.0
        %1863 = vmatprep.subr.mxu0 0.0
        %1864 = vmatpush1.msra.mxu0 0.0
        %1865 = vmatprep.subr.mxu0 0.0
        %1866 = vmatpush1.msra.mxu0 0.0
        %1867 = vmatprep.subr.mxu0 0.0
        %1868 = vmatpush1.msra.mxu0 0.0
        %1869 = vmatprep.subr.mxu0 0.0
        %1870 = vmatpush1.msra.mxu0 0.0
        %1871 = vmatprep.subr.mxu0 0.0
        %1872 = vmatpush1.msra.mxu0 0.0
        %1873 = vmatprep.subr.mxu0 0.0
        %1874 = vmatpush1.msra.mxu0 0.0
        %1875 = vmatprep.subr.mxu0 0.0
        %1876 = vmatpush1.msra.mxu0 0.0
        %1877 = vmatprep.subr.mxu0 0.0
        %1878 = vmatpush1.msra.mxu0 0.0
        %1879 = vmatprep.subr.mxu0 0.0
        %1880 = vmatpush1.msra.mxu0 0.0
        %1881 = vmatprep.subr.mxu0 0.0
        %1882 = vmatpush1.msra.mxu0 0.0
        %1883 = vmatprep.subr.mxu0 0.0
        %1884 = vmatpush1.msra.mxu0 0.0
        %1885 = vmatprep.subr.mxu0 0.0
        %1886 = vmatpush1.msra.mxu0 0.0
        %1887 = vmatprep.subr.mxu0 0.0
        %1888 = vmatpush1.msra.mxu0 0.0
        %1889 = vmatprep.subr.mxu0 0.0
        %1890 = vmatpush1.msra.mxu0 0.0
        %1891 = vmatprep.subr.mxu0 0.0
        %1892 = vmatpush1.msra.mxu0 0.0
        %1893 = vmatprep.subr.mxu0 0.0
        %1894 = vmatpush1.msra.mxu0 0.0
        %1895 = vmatprep.subr.mxu0 0.0
        %1896 = vmatpush1.msra.mxu0 0.0
        %1897 = vmatprep.subr.mxu0 0.0
        %1898 = vmatpush1.msra.mxu0 0.0
        %1899 = vmatprep.subr.mxu0 0.0
        %1900 = vmatpush1.msra.mxu0 0.0
        %1901 = vmatprep.subr.mxu0 0.0
        %1902 = vmatpush1.msra.mxu0 0.0
        %1903 = vmatprep.subr.mxu0 0.0
        %1904 = vmatpush1.msra.mxu0 0.0
        %1905 = vmatprep.subr.mxu0 0.0
        %1906 = vmatpush1.msra.mxu0 0.0
        %1907 = vmatprep.subr.mxu0 0.0
        %1908 = vmatpush1.msra.mxu0 0.0
        %1909 = vmatprep.subr.mxu0 0.0
        %1910 = vmatpush1.msra.mxu0 0.0
        %1911 = vmatprep.mubr.f32.mxu0 0.0
        %1912 = vmatmul.mubr.f32.gmra.mrb[0].mxu0 %v1004
        %v1913 = vpop.f32.mrb[0].mxu0
        %v1914 = vadd.f32 0.0, %v1913
        %v1915 = vpop.f32.mrb[0].mxu0
        %1916 = vmatprep.mubr.f32.mxu0 0.0
        %1917 = vmatmul.mubr.f32.gmra.mrb[0].mxu0 %v1007
        %v1918 = vpop.f32.mrb[0].mxu0
        %v1919 = vadd.f32 0.0, %v1918
        %v1920 = vpop.f32.mrb[0].mxu0
        %1921 = vdwg.mxu0
        %1922 = vmatprep.subr.mxu0 0.0
        %1923 = vmatpush1.msra.mxu0 %v1468
        %1924 = vmatprep.subr.mxu0 0.0
        %1925 = vmatpush1.msra.mxu0 %v1469
        %1926 = vmatprep.subr.mxu0 0.0
        %1927 = vmatpush1.msra.mxu0 0.0
        %1928 = vmatprep.subr.mxu0 0.0
        %1929 = vmatpush1.msra.mxu0 0.0
        %1930 = vmatprep.subr.mxu0 0.0
        %1931 = vmatpush1.msra.mxu0 0.0
        %1932 = vmatprep.subr.mxu0 0.0
        %1933 = vmatpush1.msra.mxu0 0.0
        %1934 = vmatprep.subr.mxu0 0.0
        %1935 = vmatpush1.msra.mxu0 0.0
        %1936 = vmatprep.subr.mxu0 0.0
        %1937 = vmatpush1.msra.mxu0 0.0
        %1938 = vmatprep.subr.mxu0 0.0
        %1939 = vmatpush1.msra.mxu0 0.0
        %1940 = vmatprep.subr.mxu0 0.0
        %1941 = vmatpush1.msra.mxu0 0.0
        %1942 = vmatprep.subr.mxu0 0.0
        %1943 = vmatpush1.msra.mxu0 0.0
        %1944 = vmatprep.subr.mxu0 0.0
        %1945 = vmatpush1.msra.mxu0 0.0
        %1946 = vmatprep.subr.mxu0 0.0
        %1947 = vmatpush1.msra.mxu0 0.0
        %1948 = vmatprep.subr.mxu0 0.0
        %1949 = vmatpush1.msra.mxu0 0.0
        %1950 = vmatprep.subr.mxu0 0.0
        %1951 = vmatpush1.msra.mxu0 0.0
        %1952 = vmatprep.subr.mxu0 0.0
        %1953 = vmatpush1.msra.mxu0 0.0
        %1954 = vmatprep.subr.mxu0 0.0
        %1955 = vmatpush1.msra.mxu0 0.0
        %1956 = vmatprep.subr.mxu0 0.0
        %1957 = vmatpush1.msra.mxu0 0.0
        %1958 = vmatprep.subr.mxu0 0.0
        %1959 = vmatpush1.msra.mxu0 0.0
        %1960 = vmatprep.subr.mxu0 0.0
        %1961 = vmatpush1.msra.mxu0 0.0
        %1962 = vmatprep.subr.mxu0 0.0
        %1963 = vmatpush1.msra.mxu0 0.0
        %1964 = vmatprep.subr.mxu0 0.0
        %1965 = vmatpush1.msra.mxu0 0.0
        %1966 = vmatprep.subr.mxu0 0.0
        %1967 = vmatpush1.msra.mxu0 0.0
        %1968 = vmatprep.subr.mxu0 0.0
        %1969 = vmatpush1.msra.mxu0 0.0
        %1970 = vmatprep.subr.mxu0 0.0
        %1971 = vmatpush1.msra.mxu0 0.0
        %1972 = vmatprep.subr.mxu0 0.0
        %1973 = vmatpush1.msra.mxu0 0.0
        %1974 = vmatprep.subr.mxu0 0.0
        %1975 = vmatpush1.msra.mxu0 0.0
        %1976 = vmatprep.subr.mxu0 0.0
        %1977 = vmatpush1.msra.mxu0 0.0
        %1978 = vmatprep.subr.mxu0 0.0
        %1979 = vmatpush1.msra.mxu0 0.0
        %1980 = vmatprep.subr.mxu0 0.0
        %1981 = vmatpush1.msra.mxu0 0.0
        %1982 = vmatprep.subr.mxu0 0.0
        %1983 = vmatpush1.msra.mxu0 0.0
        %1984 = vmatprep.subr.mxu0 0.0
        %1985 = vmatpush1.msra.mxu0 0.0
        %1986 = vmatprep.mubr.f32.mxu0 0.0
        %1987 = vmatmul.mubr.f32.gmra.mrb[0].mxu0 %v1085
        %v1988 = vpop.f32.mrb[0].mxu0
        %v1989 = vadd.f32 0.0, %v1988
        %v1990 = vpop.f32.mrb[0].mxu0
        %1991 = vmatprep.mubr.f32.mxu0 0.0
        %1992 = vmatmul.mubr.f32.gmra.mrb[0].mxu0 %v1088
        %v1993 = vpop.f32.mrb[0].mxu0
        %v1994 = vadd.f32 0.0, %v1993
        %v1995 = vpop.f32.mrb[0].mxu0
        %1996 = vdwg.mxu0
        %1997 = vmatprep.subr.mxu0 0.0
        %1998 = vmatpush1.msra.mxu0 %v1470
        %1999 = vmatprep.subr.mxu0 0.0
        %2000 = vmatpush1.msra.mxu0 %v1471
        %2001 = vmatprep.subr.mxu0 0.0
        %2002 = vmatpush1.msra.mxu0 0.0
        %2003 = vmatprep.subr.mxu0 0.0
        %2004 = vmatpush1.msra.mxu0 0.0
        %2005 = vmatprep.subr.mxu0 0.0
        %2006 = vmatpush1.msra.mxu0 0.0
        %2007 = vmatprep.subr.mxu0 0.0
        %2008 = vmatpush1.msra.mxu0 0.0
        %2009 = vmatprep.subr.mxu0 0.0
        %2010 = vmatpush1.msra.mxu0 0.0
        %2011 = vmatprep.subr.mxu0 0.0
        %2012 = vmatpush1.msra.mxu0 0.0
        %2013 = vmatprep.subr.mxu0 0.0
        %2014 = vmatpush1.msra.mxu0 0.0
        %2015 = vmatprep.subr.mxu0 0.0
        %2016 = vmatpush1.msra.mxu0 0.0
        %2017 = vmatprep.subr.mxu0 0.0
        %2018 = vmatpush1.msra.mxu0 0.0
        %2019 = vmatprep.subr.mxu0 0.0
        %2020 = vmatpush1.msra.mxu0 0.0
        %2021 = vmatprep.subr.mxu0 0.0
        %2022 = vmatpush1.msra.mxu0 0.0
        %2023 = vmatprep.subr.mxu0 0.0
        %2024 = vmatpush1.msra.mxu0 0.0
        %2025 = vmatprep.subr.mxu0 0.0
        %2026 = vmatpush1.msra.mxu0 0.0
        %2027 = vmatprep.subr.mxu0 0.0
        %2028 = vmatpush1.msra.mxu0 0.0
        %2029 = vmatprep.subr.mxu0 0.0
        %2030 = vmatpush1.msra.mxu0 0.0
        %2031 = vmatprep.subr.mxu0 0.0
        %2032 = vmatpush1.msra.mxu0 0.0
        %2033 = vmatprep.subr.mxu0 0.0
        %2034 = vmatpush1.msra.mxu0 0.0
        %2035 = vmatprep.subr.mxu0 0.0
        %2036 = vmatpush1.msra.mxu0 0.0
        %2037 = vmatprep.subr.mxu0 0.0
        %2038 = vmatpush1.msra.mxu0 0.0
        %2039 = vmatprep.subr.mxu0 0.0
        %2040 = vmatpush1.msra.mxu0 0.0
        %2041 = vmatprep.subr.mxu0 0.0
        %2042 = vmatpush1.msra.mxu0 0.0
        %2043 = vmatprep.subr.mxu0 0.0
        %2044 = vmatpush1.msra.mxu0 0.0
        %2045 = vmatprep.subr.mxu0 0.0
        %2046 = vmatpush1.msra.mxu0 0.0
        %2047 = vmatprep.subr.mxu0 0.0
        %2048 = vmatpush1.msra.mxu0 0.0
        %2049 = vmatprep.subr.mxu0 0.0
        %2050 = vmatpush1.msra.mxu0 0.0
        %2051 = vmatprep.subr.mxu0 0.0
        %2052 = vmatpush1.msra.mxu0 0.0
        %2053 = vmatprep.subr.mxu0 0.0
        %2054 = vmatpush1.msra.mxu0 0.0
        %2055 = vmatprep.subr.mxu0 0.0
        %2056 = vmatpush1.msra.mxu0 0.0
        %2057 = vmatprep.subr.mxu0 0.0
        %2058 = vmatpush1.msra.mxu0 0.0
        %2059 = vmatprep.subr.mxu0 0.0
        %2060 = vmatpush1.msra.mxu0 0.0
        %2061 = vmatprep.mubr.f32.mxu0 0.0
        %2062 = vmatmul.mubr.f32.gmra.mrb[0].mxu0 %v1166
        %v2063 = vpop.f32.mrb[0].mxu0
        %v2064 = vadd.f32 0.0, %v2063
        %v2065 = vpop.f32.mrb[0].mxu0
        %2066 = vmatprep.mubr.f32.mxu0 0.0
        %2067 = vmatmul.mubr.f32.gmra.mrb[0].mxu0 %v1169
        %v2068 = vpop.f32.mrb[0].mxu0
        %v2069 = vadd.f32 0.0, %v2068
        %v2070 = vpop.f32.mrb[0].mxu0
        %2071 = vdwg.mxu0
        %v2073 = vsel %vm1246, %v1539, 0
        %v2076 = vsel %vm1246, %v1544, 0
        %v2079 = vsel %vm1246, %v1614, 0
        %v2082 = vsel %vm1246, %v1619, 0
        %v2085 = vsel %vm1246, %v1689, 0
        %v2088 = vsel %vm1246, %v1694, 0
        %v2091 = vsel %vm1246, %v1764, 0
        %v2094 = vsel %vm1246, %v1769, 0
        %v2097 = vsel %vm1246, %v1839, 0
        %v2100 = vsel %vm1246, %v1844, 0
        %v2103 = vsel %vm1246, %v1914, 0
        %v2106 = vsel %vm1246, %v1919, 0
        %v2109 = vsel %vm1246, %v1989, 0
        %v2112 = vsel %vm1246, %v1994, 0
        %v2115 = vsel %vm1246, %v2064, 0
        %v2118 = vsel %vm1246, %v2069, 0
        %2120 = vmatprep.subr.mxu0 0.0
        %2121 = vmatpush1.msra.mxu0 %v383
        %2122 = vmatprep.subr.mxu0 0.0
        %2123 = vmatpush1.msra.mxu0 %v384
        %2124 = vmatprep.subr.mxu0 0.0
        %2125 = vmatpush1.msra.mxu0 %v385
        %2126 = vmatprep.subr.mxu0 0.0
        %2127 = vmatpush1.msra.mxu0 %v386
        %2128 = vmatprep.subr.mxu0 0.0
        %2129 = vmatpush1.msra.mxu0 0.0
        %2130 = vmatprep.subr.mxu0 0.0
        %2131 = vmatpush1.msra.mxu0 0.0
        %2132 = vmatprep.subr.mxu0 0.0
        %2133 = vmatpush1.msra.mxu0 0.0
        %2134 = vmatprep.subr.mxu0 0.0
        %2135 = vmatpush1.msra.mxu0 0.0
        %2136 = vmatprep.subr.mxu0 0.0
        %2137 = vmatpush1.msra.mxu0 0.0
        %2138 = vmatprep.subr.mxu0 0.0
        %2139 = vmatpush1.msra.mxu0 0.0
        %2140 = vmatprep.subr.mxu0 0.0
        %2141 = vmatpush1.msra.mxu0 0.0
        %2142 = vmatprep.subr.mxu0 0.0
        %2143 = vmatpush1.msra.mxu0 0.0
        %2144 = vmatprep.subr.mxu0 0.0
        %2145 = vmatpush1.msra.mxu0 0.0
        %2146 = vmatprep.subr.mxu0 0.0
        %2147 = vmatpush1.msra.mxu0 0.0
        %2148 = vmatprep.subr.mxu0 0.0
        %2149 = vmatpush1.msra.mxu0 0.0
        %2150 = vmatprep.subr.mxu0 0.0
        %2151 = vmatpush1.msra.mxu0 0.0
        %2152 = vmatprep.subr.mxu0 0.0
        %2153 = vmatpush1.msra.mxu0 0.0
        %2154 = vmatprep.subr.mxu0 0.0
        %2155 = vmatpush1.msra.mxu0 0.0
        %2156 = vmatprep.subr.mxu0 0.0
        %2157 = vmatpush1.msra.mxu0 0.0
        %2158 = vmatprep.subr.mxu0 0.0
        %2159 = vmatpush1.msra.mxu0 0.0
        %2160 = vmatprep.subr.mxu0 0.0
        %2161 = vmatpush1.msra.mxu0 0.0
        %2162 = vmatprep.subr.mxu0 0.0
        %2163 = vmatpush1.msra.mxu0 0.0
        %2164 = vmatprep.subr.mxu0 0.0
        %2165 = vmatpush1.msra.mxu0 0.0
        %2166 = vmatprep.subr.mxu0 0.0
        %2167 = vmatpush1.msra.mxu0 0.0
        %2168 = vmatprep.subr.mxu0 0.0
        %2169 = vmatpush1.msra.mxu0 0.0
        %2170 = vmatprep.subr.mxu0 0.0
        %2171 = vmatpush1.msra.mxu0 0.0
        %2172 = vmatprep.subr.mxu0 0.0
        %2173 = vmatpush1.msra.mxu0 0.0
        %2174 = vmatprep.subr.mxu0 0.0
        %2175 = vmatpush1.msra.mxu0 0.0
        %2176 = vmatprep.subr.mxu0 0.0
        %2177 = vmatpush1.msra.mxu0 0.0
        %2178 = vmatprep.subr.mxu0 0.0
        %2179 = vmatpush1.msra.mxu0 0.0
        %2180 = vmatprep.subr.mxu0 0.0
        %2181 = vmatpush1.msra.mxu0 0.0
        %2182 = vmatprep.subr.mxu0 0.0
        %2183 = vmatpush1.msra.mxu0 0.0
        %2184 = vmatprep.mubr.f32.mxu0 0.0
        %2185 = vmatmul.mubr.f32.gmra.mrb[0].mxu0 %v2073
        %v2186 = vpop.f32.mrb[0].mxu0
        %v2187 = vadd.f32 0.0, %v2186
        %v2188 = vpop.f32.mrb[0].mxu0
        %2189 = vmatprep.mubr.f32.mxu0 0.0
        %2190 = vmatmul.mubr.f32.gmra.mrb[0].mxu0 %v2076
        %v2191 = vpop.f32.mrb[0].mxu0
        %v2192 = vadd.f32 0.0, %v2191
        %v2193 = vpop.f32.mrb[0].mxu0
        %2194 = vmatprep.mubr.f32.mxu0 0.0
        %2195 = vmatmul.mubr.f32.gmra.mrb[0].mxu0 %v2079
        %v2196 = vpop.f32.mrb[0].mxu0
        %v2197 = vadd.f32 0.0, %v2196
        %v2198 = vpop.f32.mrb[0].mxu0
        %2199 = vmatprep.mubr.f32.mxu0 0.0
        %2200 = vmatmul.mubr.f32.gmra.mrb[0].mxu0 %v2082
        %v2201 = vpop.f32.mrb[0].mxu0
        %v2202 = vadd.f32 0.0, %v2201
        %v2203 = vpop.f32.mrb[0].mxu0
        %2204 = vmatprep.mubr.f32.mxu0 0.0
        %2205 = vmatmul.mubr.f32.gmra.mrb[0].mxu0 %v2085
        %v2206 = vpop.f32.mrb[0].mxu0
        %v2207 = vadd.f32 0.0, %v2206
        %v2208 = vpop.f32.mrb[0].mxu0
        %2209 = vmatprep.mubr.f32.mxu0 0.0
        %2210 = vmatmul.mubr.f32.gmra.mrb[0].mxu0 %v2088
        %v2211 = vpop.f32.mrb[0].mxu0
        %v2212 = vadd.f32 0.0, %v2211
        %v2213 = vpop.f32.mrb[0].mxu0
        %2214 = vmatprep.mubr.f32.mxu0 0.0
        %2215 = vmatmul.mubr.f32.gmra.mrb[0].mxu0 %v2091
        %v2216 = vpop.f32.mrb[0].mxu0
        %v2217 = vadd.f32 0.0, %v2216
        %v2218 = vpop.f32.mrb[0].mxu0
        %2219 = vmatprep.mubr.f32.mxu0 0.0
        %2220 = vmatmul.mubr.f32.gmra.mrb[0].mxu0 %v2094
        %v2221 = vpop.f32.mrb[0].mxu0
        %v2222 = vadd.f32 0.0, %v2221
        %v2223 = vpop.f32.mrb[0].mxu0
        %2224 = vmatprep.mubr.f32.mxu0 0.0
        %2225 = vmatmul.mubr.f32.gmra.mrb[0].mxu0 %v2097
        %v2226 = vpop.f32.mrb[0].mxu0
        %v2227 = vadd.f32 0.0, %v2226
        %v2228 = vpop.f32.mrb[0].mxu0
        %2229 = vmatprep.mubr.f32.mxu0 0.0
        %2230 = vmatmul.mubr.f32.gmra.mrb[0].mxu0 %v2100
        %v2231 = vpop.f32.mrb[0].mxu0
        %v2232 = vadd.f32 0.0, %v2231
        %v2233 = vpop.f32.mrb[0].mxu0
        %2234 = vmatprep.mubr.f32.mxu0 0.0
        %2235 = vmatmul.mubr.f32.gmra.mrb[0].mxu0 %v2103
        %v2236 = vpop.f32.mrb[0].mxu0
        %v2237 = vadd.f32 0.0, %v2236
        %v2238 = vpop.f32.mrb[0].mxu0
        %2239 = vmatprep.mubr.f32.mxu0 0.0
        %2240 = vmatmul.mubr.f32.gmra.mrb[0].mxu0 %v2106
        %v2241 = vpop.f32.mrb[0].mxu0
        %v2242 = vadd.f32 0.0, %v2241
        %v2243 = vpop.f32.mrb[0].mxu0
        %2244 = vmatprep.mubr.f32.mxu0 0.0
        %2245 = vmatmul.mubr.f32.gmra.mrb[0].mxu0 %v2109
        %v2246 = vpop.f32.mrb[0].mxu0
        %v2247 = vadd.f32 0.0, %v2246
        %v2248 = vpop.f32.mrb[0].mxu0
        %2249 = vmatprep.mubr.f32.mxu0 0.0
        %2250 = vmatmul.mubr.f32.gmra.mrb[0].mxu0 %v2112
        %v2251 = vpop.f32.mrb[0].mxu0
        %v2252 = vadd.f32 0.0, %v2251
        %v2253 = vpop.f32.mrb[0].mxu0
        %2254 = vmatprep.mubr.f32.mxu0 0.0
        %2255 = vmatmul.mubr.f32.gmra.mrb[0].mxu0 %v2115
        %v2256 = vpop.f32.mrb[0].mxu0
        %v2257 = vadd.f32 0.0, %v2256
        %v2258 = vpop.f32.mrb[0].mxu0
        %2259 = vmatprep.mubr.f32.mxu0 0.0
        %2260 = vmatmul.mubr.f32.gmra.mrb[0].mxu0 %v2118
        %v2261 = vpop.f32.mrb[0].mxu0
        %v2262 = vadd.f32 0.0, %v2261
        %v2263 = vpop.f32.mrb[0].mxu0
        %2264 = vdwg.mxu0
        %v2265 = vadd.f32 %v581, %v2187
        %v2266 = vadd.f32 %v582, %v2192
        %v2267 = vadd.f32 %v583, %v2197
        %v2268 = vadd.f32 %v584, %v2202
        %v2269 = vadd.f32 %v585, %v2207
        %v2270 = vadd.f32 %v586, %v2212
        %v2271 = vadd.f32 %v587, %v2217
        %v2272 = vadd.f32 %v588, %v2222
        %v2273 = vadd.f32 %v589, %v2227
        %v2274 = vadd.f32 %v590, %v2232
        %v2275 = vadd.f32 %v591, %v2237
        %v2276 = vadd.f32 %v592, %v2242
        %v2277 = vadd.f32 %v593, %v2247
        %v2278 = vadd.f32 %v594, %v2252
        %v2279 = vadd.f32 %v595, %v2257
        %v2280 = vadd.f32 %v596, %v2262
        %v2281 = vmax.f32 %v2265, 0.0
        %v2282 = vmax.f32 %v2266, 0.0
        %v2283 = vmax.f32 %v2267, 0.0
        %v2284 = vmax.f32 %v2268, 0.0
        %v2285 = vmax.f32 %v2269, 0.0
        %v2286 = vmax.f32 %v2270, 0.0
        %v2287 = vmax.f32 %v2271, 0.0
        %v2288 = vmax.f32 %v2272, 0.0
        %v2289 = vmax.f32 %v2273, 0.0
        %v2290 = vmax.f32 %v2274, 0.0
        %v2291 = vmax.f32 %v2275, 0.0
        %v2292 = vmax.f32 %v2276, 0.0
        %v2293 = vmax.f32 %v2277, 0.0
        %v2294 = vmax.f32 %v2278, 0.0
        %v2295 = vmax.f32 %v2279, 0.0
        %v2296 = vmax.f32 %v2280, 0.0
        %2297 = vmatprep.subr.mxu0 0.0
        %2298 = vmatpush1.msra.mxu0 %v2281
        %2299 = vmatprep.subr.mxu0 0.0
        %2300 = vmatpush1.msra.mxu0 %v2282
        %2301 = vmatprep.subr.mxu0 0.0
        %2302 = vmatpush1.msra.mxu0 0.0
        %2303 = vmatprep.subr.mxu0 0.0
        %2304 = vmatpush1.msra.mxu0 0.0
        %2305 = vmatprep.subr.mxu0 0.0
        %2306 = vmatpush1.msra.mxu0 0.0
        %2307 = vmatprep.subr.mxu0 0.0
        %2308 = vmatpush1.msra.mxu0 0.0
        %2309 = vmatprep.subr.mxu0 0.0
        %2310 = vmatpush1.msra.mxu0 0.0
        %2311 = vmatprep.subr.mxu0 0.0
        %2312 = vmatpush1.msra.mxu0 0.0
        %2313 = vmatprep.subr.mxu0 0.0
        %2314 = vmatpush1.msra.mxu0 0.0
        %2315 = vmatprep.subr.mxu0 0.0
        %2316 = vmatpush1.msra.mxu0 0.0
        %2317 = vmatprep.subr.mxu0 0.0
        %2318 = vmatpush1.msra.mxu0 0.0
        %2319 = vmatprep.subr.mxu0 0.0
        %2320 = vmatpush1.msra.mxu0 0.0
        %2321 = vmatprep.subr.mxu0 0.0
        %2322 = vmatpush1.msra.mxu0 0.0
        %2323 = vmatprep.subr.mxu0 0.0
        %2324 = vmatpush1.msra.mxu0 0.0
        %2325 = vmatprep.subr.mxu0 0.0
        %2326 = vmatpush1.msra.mxu0 0.0
        %2327 = vmatprep.subr.mxu0 0.0
        %2328 = vmatpush1.msra.mxu0 0.0
        %2329 = vmatprep.subr.mxu0 0.0
        %2330 = vmatpush1.msra.mxu0 0.0
        %2331 = vmatprep.subr.mxu0 0.0
        %2332 = vmatpush1.msra.mxu0 0.0
        %2333 = vmatprep.subr.mxu0 0.0
        %2334 = vmatpush1.msra.mxu0 0.0
        %2335 = vmatprep.subr.mxu0 0.0
        %2336 = vmatpush1.msra.mxu0 0.0
        %2337 = vmatprep.subr.mxu0 0.0
        %2338 = vmatpush1.msra.mxu0 0.0
        %2339 = vmatprep.subr.mxu0 0.0
        %2340 = vmatpush1.msra.mxu0 0.0
        %2341 = vmatprep.subr.mxu0 0.0
        %2342 = vmatpush1.msra.mxu0 0.0
        %2343 = vmatprep.subr.mxu0 0.0
        %2344 = vmatpush1.msra.mxu0 0.0
        %2345 = vmatprep.subr.mxu0 0.0
        %2346 = vmatpush1.msra.mxu0 0.0
        %2347 = vmatprep.subr.mxu0 0.0
        %2348 = vmatpush1.msra.mxu0 0.0
        %2349 = vmatprep.subr.mxu0 0.0
        %2350 = vmatpush1.msra.mxu0 0.0
        %2351 = vmatprep.subr.mxu0 0.0
        %2352 = vmatpush1.msra.mxu0 0.0
        %2353 = vmatprep.subr.mxu0 0.0
        %2354 = vmatpush1.msra.mxu0 0.0
        %2355 = vmatprep.subr.mxu0 0.0
        %2356 = vmatpush1.msra.mxu0 0.0
        %2357 = vmatprep.subr.mxu0 0.0
        %2358 = vmatpush1.msra.mxu0 0.0
        %2359 = vmatprep.subr.mxu0 0.0
        %2360 = vmatpush1.msra.mxu0 0.0
        %2361 = vmatprep.mubr.f32.mxu0 0.0
        %2362 = vmatmul.mubr.f32.gmra.mrb[0].mxu0 %v599
        %v2363 = vpop.f32.mrb[0].mxu0
        %v2364 = vadd.f32 0.0, %v2363
        %v2365 = vpop.f32.mrb[0].mxu0
        %2366 = vmatprep.mubr.f32.mxu0 0.0
        %2367 = vmatmul.mubr.f32.gmra.mrb[0].mxu0 %v602
        %v2368 = vpop.f32.mrb[0].mxu0
        %v2369 = vadd.f32 0.0, %v2368
        %v2370 = vpop.f32.mrb[0].mxu0
        %2371 = vdwg.mxu0
        %2372 = vmatprep.subr.mxu0 0.0
        %2373 = vmatpush1.msra.mxu0 %v2283
        %2374 = vmatprep.subr.mxu0 0.0
        %2375 = vmatpush1.msra.mxu0 %v2284
        %2376 = vmatprep.subr.mxu0 0.0
        %2377 = vmatpush1.msra.mxu0 0.0
        %2378 = vmatprep.subr.mxu0 0.0
        %2379 = vmatpush1.msra.mxu0 0.0
        %2380 = vmatprep.subr.mxu0 0.0
        %2381 = vmatpush1.msra.mxu0 0.0
        %2382 = vmatprep.subr.mxu0 0.0
        %2383 = vmatpush1.msra.mxu0 0.0
        %2384 = vmatprep.subr.mxu0 0.0
        %2385 = vmatpush1.msra.mxu0 0.0
        %2386 = vmatprep.subr.mxu0 0.0
        %2387 = vmatpush1.msra.mxu0 0.0
        %2388 = vmatprep.subr.mxu0 0.0
        %2389 = vmatpush1.msra.mxu0 0.0
        %2390 = vmatprep.subr.mxu0 0.0
        %2391 = vmatpush1.msra.mxu0 0.0
        %2392 = vmatprep.subr.mxu0 0.0
        %2393 = vmatpush1.msra.mxu0 0.0
        %2394 = vmatprep.subr.mxu0 0.0
        %2395 = vmatpush1.msra.mxu0 0.0
        %2396 = vmatprep.subr.mxu0 0.0
        %2397 = vmatpush1.msra.mxu0 0.0
        %2398 = vmatprep.subr.mxu0 0.0
        %2399 = vmatpush1.msra.mxu0 0.0
        %2400 = vmatprep.subr.mxu0 0.0
        %2401 = vmatpush1.msra.mxu0 0.0
        %2402 = vmatprep.subr.mxu0 0.0
        %2403 = vmatpush1.msra.mxu0 0.0
        %2404 = vmatprep.subr.mxu0 0.0
        %2405 = vmatpush1.msra.mxu0 0.0
        %2406 = vmatprep.subr.mxu0 0.0
        %2407 = vmatpush1.msra.mxu0 0.0
        %2408 = vmatprep.subr.mxu0 0.0
        %2409 = vmatpush1.msra.mxu0 0.0
        %2410 = vmatprep.subr.mxu0 0.0
        %2411 = vmatpush1.msra.mxu0 0.0
        %2412 = vmatprep.subr.mxu0 0.0
        %2413 = vmatpush1.msra.mxu0 0.0
        %2414 = vmatprep.subr.mxu0 0.0
        %2415 = vmatpush1.msra.mxu0 0.0
        %2416 = vmatprep.subr.mxu0 0.0
        %2417 = vmatpush1.msra.mxu0 0.0
        %2418 = vmatprep.subr.mxu0 0.0
        %2419 = vmatpush1.msra.mxu0 0.0
        %2420 = vmatprep.subr.mxu0 0.0
        %2421 = vmatpush1.msra.mxu0 0.0
        %2422 = vmatprep.subr.mxu0 0.0
        %2423 = vmatpush1.msra.mxu0 0.0
        %2424 = vmatprep.subr.mxu0 0.0
        %2425 = vmatpush1.msra.mxu0 0.0
        %2426 = vmatprep.subr.mxu0 0.0
        %2427 = vmatpush1.msra.mxu0 0.0
        %2428 = vmatprep.subr.mxu0 0.0
        %2429 = vmatpush1.msra.mxu0 0.0
        %2430 = vmatprep.subr.mxu0 0.0
        %2431 = vmatpush1.msra.mxu0 0.0
        %2432 = vmatprep.subr.mxu0 0.0
        %2433 = vmatpush1.msra.mxu0 0.0
        %2434 = vmatprep.subr.mxu0 0.0
        %2435 = vmatpush1.msra.mxu0 0.0
        %2436 = vmatprep.mubr.f32.mxu0 0.0
        %2437 = vmatmul.mubr.f32.gmra.mrb[0].mxu0 %v680
        %v2438 = vpop.f32.mrb[0].mxu0
        %v2439 = vadd.f32 0.0, %v2438
        %v2440 = vpop.f32.mrb[0].mxu0
        %2441 = vmatprep.mubr.f32.mxu0 0.0
        %2442 = vmatmul.mubr.f32.gmra.mrb[0].mxu0 %v683
        %v2443 = vpop.f32.mrb[0].mxu0
        %v2444 = vadd.f32 0.0, %v2443
        %v2445 = vpop.f32.mrb[0].mxu0
        %2446 = vdwg.mxu0
        %2447 = vmatprep.subr.mxu0 0.0
        %2448 = vmatpush1.msra.mxu0 %v2285
        %2449 = vmatprep.subr.mxu0 0.0
        %2450 = vmatpush1.msra.mxu0 %v2286
        %2451 = vmatprep.subr.mxu0 0.0
        %2452 = vmatpush1.msra.mxu0 0.0
        %2453 = vmatprep.subr.mxu0 0.0
        %2454 = vmatpush1.msra.mxu0 0.0
        %2455 = vmatprep.subr.mxu0 0.0
        %2456 = vmatpush1.msra.mxu0 0.0
        %2457 = vmatprep.subr.mxu0 0.0
        %2458 = vmatpush1.msra.mxu0 0.0
        %2459 = vmatprep.subr.mxu0 0.0
        %2460 = vmatpush1.msra.mxu0 0.0
        %2461 = vmatprep.subr.mxu0 0.0
        %2462 = vmatpush1.msra.mxu0 0.0
        %2463 = vmatprep.subr.mxu0 0.0
        %2464 = vmatpush1.msra.mxu0 0.0
        %2465 = vmatprep.subr.mxu0 0.0
        %2466 = vmatpush1.msra.mxu0 0.0
        %2467 = vmatprep.subr.mxu0 0.0
        %2468 = vmatpush1.msra.mxu0 0.0
        %2469 = vmatprep.subr.mxu0 0.0
        %2470 = vmatpush1.msra.mxu0 0.0
        %2471 = vmatprep.subr.mxu0 0.0
        %2472 = vmatpush1.msra.mxu0 0.0
        %2473 = vmatprep.subr.mxu0 0.0
        %2474 = vmatpush1.msra.mxu0 0.0
        %2475 = vmatprep.subr.mxu0 0.0
        %2476 = vmatpush1.msra.mxu0 0.0
        %2477 = vmatprep.subr.mxu0 0.0
        %2478 = vmatpush1.msra.mxu0 0.0
        %2479 = vmatprep.subr.mxu0 0.0
        %2480 = vmatpush1.msra.mxu0 0.0
        %2481 = vmatprep.subr.mxu0 0.0
        %2482 = vmatpush1.msra.mxu0 0.0
        %2483 = vmatprep.subr.mxu0 0.0
        %2484 = vmatpush1.msra.mxu0 0.0
        %2485 = vmatprep.subr.mxu0 0.0
        %2486 = vmatpush1.msra.mxu0 0.0
        %2487 = vmatprep.subr.mxu0 0.0
        %2488 = vmatpush1.msra.mxu0 0.0
        %2489 = vmatprep.subr.mxu0 0.0
        %2490 = vmatpush1.msra.mxu0 0.0
        %2491 = vmatprep.subr.mxu0 0.0
        %2492 = vmatpush1.msra.mxu0 0.0
        %2493 = vmatprep.subr.mxu0 0.0
        %2494 = vmatpush1.msra.mxu0 0.0
        %2495 = vmatprep.subr.mxu0 0.0
        %2496 = vmatpush1.msra.mxu0 0.0
        %2497 = vmatprep.subr.mxu0 0.0
        %2498 = vmatpush1.msra.mxu0 0.0
        %2499 = vmatprep.subr.mxu0 0.0
        %2500 = vmatpush1.msra.mxu0 0.0
        %2501 = vmatprep.subr.mxu0 0.0
        %2502 = vmatpush1.msra.mxu0 0.0
        %2503 = vmatprep.subr.mxu0 0.0
        %2504 = vmatpush1.msra.mxu0 0.0
        %2505 = vmatprep.subr.mxu0 0.0
        %2506 = vmatpush1.msra.mxu0 0.0
        %2507 = vmatprep.subr.mxu0 0.0
        %2508 = vmatpush1.msra.mxu0 0.0
        %2509 = vmatprep.subr.mxu0 0.0
        %2510 = vmatpush1.msra.mxu0 0.0
        %2511 = vmatprep.mubr.f32.mxu0 0.0
        %2512 = vmatmul.mubr.f32.gmra.mrb[0].mxu0 %v761
        %v2513 = vpop.f32.mrb[0].mxu0
        %v2514 = vadd.f32 0.0, %v2513
        %v2515 = vpop.f32.mrb[0].mxu0
        %2516 = vmatprep.mubr.f32.mxu0 0.0
        %2517 = vmatmul.mubr.f32.gmra.mrb[0].mxu0 %v764
        %v2518 = vpop.f32.mrb[0].mxu0
        %v2519 = vadd.f32 0.0, %v2518
        %v2520 = vpop.f32.mrb[0].mxu0
        %2521 = vdwg.mxu0
        %2522 = vmatprep.subr.mxu0 0.0
        %2523 = vmatpush1.msra.mxu0 %v2287
        %2524 = vmatprep.subr.mxu0 0.0
        %2525 = vmatpush1.msra.mxu0 %v2288
        %2526 = vmatprep.subr.mxu0 0.0
        %2527 = vmatpush1.msra.mxu0 0.0
        %2528 = vmatprep.subr.mxu0 0.0
        %2529 = vmatpush1.msra.mxu0 0.0
        %2530 = vmatprep.subr.mxu0 0.0
        %2531 = vmatpush1.msra.mxu0 0.0
        %2532 = vmatprep.subr.mxu0 0.0
        %2533 = vmatpush1.msra.mxu0 0.0
        %2534 = vmatprep.subr.mxu0 0.0
        %2535 = vmatpush1.msra.mxu0 0.0
        %2536 = vmatprep.subr.mxu0 0.0
        %2537 = vmatpush1.msra.mxu0 0.0
        %2538 = vmatprep.subr.mxu0 0.0
        %2539 = vmatpush1.msra.mxu0 0.0
        %2540 = vmatprep.subr.mxu0 0.0
        %2541 = vmatpush1.msra.mxu0 0.0
        %2542 = vmatprep.subr.mxu0 0.0
        %2543 = vmatpush1.msra.mxu0 0.0
        %2544 = vmatprep.subr.mxu0 0.0
        %2545 = vmatpush1.msra.mxu0 0.0
        %2546 = vmatprep.subr.mxu0 0.0
        %2547 = vmatpush1.msra.mxu0 0.0
        %2548 = vmatprep.subr.mxu0 0.0
        %2549 = vmatpush1.msra.mxu0 0.0
        %2550 = vmatprep.subr.mxu0 0.0
        %2551 = vmatpush1.msra.mxu0 0.0
        %2552 = vmatprep.subr.mxu0 0.0
        %2553 = vmatpush1.msra.mxu0 0.0
        %2554 = vmatprep.subr.mxu0 0.0
        %2555 = vmatpush1.msra.mxu0 0.0
        %2556 = vmatprep.subr.mxu0 0.0
        %2557 = vmatpush1.msra.mxu0 0.0
        %2558 = vmatprep.subr.mxu0 0.0
        %2559 = vmatpush1.msra.mxu0 0.0
        %2560 = vmatprep.subr.mxu0 0.0
        %2561 = vmatpush1.msra.mxu0 0.0
        %2562 = vmatprep.subr.mxu0 0.0
        %2563 = vmatpush1.msra.mxu0 0.0
        %2564 = vmatprep.subr.mxu0 0.0
        %2565 = vmatpush1.msra.mxu0 0.0
        %2566 = vmatprep.subr.mxu0 0.0
        %2567 = vmatpush1.msra.mxu0 0.0
        %2568 = vmatprep.subr.mxu0 0.0
        %2569 = vmatpush1.msra.mxu0 0.0
        %2570 = vmatprep.subr.mxu0 0.0
        %2571 = vmatpush1.msra.mxu0 0.0
        %2572 = vmatprep.subr.mxu0 0.0
        %2573 = vmatpush1.msra.mxu0 0.0
        %2574 = vmatprep.subr.mxu0 0.0
        %2575 = vmatpush1.msra.mxu0 0.0
        %2576 = vmatprep.subr.mxu0 0.0
        %2577 = vmatpush1.msra.mxu0 0.0
        %2578 = vmatprep.subr.mxu0 0.0
        %2579 = vmatpush1.msra.mxu0 0.0
        %2580 = vmatprep.subr.mxu0 0.0
        %2581 = vmatpush1.msra.mxu0 0.0
        %2582 = vmatprep.subr.mxu0 0.0
        %2583 = vmatpush1.msra.mxu0 0.0
        %2584 = vmatprep.subr.mxu0 0.0
        %2585 = vmatpush1.msra.mxu0 0.0
        %2586 = vmatprep.mubr.f32.mxu0 0.0
        %2587 = vmatmul.mubr.f32.gmra.mrb[0].mxu0 %v842
        %v2588 = vpop.f32.mrb[0].mxu0
        %v2589 = vadd.f32 0.0, %v2588
        %v2590 = vpop.f32.mrb[0].mxu0
        %2591 = vmatprep.mubr.f32.mxu0 0.0
        %2592 = vmatmul.mubr.f32.gmra.mrb[0].mxu0 %v845
        %v2593 = vpop.f32.mrb[0].mxu0
        %v2594 = vadd.f32 0.0, %v2593
        %v2595 = vpop.f32.mrb[0].mxu0
        %2596 = vdwg.mxu0
        %2597 = vmatprep.subr.mxu0 0.0
        %2598 = vmatpush1.msra.mxu0 %v2289
        %2599 = vmatprep.subr.mxu0 0.0
        %2600 = vmatpush1.msra.mxu0 %v2290
        %2601 = vmatprep.subr.mxu0 0.0
        %2602 = vmatpush1.msra.mxu0 0.0
        %2603 = vmatprep.subr.mxu0 0.0
        %2604 = vmatpush1.msra.mxu0 0.0
        %2605 = vmatprep.subr.mxu0 0.0
        %2606 = vmatpush1.msra.mxu0 0.0
        %2607 = vmatprep.subr.mxu0 0.0
        %2608 = vmatpush1.msra.mxu0 0.0
        %2609 = vmatprep.subr.mxu0 0.0
        %2610 = vmatpush1.msra.mxu0 0.0
        %2611 = vmatprep.subr.mxu0 0.0
        %2612 = vmatpush1.msra.mxu0 0.0
        %2613 = vmatprep.subr.mxu0 0.0
        %2614 = vmatpush1.msra.mxu0 0.0
        %2615 = vmatprep.subr.mxu0 0.0
        %2616 = vmatpush1.msra.mxu0 0.0
        %2617 = vmatprep.subr.mxu0 0.0
        %2618 = vmatpush1.msra.mxu0 0.0
        %2619 = vmatprep.subr.mxu0 0.0
        %2620 = vmatpush1.msra.mxu0 0.0
        %2621 = vmatprep.subr.mxu0 0.0
        %2622 = vmatpush1.msra.mxu0 0.0
        %2623 = vmatprep.subr.mxu0 0.0
        %2624 = vmatpush1.msra.mxu0 0.0
        %2625 = vmatprep.subr.mxu0 0.0
        %2626 = vmatpush1.msra.mxu0 0.0
        %2627 = vmatprep.subr.mxu0 0.0
        %2628 = vmatpush1.msra.mxu0 0.0
        %2629 = vmatprep.subr.mxu0 0.0
        %2630 = vmatpush1.msra.mxu0 0.0
        %2631 = vmatprep.subr.mxu0 0.0
        %2632 = vmatpush1.msra.mxu0 0.0
        %2633 = vmatprep.subr.mxu0 0.0
        %2634 = vmatpush1.msra.mxu0 0.0
        %2635 = vmatprep.subr.mxu0 0.0
        %2636 = vmatpush1.msra.mxu0 0.0
        %2637 = vmatprep.subr.mxu0 0.0
        %2638 = vmatpush1.msra.mxu0 0.0
        %2639 = vmatprep.subr.mxu0 0.0
        %2640 = vmatpush1.msra.mxu0 0.0
        %2641 = vmatprep.subr.mxu0 0.0
        %2642 = vmatpush1.msra.mxu0 0.0
        %2643 = vmatprep.subr.mxu0 0.0
        %2644 = vmatpush1.msra.mxu0 0.0
        %2645 = vmatprep.subr.mxu0 0.0
        %2646 = vmatpush1.msra.mxu0 0.0
        %2647 = vmatprep.subr.mxu0 0.0
        %2648 = vmatpush1.msra.mxu0 0.0
        %2649 = vmatprep.subr.mxu0 0.0
        %2650 = vmatpush1.msra.mxu0 0.0
        %2651 = vmatprep.subr.mxu0 0.0
        %2652 = vmatpush1.msra.mxu0 0.0
        %2653 = vmatprep.subr.mxu0 0.0
        %2654 = vmatpush1.msra.mxu0 0.0
        %2655 = vmatprep.subr.mxu0 0.0
        %2656 = vmatpush1.msra.mxu0 0.0
        %2657 = vmatprep.subr.mxu0 0.0
        %2658 = vmatpush1.msra.mxu0 0.0
        %2659 = vmatprep.subr.mxu0 0.0
        %2660 = vmatpush1.msra.mxu0 0.0
        %2661 = vmatprep.mubr.f32.mxu0 0.0
        %2662 = vmatmul.mubr.f32.gmra.mrb[0].mxu0 %v923
        %v2663 = vpop.f32.mrb[0].mxu0
        %v2664 = vadd.f32 0.0, %v2663
        %v2665 = vpop.f32.mrb[0].mxu0
        %2666 = vmatprep.mubr.f32.mxu0 0.0
        %2667 = vmatmul.mubr.f32.gmra.mrb[0].mxu0 %v926
        %v2668 = vpop.f32.mrb[0].mxu0
        %v2669 = vadd.f32 0.0, %v2668
        %v2670 = vpop.f32.mrb[0].mxu0
        %2671 = vdwg.mxu0
        %2672 = vmatprep.subr.mxu0 0.0
        %2673 = vmatpush1.msra.mxu0 %v2291
        %2674 = vmatprep.subr.mxu0 0.0
        %2675 = vmatpush1.msra.mxu0 %v2292
        %2676 = vmatprep.subr.mxu0 0.0
        %2677 = vmatpush1.msra.mxu0 0.0
        %2678 = vmatprep.subr.mxu0 0.0
        %2679 = vmatpush1.msra.mxu0 0.0
        %2680 = vmatprep.subr.mxu0 0.0
        %2681 = vmatpush1.msra.mxu0 0.0
        %2682 = vmatprep.subr.mxu0 0.0
        %2683 = vmatpush1.msra.mxu0 0.0
        %2684 = vmatprep.subr.mxu0 0.0
        %2685 = vmatpush1.msra.mxu0 0.0
        %2686 = vmatprep.subr.mxu0 0.0
        %2687 = vmatpush1.msra.mxu0 0.0
        %2688 = vmatprep.subr.mxu0 0.0
        %2689 = vmatpush1.msra.mxu0 0.0
        %2690 = vmatprep.subr.mxu0 0.0
        %2691 = vmatpush1.msra.mxu0 0.0
        %2692 = vmatprep.subr.mxu0 0.0
        %2693 = vmatpush1.msra.mxu0 0.0
        %2694 = vmatprep.subr.mxu0 0.0
        %2695 = vmatpush1.msra.mxu0 0.0
        %2696 = vmatprep.subr.mxu0 0.0
        %2697 = vmatpush1.msra.mxu0 0.0
        %2698 = vmatprep.subr.mxu0 0.0
        %2699 = vmatpush1.msra.mxu0 0.0
        %2700 = vmatprep.subr.mxu0 0.0
        %2701 = vmatpush1.msra.mxu0 0.0
        %2702 = vmatprep.subr.mxu0 0.0
        %2703 = vmatpush1.msra.mxu0 0.0
        %2704 = vmatprep.subr.mxu0 0.0
        %2705 = vmatpush1.msra.mxu0 0.0
        %2706 = vmatprep.subr.mxu0 0.0
        %2707 = vmatpush1.msra.mxu0 0.0
        %2708 = vmatprep.subr.mxu0 0.0
        %2709 = vmatpush1.msra.mxu0 0.0
        %2710 = vmatprep.subr.mxu0 0.0
        %2711 = vmatpush1.msra.mxu0 0.0
        %2712 = vmatprep.subr.mxu0 0.0
        %2713 = vmatpush1.msra.mxu0 0.0
        %2714 = vmatprep.subr.mxu0 0.0
        %2715 = vmatpush1.msra.mxu0 0.0
        %2716 = vmatprep.subr.mxu0 0.0
        %2717 = vmatpush1.msra.mxu0 0.0
        %2718 = vmatprep.subr.mxu0 0.0
        %2719 = vmatpush1.msra.mxu0 0.0
        %2720 = vmatprep.subr.mxu0 0.0
        %2721 = vmatpush1.msra.mxu0 0.0
        %2722 = vmatprep.subr.mxu0 0.0
        %2723 = vmatpush1.msra.mxu0 0.0
        %2724 = vmatprep.subr.mxu0 0.0
        %2725 = vmatpush1.msra.mxu0 0.0
        %2726 = vmatprep.subr.mxu0 0.0
        %2727 = vmatpush1.msra.mxu0 0.0
        %2728 = vmatprep.subr.mxu0 0.0
        %2729 = vmatpush1.msra.mxu0 0.0
        %2730 = vmatprep.subr.mxu0 0.0
        %2731 = vmatpush1.msra.mxu0 0.0
        %2732 = vmatprep.subr.mxu0 0.0
        %2733 = vmatpush1.msra.mxu0 0.0
        %2734 = vmatprep.subr.mxu0 0.0
        %2735 = vmatpush1.msra.mxu0 0.0
        %2736 = vmatprep.mubr.f32.mxu0 0.0
        %2737 = vmatmul.mubr.f32.gmra.mrb[0].mxu0 %v1004
        %v2738 = vpop.f32.mrb[0].mxu0
        %v2739 = vadd.f32 0.0, %v2738
        %v2740 = vpop.f32.mrb[0].mxu0
        %2741 = vmatprep.mubr.f32.mxu0 0.0
        %2742 = vmatmul.mubr.f32.gmra.mrb[0].mxu0 %v1007
        %v2743 = vpop.f32.mrb[0].mxu0
        %v2744 = vadd.f32 0.0, %v2743
        %v2745 = vpop.f32.mrb[0].mxu0
        %2746 = vdwg.mxu0
        %2747 = vmatprep.subr.mxu0 0.0
        %2748 = vmatpush1.msra.mxu0 %v2293
        %2749 = vmatprep.subr.mxu0 0.0
        %2750 = vmatpush1.msra.mxu0 %v2294
        %2751 = vmatprep.subr.mxu0 0.0
        %2752 = vmatpush1.msra.mxu0 0.0
        %2753 = vmatprep.subr.mxu0 0.0
        %2754 = vmatpush1.msra.mxu0 0.0
        %2755 = vmatprep.subr.mxu0 0.0
        %2756 = vmatpush1.msra.mxu0 0.0
        %2757 = vmatprep.subr.mxu0 0.0
        %2758 = vmatpush1.msra.mxu0 0.0
        %2759 = vmatprep.subr.mxu0 0.0
        %2760 = vmatpush1.msra.mxu0 0.0
        %2761 = vmatprep.subr.mxu0 0.0
        %2762 = vmatpush1.msra.mxu0 0.0
        %2763 = vmatprep.subr.mxu0 0.0
        %2764 = vmatpush1.msra.mxu0 0.0
        %2765 = vmatprep.subr.mxu0 0.0
        %2766 = vmatpush1.msra.mxu0 0.0
        %2767 = vmatprep.subr.mxu0 0.0
        %2768 = vmatpush1.msra.mxu0 0.0
        %2769 = vmatprep.subr.mxu0 0.0
        %2770 = vmatpush1.msra.mxu0 0.0
        %2771 = vmatprep.subr.mxu0 0.0
        %2772 = vmatpush1.msra.mxu0 0.0
        %2773 = vmatprep.subr.mxu0 0.0
        %2774 = vmatpush1.msra.mxu0 0.0
        %2775 = vmatprep.subr.mxu0 0.0
        %2776 = vmatpush1.msra.mxu0 0.0
        %2777 = vmatprep.subr.mxu0 0.0
        %2778 = vmatpush1.msra.mxu0 0.0
        %2779 = vmatprep.subr.mxu0 0.0
        %2780 = vmatpush1.msra.mxu0 0.0
        %2781 = vmatprep.subr.mxu0 0.0
        %2782 = vmatpush1.msra.mxu0 0.0
        %2783 = vmatprep.subr.mxu0 0.0
        %2784 = vmatpush1.msra.mxu0 0.0
        %2785 = vmatprep.subr.mxu0 0.0
        %2786 = vmatpush1.msra.mxu0 0.0
        %2787 = vmatprep.subr.mxu0 0.0
        %2788 = vmatpush1.msra.mxu0 0.0
        %2789 = vmatprep.subr.mxu0 0.0
        %2790 = vmatpush1.msra.mxu0 0.0
        %2791 = vmatprep.subr.mxu0 0.0
        %2792 = vmatpush1.msra.mxu0 0.0
        %2793 = vmatprep.subr.mxu0 0.0
        %2794 = vmatpush1.msra.mxu0 0.0
        %2795 = vmatprep.subr.mxu0 0.0
        %2796 = vmatpush1.msra.mxu0 0.0
        %2797 = vmatprep.subr.mxu0 0.0
        %2798 = vmatpush1.msra.mxu0 0.0
        %2799 = vmatprep.subr.mxu0 0.0
        %2800 = vmatpush1.msra.mxu0 0.0
        %2801 = vmatprep.subr.mxu0 0.0
        %2802 = vmatpush1.msra.mxu0 0.0
        %2803 = vmatprep.subr.mxu0 0.0
        %2804 = vmatpush1.msra.mxu0 0.0
        %2805 = vmatprep.subr.mxu0 0.0
        %2806 = vmatpush1.msra.mxu0 0.0
        %2807 = vmatprep.subr.mxu0 0.0
        %2808 = vmatpush1.msra.mxu0 0.0
        %2809 = vmatprep.subr.mxu0 0.0
        %2810 = vmatpush1.msra.mxu0 0.0
        %2811 = vmatprep.mubr.f32.mxu0 0.0
        %2812 = vmatmul.mubr.f32.gmra.mrb[0].mxu0 %v1085
        %v2813 = vpop.f32.mrb[0].mxu0
        %v2814 = vadd.f32 0.0, %v2813
        %v2815 = vpop.f32.mrb[0].mxu0
        %2816 = vmatprep.mubr.f32.mxu0 0.0
        %2817 = vmatmul.mubr.f32.gmra.mrb[0].mxu0 %v1088
        %v2818 = vpop.f32.mrb[0].mxu0
        %v2819 = vadd.f32 0.0, %v2818
        %v2820 = vpop.f32.mrb[0].mxu0
        %2821 = vdwg.mxu0
        %2822 = vmatprep.subr.mxu0 0.0
        %2823 = vmatpush1.msra.mxu0 %v2295
        %2824 = vmatprep.subr.mxu0 0.0
        %2825 = vmatpush1.msra.mxu0 %v2296
        %2826 = vmatprep.subr.mxu0 0.0
        %2827 = vmatpush1.msra.mxu0 0.0
        %2828 = vmatprep.subr.mxu0 0.0
        %2829 = vmatpush1.msra.mxu0 0.0
        %2830 = vmatprep.subr.mxu0 0.0
        %2831 = vmatpush1.msra.mxu0 0.0
        %2832 = vmatprep.subr.mxu0 0.0
        %2833 = vmatpush1.msra.mxu0 0.0
        %2834 = vmatprep.subr.mxu0 0.0
        %2835 = vmatpush1.msra.mxu0 0.0
        %2836 = vmatprep.subr.mxu0 0.0
        %2837 = vmatpush1.msra.mxu0 0.0
        %2838 = vmatprep.subr.mxu0 0.0
        %2839 = vmatpush1.msra.mxu0 0.0
        %2840 = vmatprep.subr.mxu0 0.0
        %2841 = vmatpush1.msra.mxu0 0.0
        %2842 = vmatprep.subr.mxu0 0.0
        %2843 = vmatpush1.msra.mxu0 0.0
        %2844 = vmatprep.subr.mxu0 0.0
        %2845 = vmatpush1.msra.mxu0 0.0
        %2846 = vmatprep.subr.mxu0 0.0
        %2847 = vmatpush1.msra.mxu0 0.0
        %2848 = vmatprep.subr.mxu0 0.0
        %2849 = vmatpush1.msra.mxu0 0.0
        %2850 = vmatprep.subr.mxu0 0.0
        %2851 = vmatpush1.msra.mxu0 0.0
        %2852 = vmatprep.subr.mxu0 0.0
        %2853 = vmatpush1.msra.mxu0 0.0
        %2854 = vmatprep.subr.mxu0 0.0
        %2855 = vmatpush1.msra.mxu0 0.0
        %2856 = vmatprep.subr.mxu0 0.0
        %2857 = vmatpush1.msra.mxu0 0.0
        %2858 = vmatprep.subr.mxu0 0.0
        %2859 = vmatpush1.msra.mxu0 0.0
        %2860 = vmatprep.subr.mxu0 0.0
        %2861 = vmatpush1.msra.mxu0 0.0
        %2862 = vmatprep.subr.mxu0 0.0
        %2863 = vmatpush1.msra.mxu0 0.0
        %2864 = vmatprep.subr.mxu0 0.0
        %2865 = vmatpush1.msra.mxu0 0.0
        %2866 = vmatprep.subr.mxu0 0.0
        %2867 = vmatpush1.msra.mxu0 0.0
        %2868 = vmatprep.subr.mxu0 0.0
        %2869 = vmatpush1.msra.mxu0 0.0
        %2870 = vmatprep.subr.mxu0 0.0
        %2871 = vmatpush1.msra.mxu0 0.0
        %2872 = vmatprep.subr.mxu0 0.0
        %2873 = vmatpush1.msra.mxu0 0.0
        %2874 = vmatprep.subr.mxu0 0.0
        %2875 = vmatpush1.msra.mxu0 0.0
        %2876 = vmatprep.subr.mxu0 0.0
        %2877 = vmatpush1.msra.mxu0 0.0
        %2878 = vmatprep.subr.mxu0 0.0
        %2879 = vmatpush1.msra.mxu0 0.0
        %2880 = vmatprep.subr.mxu0 0.0
        %2881 = vmatpush1.msra.mxu0 0.0
        %2882 = vmatprep.subr.mxu0 0.0
        %2883 = vmatpush1.msra.mxu0 0.0
        %2884 = vmatprep.subr.mxu0 0.0
        %2885 = vmatpush1.msra.mxu0 0.0
        %2886 = vmatprep.mubr.f32.mxu0 0.0
        %2887 = vmatmul.mubr.f32.gmra.mrb[0].mxu0 %v1166
        %v2888 = vpop.f32.mrb[0].mxu0
        %v2889 = vadd.f32 0.0, %v2888
        %v2890 = vpop.f32.mrb[0].mxu0
        %2891 = vmatprep.mubr.f32.mxu0 0.0
        %2892 = vmatmul.mubr.f32.gmra.mrb[0].mxu0 %v1169
        %v2893 = vpop.f32.mrb[0].mxu0
        %v2894 = vadd.f32 0.0, %v2893
        %v2895 = vpop.f32.mrb[0].mxu0
        %2896 = vdwg.mxu0
        %v2898 = vsel %vm1246, %v2364, 0
        %v2901 = vsel %vm1246, %v2369, 0
        %v2904 = vsel %vm1246, %v2439, 0
        %v2907 = vsel %vm1246, %v2444, 0
        %v2910 = vsel %vm1246, %v2514, 0
        %v2913 = vsel %vm1246, %v2519, 0
        %v2916 = vsel %vm1246, %v2589, 0
        %v2919 = vsel %vm1246, %v2594, 0
        %v2922 = vsel %vm1246, %v2664, 0
        %v2925 = vsel %vm1246, %v2669, 0
        %v2928 = vsel %vm1246, %v2739, 0
        %v2931 = vsel %vm1246, %v2744, 0
        %v2934 = vsel %vm1246, %v2814, 0
        %v2937 = vsel %vm1246, %v2819, 0
        %v2940 = vsel %vm1246, %v2889, 0
        %v2943 = vsel %vm1246, %v2894, 0
        %2945 = vmatprep.subr.mxu0 0.0
        %2946 = vmatpush1.msra.mxu0 %v383
        %2947 = vmatprep.subr.mxu0 0.0
        %2948 = vmatpush1.msra.mxu0 %v384
        %2949 = vmatprep.subr.mxu0 0.0
        %2950 = vmatpush1.msra.mxu0 %v385
        %2951 = vmatprep.subr.mxu0 0.0
        %2952 = vmatpush1.msra.mxu0 %v386
        %2953 = vmatprep.subr.mxu0 0.0
        %2954 = vmatpush1.msra.mxu0 0.0
        %2955 = vmatprep.subr.mxu0 0.0
        %2956 = vmatpush1.msra.mxu0 0.0
        %2957 = vmatprep.subr.mxu0 0.0
        %2958 = vmatpush1.msra.mxu0 0.0
        %2959 = vmatprep.subr.mxu0 0.0
        %2960 = vmatpush1.msra.mxu0 0.0
        %2961 = vmatprep.subr.mxu0 0.0
        %2962 = vmatpush1.msra.mxu0 0.0
        %2963 = vmatprep.subr.mxu0 0.0
        %2964 = vmatpush1.msra.mxu0 0.0
        %2965 = vmatprep.subr.mxu0 0.0
        %2966 = vmatpush1.msra.mxu0 0.0
        %2967 = vmatprep.subr.mxu0 0.0
        %2968 = vmatpush1.msra.mxu0 0.0
        %2969 = vmatprep.subr.mxu0 0.0
        %2970 = vmatpush1.msra.mxu0 0.0
        %2971 = vmatprep.subr.mxu0 0.0
        %2972 = vmatpush1.msra.mxu0 0.0
        %2973 = vmatprep.subr.mxu0 0.0
        %2974 = vmatpush1.msra.mxu0 0.0
        %2975 = vmatprep.subr.mxu0 0.0
        %2976 = vmatpush1.msra.mxu0 0.0
        %2977 = vmatprep.subr.mxu0 0.0
        %2978 = vmatpush1.msra.mxu0 0.0
        %2979 = vmatprep.subr.mxu0 0.0
        %2980 = vmatpush1.msra.mxu0 0.0
        %2981 = vmatprep.subr.mxu0 0.0
        %2982 = vmatpush1.msra.mxu0 0.0
        %2983 = vmatprep.subr.mxu0 0.0
        %2984 = vmatpush1.msra.mxu0 0.0
        %2985 = vmatprep.subr.mxu0 0.0
        %2986 = vmatpush1.msra.mxu0 0.0
        %2987 = vmatprep.subr.mxu0 0.0
        %2988 = vmatpush1.msra.mxu0 0.0
        %2989 = vmatprep.subr.mxu0 0.0
        %2990 = vmatpush1.msra.mxu0 0.0
        %2991 = vmatprep.subr.mxu0 0.0
        %2992 = vmatpush1.msra.mxu0 0.0
        %2993 = vmatprep.subr.mxu0 0.0
        %2994 = vmatpush1.msra.mxu0 0.0
        %2995 = vmatprep.subr.mxu0 0.0
        %2996 = vmatpush1.msra.mxu0 0.0
        %2997 = vmatprep.subr.mxu0 0.0
        %2998 = vmatpush1.msra.mxu0 0.0
        %2999 = vmatprep.subr.mxu0 0.0
        %3000 = vmatpush1.msra.mxu0 0.0
        %3001 = vmatprep.subr.mxu0 0.0
        %3002 = vmatpush1.msra.mxu0 0.0
        %3003 = vmatprep.subr.mxu0 0.0
        %3004 = vmatpush1.msra.mxu0 0.0
        %3005 = vmatprep.subr.mxu0 0.0
        %3006 = vmatpush1.msra.mxu0 0.0
        %3007 = vmatprep.subr.mxu0 0.0
        %3008 = vmatpush1.msra.mxu0 0.0
        %3009 = vmatprep.mubr.f32.mxu0 0.0
        %3010 = vmatmul.mubr.f32.gmra.mrb[0].mxu0 %v2898
        %v3011 = vpop.f32.mrb[0].mxu0
        %v3012 = vadd.f32 0.0, %v3011
        %v3013 = vpop.f32.mrb[0].mxu0
        %3014 = vmatprep.mubr.f32.mxu0 0.0
        %3015 = vmatmul.mubr.f32.gmra.mrb[0].mxu0 %v2901
        %v3016 = vpop.f32.mrb[0].mxu0
        %v3017 = vadd.f32 0.0, %v3016
        %v3018 = vpop.f32.mrb[0].mxu0
        %3019 = vmatprep.mubr.f32.mxu0 0.0
        %3020 = vmatmul.mubr.f32.gmra.mrb[0].mxu0 %v2904
        %v3021 = vpop.f32.mrb[0].mxu0
        %v3022 = vadd.f32 0.0, %v3021
        %v3023 = vpop.f32.mrb[0].mxu0
        %3024 = vmatprep.mubr.f32.mxu0 0.0
        %3025 = vmatmul.mubr.f32.gmra.mrb[0].mxu0 %v2907
        %v3026 = vpop.f32.mrb[0].mxu0
        %v3027 = vadd.f32 0.0, %v3026
        %v3028 = vpop.f32.mrb[0].mxu0
        %3029 = vmatprep.mubr.f32.mxu0 0.0
        %3030 = vmatmul.mubr.f32.gmra.mrb[0].mxu0 %v2910
        %v3031 = vpop.f32.mrb[0].mxu0
        %v3032 = vadd.f32 0.0, %v3031
        %v3033 = vpop.f32.mrb[0].mxu0
        %3034 = vmatprep.mubr.f32.mxu0 0.0
        %3035 = vmatmul.mubr.f32.gmra.mrb[0].mxu0 %v2913
        %v3036 = vpop.f32.mrb[0].mxu0
        %v3037 = vadd.f32 0.0, %v3036
        %v3038 = vpop.f32.mrb[0].mxu0
        %3039 = vmatprep.mubr.f32.mxu0 0.0
        %3040 = vmatmul.mubr.f32.gmra.mrb[0].mxu0 %v2916
        %v3041 = vpop.f32.mrb[0].mxu0
        %v3042 = vadd.f32 0.0, %v3041
        %v3043 = vpop.f32.mrb[0].mxu0
        %3044 = vmatprep.mubr.f32.mxu0 0.0
        %3045 = vmatmul.mubr.f32.gmra.mrb[0].mxu0 %v2919
        %v3046 = vpop.f32.mrb[0].mxu0
        %v3047 = vadd.f32 0.0, %v3046
        %v3048 = vpop.f32.mrb[0].mxu0
        %3049 = vmatprep.mubr.f32.mxu0 0.0
        %3050 = vmatmul.mubr.f32.gmra.mrb[0].mxu0 %v2922
        %v3051 = vpop.f32.mrb[0].mxu0
        %v3052 = vadd.f32 0.0, %v3051
        %v3053 = vpop.f32.mrb[0].mxu0
        %3054 = vmatprep.mubr.f32.mxu0 0.0
        %3055 = vmatmul.mubr.f32.gmra.mrb[0].mxu0 %v2925
        %v3056 = vpop.f32.mrb[0].mxu0
        %v3057 = vadd.f32 0.0, %v3056
        %v3058 = vpop.f32.mrb[0].mxu0
        %3059 = vmatprep.mubr.f32.mxu0 0.0
        %3060 = vmatmul.mubr.f32.gmra.mrb[0].mxu0 %v2928
        %v3061 = vpop.f32.mrb[0].mxu0
        %v3062 = vadd.f32 0.0, %v3061
        %v3063 = vpop.f32.mrb[0].mxu0
        %3064 = vmatprep.mubr.f32.mxu0 0.0
        %3065 = vmatmul.mubr.f32.gmra.mrb[0].mxu0 %v2931
        %v3066 = vpop.f32.mrb[0].mxu0
        %v3067 = vadd.f32 0.0, %v3066
        %v3068 = vpop.f32.mrb[0].mxu0
        %3069 = vmatprep.mubr.f32.mxu0 0.0
        %3070 = vmatmul.mubr.f32.gmra.mrb[0].mxu0 %v2934
        %v3071 = vpop.f32.mrb[0].mxu0
        %v3072 = vadd.f32 0.0, %v3071
        %v3073 = vpop.f32.mrb[0].mxu0
        %3074 = vmatprep.mubr.f32.mxu0 0.0
        %3075 = vmatmul.mubr.f32.gmra.mrb[0].mxu0 %v2937
        %v3076 = vpop.f32.mrb[0].mxu0
        %v3077 = vadd.f32 0.0, %v3076
        %v3078 = vpop.f32.mrb[0].mxu0
        %3079 = vmatprep.mubr.f32.mxu0 0.0
        %3080 = vmatmul.mubr.f32.gmra.mrb[0].mxu0 %v2940
        %v3081 = vpop.f32.mrb[0].mxu0
        %v3082 = vadd.f32 0.0, %v3081
        %v3083 = vpop.f32.mrb[0].mxu0
        %3084 = vmatprep.mubr.f32.mxu0 0.0
        %3085 = vmatmul.mubr.f32.gmra.mrb[0].mxu0 %v2943
        %v3086 = vpop.f32.mrb[0].mxu0
        %v3087 = vadd.f32 0.0, %v3086
        %v3088 = vpop.f32.mrb[0].mxu0
        %3089 = vdwg.mxu0
        %v3090 = vadd.f32 %v581, %v3012
        %v3091 = vadd.f32 %v582, %v3017
        %v3092 = vadd.f32 %v583, %v3022
        %v3093 = vadd.f32 %v584, %v3027
        %v3094 = vadd.f32 %v585, %v3032
        %v3095 = vadd.f32 %v586, %v3037
        %v3096 = vadd.f32 %v587, %v3042
        %v3097 = vadd.f32 %v588, %v3047
        %v3098 = vadd.f32 %v589, %v3052
        %v3099 = vadd.f32 %v590, %v3057
        %v3100 = vadd.f32 %v591, %v3062
        %v3101 = vadd.f32 %v592, %v3067
        %v3102 = vadd.f32 %v593, %v3072
        %v3103 = vadd.f32 %v594, %v3077
        %v3104 = vadd.f32 %v595, %v3082
        %v3105 = vadd.f32 %v596, %v3087
        %v3106 = vmax.f32 %v3090, 0.0
        %v3107 = vmax.f32 %v3091, 0.0
        %v3108 = vmax.f32 %v3092, 0.0
        %v3109 = vmax.f32 %v3093, 0.0
        %v3110 = vmax.f32 %v3094, 0.0
        %v3111 = vmax.f32 %v3095, 0.0
        %v3112 = vmax.f32 %v3096, 0.0
        %v3113 = vmax.f32 %v3097, 0.0
        %v3114 = vmax.f32 %v3098, 0.0
        %v3115 = vmax.f32 %v3099, 0.0
        %v3116 = vmax.f32 %v3100, 0.0
        %v3117 = vmax.f32 %v3101, 0.0
        %v3118 = vmax.f32 %v3102, 0.0
        %v3119 = vmax.f32 %v3103, 0.0
        %v3120 = vmax.f32 %v3104, 0.0
        %v3121 = vmax.f32 %v3105, 0.0
        %3122 = vmatprep.subr.mxu0 0.0
        %3123 = vmatpush1.msra.mxu0 %v3106
        %3124 = vmatprep.subr.mxu0 0.0
        %3125 = vmatpush1.msra.mxu0 %v3107
        %3126 = vmatprep.subr.mxu0 0.0
        %3127 = vmatpush1.msra.mxu0 0.0
        %3128 = vmatprep.subr.mxu0 0.0
        %3129 = vmatpush1.msra.mxu0 0.0
        %3130 = vmatprep.subr.mxu0 0.0
        %3131 = vmatpush1.msra.mxu0 0.0
        %3132 = vmatprep.subr.mxu0 0.0
        %3133 = vmatpush1.msra.mxu0 0.0
        %3134 = vmatprep.subr.mxu0 0.0
        %3135 = vmatpush1.msra.mxu0 0.0
        %3136 = vmatprep.subr.mxu0 0.0
        %3137 = vmatpush1.msra.mxu0 0.0
        %3138 = vmatprep.subr.mxu0 0.0
        %3139 = vmatpush1.msra.mxu0 0.0
        %3140 = vmatprep.subr.mxu0 0.0
        %3141 = vmatpush1.msra.mxu0 0.0
        %3142 = vmatprep.subr.mxu0 0.0
        %3143 = vmatpush1.msra.mxu0 0.0
        %3144 = vmatprep.subr.mxu0 0.0
        %3145 = vmatpush1.msra.mxu0 0.0
        %3146 = vmatprep.subr.mxu0 0.0
        %3147 = vmatpush1.msra.mxu0 0.0
        %3148 = vmatprep.subr.mxu0 0.0
        %3149 = vmatpush1.msra.mxu0 0.0
        %3150 = vmatprep.subr.mxu0 0.0
        %3151 = vmatpush1.msra.mxu0 0.0
        %3152 = vmatprep.subr.mxu0 0.0
        %3153 = vmatpush1.msra.mxu0 0.0
        %3154 = vmatprep.subr.mxu0 0.0
        %3155 = vmatpush1.msra.mxu0 0.0
        %3156 = vmatprep.subr.mxu0 0.0
        %3157 = vmatpush1.msra.mxu0 0.0
        %3158 = vmatprep.subr.mxu0 0.0
        %3159 = vmatpush1.msra.mxu0 0.0
        %3160 = vmatprep.subr.mxu0 0.0
        %3161 = vmatpush1.msra.mxu0 0.0
        %3162 = vmatprep.subr.mxu0 0.0
        %3163 = vmatpush1.msra.mxu0 0.0
        %3164 = vmatprep.subr.mxu0 0.0
        %3165 = vmatpush1.msra.mxu0 0.0
        %3166 = vmatprep.subr.mxu0 0.0
        %3167 = vmatpush1.msra.mxu0 0.0
        %3168 = vmatprep.subr.mxu0 0.0
        %3169 = vmatpush1.msra.mxu0 0.0
        %3170 = vmatprep.subr.mxu0 0.0
        %3171 = vmatpush1.msra.mxu0 0.0
        %3172 = vmatprep.subr.mxu0 0.0
        %3173 = vmatpush1.msra.mxu0 0.0
        %3174 = vmatprep.subr.mxu0 0.0
        %3175 = vmatpush1.msra.mxu0 0.0
        %3176 = vmatprep.subr.mxu0 0.0
        %3177 = vmatpush1.msra.mxu0 0.0
        %3178 = vmatprep.subr.mxu0 0.0
        %3179 = vmatpush1.msra.mxu0 0.0
        %3180 = vmatprep.subr.mxu0 0.0
        %3181 = vmatpush1.msra.mxu0 0.0
        %3182 = vmatprep.subr.mxu0 0.0
        %3183 = vmatpush1.msra.mxu0 0.0
        %3184 = vmatprep.subr.mxu0 0.0
        %3185 = vmatpush1.msra.mxu0 0.0
        %3186 = vmatprep.mubr.f32.mxu0 0.0
        %3187 = vmatmul.mubr.f32.gmra.mrb[0].mxu0 %v599
        %v3188 = vpop.f32.mrb[0].mxu0
        %v3189 = vadd.f32 0.0, %v3188
        %v3190 = vpop.f32.mrb[0].mxu0
        %3191 = vmatprep.mubr.f32.mxu0 0.0
        %3192 = vmatmul.mubr.f32.gmra.mrb[0].mxu0 %v602
        %v3193 = vpop.f32.mrb[0].mxu0
        %v3194 = vadd.f32 0.0, %v3193
        %v3195 = vpop.f32.mrb[0].mxu0
        %3196 = vdwg.mxu0
        %3197 = vmatprep.subr.mxu0 0.0
        %3198 = vmatpush1.msra.mxu0 %v3108
        %3199 = vmatprep.subr.mxu0 0.0
        %3200 = vmatpush1.msra.mxu0 %v3109
        %3201 = vmatprep.subr.mxu0 0.0
        %3202 = vmatpush1.msra.mxu0 0.0
        %3203 = vmatprep.subr.mxu0 0.0
        %3204 = vmatpush1.msra.mxu0 0.0
        %3205 = vmatprep.subr.mxu0 0.0
        %3206 = vmatpush1.msra.mxu0 0.0
        %3207 = vmatprep.subr.mxu0 0.0
        %3208 = vmatpush1.msra.mxu0 0.0
        %3209 = vmatprep.subr.mxu0 0.0
        %3210 = vmatpush1.msra.mxu0 0.0
        %3211 = vmatprep.subr.mxu0 0.0
        %3212 = vmatpush1.msra.mxu0 0.0
        %3213 = vmatprep.subr.mxu0 0.0
        %3214 = vmatpush1.msra.mxu0 0.0
        %3215 = vmatprep.subr.mxu0 0.0
        %3216 = vmatpush1.msra.mxu0 0.0
        %3217 = vmatprep.subr.mxu0 0.0
        %3218 = vmatpush1.msra.mxu0 0.0
        %3219 = vmatprep.subr.mxu0 0.0
        %3220 = vmatpush1.msra.mxu0 0.0
        %3221 = vmatprep.subr.mxu0 0.0
        %3222 = vmatpush1.msra.mxu0 0.0
        %3223 = vmatprep.subr.mxu0 0.0
        %3224 = vmatpush1.msra.mxu0 0.0
        %3225 = vmatprep.subr.mxu0 0.0
        %3226 = vmatpush1.msra.mxu0 0.0
        %3227 = vmatprep.subr.mxu0 0.0
        %3228 = vmatpush1.msra.mxu0 0.0
        %3229 = vmatprep.subr.mxu0 0.0
        %3230 = vmatpush1.msra.mxu0 0.0
        %3231 = vmatprep.subr.mxu0 0.0
        %3232 = vmatpush1.msra.mxu0 0.0
        %3233 = vmatprep.subr.mxu0 0.0
        %3234 = vmatpush1.msra.mxu0 0.0
        %3235 = vmatprep.subr.mxu0 0.0
        %3236 = vmatpush1.msra.mxu0 0.0
        %3237 = vmatprep.subr.mxu0 0.0
        %3238 = vmatpush1.msra.mxu0 0.0
        %3239 = vmatprep.subr.mxu0 0.0
        %3240 = vmatpush1.msra.mxu0 0.0
        %3241 = vmatprep.subr.mxu0 0.0
        %3242 = vmatpush1.msra.mxu0 0.0
        %3243 = vmatprep.subr.mxu0 0.0
        %3244 = vmatpush1.msra.mxu0 0.0
        %3245 = vmatprep.subr.mxu0 0.0
        %3246 = vmatpush1.msra.mxu0 0.0
        %3247 = vmatprep.subr.mxu0 0.0
        %3248 = vmatpush1.msra.mxu0 0.0
        %3249 = vmatprep.subr.mxu0 0.0
        %3250 = vmatpush1.msra.mxu0 0.0
        %3251 = vmatprep.subr.mxu0 0.0
        %3252 = vmatpush1.msra.mxu0 0.0
        %3253 = vmatprep.subr.mxu0 0.0
        %3254 = vmatpush1.msra.mxu0 0.0
        %3255 = vmatprep.subr.mxu0 0.0
        %3256 = vmatpush1.msra.mxu0 0.0
        %3257 = vmatprep.subr.mxu0 0.0
        %3258 = vmatpush1.msra.mxu0 0.0
        %3259 = vmatprep.subr.mxu0 0.0
        %3260 = vmatpush1.msra.mxu0 0.0
        %3261 = vmatprep.mubr.f32.mxu0 0.0
        %3262 = vmatmul.mubr.f32.gmra.mrb[0].mxu0 %v680
        %v3263 = vpop.f32.mrb[0].mxu0
        %v3264 = vadd.f32 0.0, %v3263
        %v3265 = vpop.f32.mrb[0].mxu0
        %3266 = vmatprep.mubr.f32.mxu0 0.0
        %3267 = vmatmul.mubr.f32.gmra.mrb[0].mxu0 %v683
        %v3268 = vpop.f32.mrb[0].mxu0
        %v3269 = vadd.f32 0.0, %v3268
        %v3270 = vpop.f32.mrb[0].mxu0
        %3271 = vdwg.mxu0
        %3272 = vmatprep.subr.mxu0 0.0
        %3273 = vmatpush1.msra.mxu0 %v3110
        %3274 = vmatprep.subr.mxu0 0.0
        %3275 = vmatpush1.msra.mxu0 %v3111
        %3276 = vmatprep.subr.mxu0 0.0
        %3277 = vmatpush1.msra.mxu0 0.0
        %3278 = vmatprep.subr.mxu0 0.0
        %3279 = vmatpush1.msra.mxu0 0.0
        %3280 = vmatprep.subr.mxu0 0.0
        %3281 = vmatpush1.msra.mxu0 0.0
        %3282 = vmatprep.subr.mxu0 0.0
        %3283 = vmatpush1.msra.mxu0 0.0
        %3284 = vmatprep.subr.mxu0 0.0
        %3285 = vmatpush1.msra.mxu0 0.0
        %3286 = vmatprep.subr.mxu0 0.0
        %3287 = vmatpush1.msra.mxu0 0.0
        %3288 = vmatprep.subr.mxu0 0.0
        %3289 = vmatpush1.msra.mxu0 0.0
        %3290 = vmatprep.subr.mxu0 0.0
        %3291 = vmatpush1.msra.mxu0 0.0
        %3292 = vmatprep.subr.mxu0 0.0
        %3293 = vmatpush1.msra.mxu0 0.0
        %3294 = vmatprep.subr.mxu0 0.0
        %3295 = vmatpush1.msra.mxu0 0.0
        %3296 = vmatprep.subr.mxu0 0.0
        %3297 = vmatpush1.msra.mxu0 0.0
        %3298 = vmatprep.subr.mxu0 0.0
        %3299 = vmatpush1.msra.mxu0 0.0
        %3300 = vmatprep.subr.mxu0 0.0
        %3301 = vmatpush1.msra.mxu0 0.0
        %3302 = vmatprep.subr.mxu0 0.0
        %3303 = vmatpush1.msra.mxu0 0.0
        %3304 = vmatprep.subr.mxu0 0.0
        %3305 = vmatpush1.msra.mxu0 0.0
        %3306 = vmatprep.subr.mxu0 0.0
        %3307 = vmatpush1.msra.mxu0 0.0
        %3308 = vmatprep.subr.mxu0 0.0
        %3309 = vmatpush1.msra.mxu0 0.0
        %3310 = vmatprep.subr.mxu0 0.0
        %3311 = vmatpush1.msra.mxu0 0.0
        %3312 = vmatprep.subr.mxu0 0.0
        %3313 = vmatpush1.msra.mxu0 0.0
        %3314 = vmatprep.subr.mxu0 0.0
        %3315 = vmatpush1.msra.mxu0 0.0
        %3316 = vmatprep.subr.mxu0 0.0
        %3317 = vmatpush1.msra.mxu0 0.0
        %3318 = vmatprep.subr.mxu0 0.0
        %3319 = vmatpush1.msra.mxu0 0.0
        %3320 = vmatprep.subr.mxu0 0.0
        %3321 = vmatpush1.msra.mxu0 0.0
        %3322 = vmatprep.subr.mxu0 0.0
        %3323 = vmatpush1.msra.mxu0 0.0
        %3324 = vmatprep.subr.mxu0 0.0
        %3325 = vmatpush1.msra.mxu0 0.0
        %3326 = vmatprep.subr.mxu0 0.0
        %3327 = vmatpush1.msra.mxu0 0.0
        %3328 = vmatprep.subr.mxu0 0.0
        %3329 = vmatpush1.msra.mxu0 0.0
        %3330 = vmatprep.subr.mxu0 0.0
        %3331 = vmatpush1.msra.mxu0 0.0
        %3332 = vmatprep.subr.mxu0 0.0
        %3333 = vmatpush1.msra.mxu0 0.0
        %3334 = vmatprep.subr.mxu0 0.0
        %3335 = vmatpush1.msra.mxu0 0.0
        %3336 = vmatprep.mubr.f32.mxu0 0.0
        %3337 = vmatmul.mubr.f32.gmra.mrb[0].mxu0 %v761
        %v3338 = vpop.f32.mrb[0].mxu0
        %v3339 = vadd.f32 0.0, %v3338
        %v3340 = vpop.f32.mrb[0].mxu0
        %3341 = vmatprep.mubr.f32.mxu0 0.0
        %3342 = vmatmul.mubr.f32.gmra.mrb[0].mxu0 %v764
        %v3343 = vpop.f32.mrb[0].mxu0
        %v3344 = vadd.f32 0.0, %v3343
        %v3345 = vpop.f32.mrb[0].mxu0
        %3346 = vdwg.mxu0
        %3347 = vmatprep.subr.mxu0 0.0
        %3348 = vmatpush1.msra.mxu0 %v3112
        %3349 = vmatprep.subr.mxu0 0.0
        %3350 = vmatpush1.msra.mxu0 %v3113
        %3351 = vmatprep.subr.mxu0 0.0
        %3352 = vmatpush1.msra.mxu0 0.0
        %3353 = vmatprep.subr.mxu0 0.0
        %3354 = vmatpush1.msra.mxu0 0.0
        %3355 = vmatprep.subr.mxu0 0.0
        %3356 = vmatpush1.msra.mxu0 0.0
        %3357 = vmatprep.subr.mxu0 0.0
        %3358 = vmatpush1.msra.mxu0 0.0
        %3359 = vmatprep.subr.mxu0 0.0
        %3360 = vmatpush1.msra.mxu0 0.0
        %3361 = vmatprep.subr.mxu0 0.0
        %3362 = vmatpush1.msra.mxu0 0.0
        %3363 = vmatprep.subr.mxu0 0.0
        %3364 = vmatpush1.msra.mxu0 0.0
        %3365 = vmatprep.subr.mxu0 0.0
        %3366 = vmatpush1.msra.mxu0 0.0
        %3367 = vmatprep.subr.mxu0 0.0
        %3368 = vmatpush1.msra.mxu0 0.0
        %3369 = vmatprep.subr.mxu0 0.0
        %3370 = vmatpush1.msra.mxu0 0.0
        %3371 = vmatprep.subr.mxu0 0.0
        %3372 = vmatpush1.msra.mxu0 0.0
        %3373 = vmatprep.subr.mxu0 0.0
        %3374 = vmatpush1.msra.mxu0 0.0
        %3375 = vmatprep.subr.mxu0 0.0
        %3376 = vmatpush1.msra.mxu0 0.0
        %3377 = vmatprep.subr.mxu0 0.0
        %3378 = vmatpush1.msra.mxu0 0.0
        %3379 = vmatprep.subr.mxu0 0.0
        %3380 = vmatpush1.msra.mxu0 0.0
        %3381 = vmatprep.subr.mxu0 0.0
        %3382 = vmatpush1.msra.mxu0 0.0
        %3383 = vmatprep.subr.mxu0 0.0
        %3384 = vmatpush1.msra.mxu0 0.0
        %3385 = vmatprep.subr.mxu0 0.0
        %3386 = vmatpush1.msra.mxu0 0.0
        %3387 = vmatprep.subr.mxu0 0.0
        %3388 = vmatpush1.msra.mxu0 0.0
        %3389 = vmatprep.subr.mxu0 0.0
        %3390 = vmatpush1.msra.mxu0 0.0
        %3391 = vmatprep.subr.mxu0 0.0
        %3392 = vmatpush1.msra.mxu0 0.0
        %3393 = vmatprep.subr.mxu0 0.0
        %3394 = vmatpush1.msra.mxu0 0.0
        %3395 = vmatprep.subr.mxu0 0.0
        %3396 = vmatpush1.msra.mxu0 0.0
        %3397 = vmatprep.subr.mxu0 0.0
        %3398 = vmatpush1.msra.mxu0 0.0
        %3399 = vmatprep.subr.mxu0 0.0
        %3400 = vmatpush1.msra.mxu0 0.0
        %3401 = vmatprep.subr.mxu0 0.0
        %3402 = vmatpush1.msra.mxu0 0.0
        %3403 = vmatprep.subr.mxu0 0.0
        %3404 = vmatpush1.msra.mxu0 0.0
        %3405 = vmatprep.subr.mxu0 0.0
        %3406 = vmatpush1.msra.mxu0 0.0
        %3407 = vmatprep.subr.mxu0 0.0
        %3408 = vmatpush1.msra.mxu0 0.0
        %3409 = vmatprep.subr.mxu0 0.0
        %3410 = vmatpush1.msra.mxu0 0.0
        %3411 = vmatprep.mubr.f32.mxu0 0.0
        %3412 = vmatmul.mubr.f32.gmra.mrb[0].mxu0 %v842
        %v3413 = vpop.f32.mrb[0].mxu0
        %v3414 = vadd.f32 0.0, %v3413
        %v3415 = vpop.f32.mrb[0].mxu0
        %3416 = vmatprep.mubr.f32.mxu0 0.0
        %3417 = vmatmul.mubr.f32.gmra.mrb[0].mxu0 %v845
        %v3418 = vpop.f32.mrb[0].mxu0
        %v3419 = vadd.f32 0.0, %v3418
        %v3420 = vpop.f32.mrb[0].mxu0
        %3421 = vdwg.mxu0
        %3422 = vmatprep.subr.mxu0 0.0
        %3423 = vmatpush1.msra.mxu0 %v3114
        %3424 = vmatprep.subr.mxu0 0.0
        %3425 = vmatpush1.msra.mxu0 %v3115
        %3426 = vmatprep.subr.mxu0 0.0
        %3427 = vmatpush1.msra.mxu0 0.0
        %3428 = vmatprep.subr.mxu0 0.0
        %3429 = vmatpush1.msra.mxu0 0.0
        %3430 = vmatprep.subr.mxu0 0.0
        %3431 = vmatpush1.msra.mxu0 0.0
        %3432 = vmatprep.subr.mxu0 0.0
        %3433 = vmatpush1.msra.mxu0 0.0
        %3434 = vmatprep.subr.mxu0 0.0
        %3435 = vmatpush1.msra.mxu0 0.0
        %3436 = vmatprep.subr.mxu0 0.0
        %3437 = vmatpush1.msra.mxu0 0.0
        %3438 = vmatprep.subr.mxu0 0.0
        %3439 = vmatpush1.msra.mxu0 0.0
        %3440 = vmatprep.subr.mxu0 0.0
        %3441 = vmatpush1.msra.mxu0 0.0
        %3442 = vmatprep.subr.mxu0 0.0
        %3443 = vmatpush1.msra.mxu0 0.0
        %3444 = vmatprep.subr.mxu0 0.0
        %3445 = vmatpush1.msra.mxu0 0.0
        %3446 = vmatprep.subr.mxu0 0.0
        %3447 = vmatpush1.msra.mxu0 0.0
        %3448 = vmatprep.subr.mxu0 0.0
        %3449 = vmatpush1.msra.mxu0 0.0
        %3450 = vmatprep.subr.mxu0 0.0
        %3451 = vmatpush1.msra.mxu0 0.0
        %3452 = vmatprep.subr.mxu0 0.0
        %3453 = vmatpush1.msra.mxu0 0.0
        %3454 = vmatprep.subr.mxu0 0.0
        %3455 = vmatpush1.msra.mxu0 0.0
        %3456 = vmatprep.subr.mxu0 0.0
        %3457 = vmatpush1.msra.mxu0 0.0
        %3458 = vmatprep.subr.mxu0 0.0
        %3459 = vmatpush1.msra.mxu0 0.0
        %3460 = vmatprep.subr.mxu0 0.0
        %3461 = vmatpush1.msra.mxu0 0.0
        %3462 = vmatprep.subr.mxu0 0.0
        %3463 = vmatpush1.msra.mxu0 0.0
        %3464 = vmatprep.subr.mxu0 0.0
        %3465 = vmatpush1.msra.mxu0 0.0
        %3466 = vmatprep.subr.mxu0 0.0
        %3467 = vmatpush1.msra.mxu0 0.0
        %3468 = vmatprep.subr.mxu0 0.0
        %3469 = vmatpush1.msra.mxu0 0.0
        %3470 = vmatprep.subr.mxu0 0.0
        %3471 = vmatpush1.msra.mxu0 0.0
        %3472 = vmatprep.subr.mxu0 0.0
        %3473 = vmatpush1.msra.mxu0 0.0
        %3474 = vmatprep.subr.mxu0 0.0
        %3475 = vmatpush1.msra.mxu0 0.0
        %3476 = vmatprep.subr.mxu0 0.0
        %3477 = vmatpush1.msra.mxu0 0.0
        %3478 = vmatprep.subr.mxu0 0.0
        %3479 = vmatpush1.msra.mxu0 0.0
        %3480 = vmatprep.subr.mxu0 0.0
        %3481 = vmatpush1.msra.mxu0 0.0
        %3482 = vmatprep.subr.mxu0 0.0
        %3483 = vmatpush1.msra.mxu0 0.0
        %3484 = vmatprep.subr.mxu0 0.0
        %3485 = vmatpush1.msra.mxu0 0.0
        %3486 = vmatprep.mubr.f32.mxu0 0.0
        %3487 = vmatmul.mubr.f32.gmra.mrb[0].mxu0 %v923
        %v3488 = vpop.f32.mrb[0].mxu0
        %v3489 = vadd.f32 0.0, %v3488
        %v3490 = vpop.f32.mrb[0].mxu0
        %3491 = vmatprep.mubr.f32.mxu0 0.0
        %3492 = vmatmul.mubr.f32.gmra.mrb[0].mxu0 %v926
        %v3493 = vpop.f32.mrb[0].mxu0
        %v3494 = vadd.f32 0.0, %v3493
        %v3495 = vpop.f32.mrb[0].mxu0
        %3496 = vdwg.mxu0
        %3497 = vmatprep.subr.mxu0 0.0
        %3498 = vmatpush1.msra.mxu0 %v3116
        %3499 = vmatprep.subr.mxu0 0.0
        %3500 = vmatpush1.msra.mxu0 %v3117
        %3501 = vmatprep.subr.mxu0 0.0
        %3502 = vmatpush1.msra.mxu0 0.0
        %3503 = vmatprep.subr.mxu0 0.0
        %3504 = vmatpush1.msra.mxu0 0.0
        %3505 = vmatprep.subr.mxu0 0.0
        %3506 = vmatpush1.msra.mxu0 0.0
        %3507 = vmatprep.subr.mxu0 0.0
        %3508 = vmatpush1.msra.mxu0 0.0
        %3509 = vmatprep.subr.mxu0 0.0
        %3510 = vmatpush1.msra.mxu0 0.0
        %3511 = vmatprep.subr.mxu0 0.0
        %3512 = vmatpush1.msra.mxu0 0.0
        %3513 = vmatprep.subr.mxu0 0.0
        %3514 = vmatpush1.msra.mxu0 0.0
        %3515 = vmatprep.subr.mxu0 0.0
        %3516 = vmatpush1.msra.mxu0 0.0
        %3517 = vmatprep.subr.mxu0 0.0
        %3518 = vmatpush1.msra.mxu0 0.0
        %3519 = vmatprep.subr.mxu0 0.0
        %3520 = vmatpush1.msra.mxu0 0.0
        %3521 = vmatprep.subr.mxu0 0.0
        %3522 = vmatpush1.msra.mxu0 0.0
        %3523 = vmatprep.subr.mxu0 0.0
        %3524 = vmatpush1.msra.mxu0 0.0
        %3525 = vmatprep.subr.mxu0 0.0
        %3526 = vmatpush1.msra.mxu0 0.0
        %3527 = vmatprep.subr.mxu0 0.0
        %3528 = vmatpush1.msra.mxu0 0.0
        %3529 = vmatprep.subr.mxu0 0.0
        %3530 = vmatpush1.msra.mxu0 0.0
        %3531 = vmatprep.subr.mxu0 0.0
        %3532 = vmatpush1.msra.mxu0 0.0
        %3533 = vmatprep.subr.mxu0 0.0
        %3534 = vmatpush1.msra.mxu0 0.0
        %3535 = vmatprep.subr.mxu0 0.0
        %3536 = vmatpush1.msra.mxu0 0.0
        %3537 = vmatprep.subr.mxu0 0.0
        %3538 = vmatpush1.msra.mxu0 0.0
        %3539 = vmatprep.subr.mxu0 0.0
        %3540 = vmatpush1.msra.mxu0 0.0
        %3541 = vmatprep.subr.mxu0 0.0
        %3542 = vmatpush1.msra.mxu0 0.0
        %3543 = vmatprep.subr.mxu0 0.0
        %3544 = vmatpush1.msra.mxu0 0.0
        %3545 = vmatprep.subr.mxu0 0.0
        %3546 = vmatpush1.msra.mxu0 0.0
        %3547 = vmatprep.subr.mxu0 0.0
        %3548 = vmatpush1.msra.mxu0 0.0
        %3549 = vmatprep.subr.mxu0 0.0
        %3550 = vmatpush1.msra.mxu0 0.0
        %3551 = vmatprep.subr.mxu0 0.0
        %3552 = vmatpush1.msra.mxu0 0.0
        %3553 = vmatprep.subr.mxu0 0.0
        %3554 = vmatpush1.msra.mxu0 0.0
        %3555 = vmatprep.subr.mxu0 0.0
        %3556 = vmatpush1.msra.mxu0 0.0
        %3557 = vmatprep.subr.mxu0 0.0
        %3558 = vmatpush1.msra.mxu0 0.0
        %3559 = vmatprep.subr.mxu0 0.0
        %3560 = vmatpush1.msra.mxu0 0.0
        %3561 = vmatprep.mubr.f32.mxu0 0.0
        %3562 = vmatmul.mubr.f32.gmra.mrb[0].mxu0 %v1004
        %v3563 = vpop.f32.mrb[0].mxu0
        %v3564 = vadd.f32 0.0, %v3563
        %v3565 = vpop.f32.mrb[0].mxu0
        %3566 = vmatprep.mubr.f32.mxu0 0.0
        %3567 = vmatmul.mubr.f32.gmra.mrb[0].mxu0 %v1007
        %v3568 = vpop.f32.mrb[0].mxu0
        %v3569 = vadd.f32 0.0, %v3568
        %v3570 = vpop.f32.mrb[0].mxu0
        %3571 = vdwg.mxu0
        %3572 = vmatprep.subr.mxu0 0.0
        %3573 = vmatpush1.msra.mxu0 %v3118
        %3574 = vmatprep.subr.mxu0 0.0
        %3575 = vmatpush1.msra.mxu0 %v3119
        %3576 = vmatprep.subr.mxu0 0.0
        %3577 = vmatpush1.msra.mxu0 0.0
        %3578 = vmatprep.subr.mxu0 0.0
        %3579 = vmatpush1.msra.mxu0 0.0
        %3580 = vmatprep.subr.mxu0 0.0
        %3581 = vmatpush1.msra.mxu0 0.0
        %3582 = vmatprep.subr.mxu0 0.0
        %3583 = vmatpush1.msra.mxu0 0.0
        %3584 = vmatprep.subr.mxu0 0.0
        %3585 = vmatpush1.msra.mxu0 0.0
        %3586 = vmatprep.subr.mxu0 0.0
        %3587 = vmatpush1.msra.mxu0 0.0
        %3588 = vmatprep.subr.mxu0 0.0
        %3589 = vmatpush1.msra.mxu0 0.0
        %3590 = vmatprep.subr.mxu0 0.0
        %3591 = vmatpush1.msra.mxu0 0.0
        %3592 = vmatprep.subr.mxu0 0.0
        %3593 = vmatpush1.msra.mxu0 0.0
        %3594 = vmatprep.subr.mxu0 0.0
        %3595 = vmatpush1.msra.mxu0 0.0
        %3596 = vmatprep.subr.mxu0 0.0
        %3597 = vmatpush1.msra.mxu0 0.0
        %3598 = vmatprep.subr.mxu0 0.0
        %3599 = vmatpush1.msra.mxu0 0.0
        %3600 = vmatprep.subr.mxu0 0.0
        %3601 = vmatpush1.msra.mxu0 0.0
        %3602 = vmatprep.subr.mxu0 0.0
        %3603 = vmatpush1.msra.mxu0 0.0
        %3604 = vmatprep.subr.mxu0 0.0
        %3605 = vmatpush1.msra.mxu0 0.0
        %3606 = vmatprep.subr.mxu0 0.0
        %3607 = vmatpush1.msra.mxu0 0.0
        %3608 = vmatprep.subr.mxu0 0.0
        %3609 = vmatpush1.msra.mxu0 0.0
        %3610 = vmatprep.subr.mxu0 0.0
        %3611 = vmatpush1.msra.mxu0 0.0
        %3612 = vmatprep.subr.mxu0 0.0
        %3613 = vmatpush1.msra.mxu0 0.0
        %3614 = vmatprep.subr.mxu0 0.0
        %3615 = vmatpush1.msra.mxu0 0.0
        %3616 = vmatprep.subr.mxu0 0.0
        %3617 = vmatpush1.msra.mxu0 0.0
        %3618 = vmatprep.subr.mxu0 0.0
        %3619 = vmatpush1.msra.mxu0 0.0
        %3620 = vmatprep.subr.mxu0 0.0
        %3621 = vmatpush1.msra.mxu0 0.0
        %3622 = vmatprep.subr.mxu0 0.0
        %3623 = vmatpush1.msra.mxu0 0.0
        %3624 = vmatprep.subr.mxu0 0.0
        %3625 = vmatpush1.msra.mxu0 0.0
        %3626 = vmatprep.subr.mxu0 0.0
        %3627 = vmatpush1.msra.mxu0 0.0
        %3628 = vmatprep.subr.mxu0 0.0
        %3629 = vmatpush1.msra.mxu0 0.0
        %3630 = vmatprep.subr.mxu0 0.0
        %3631 = vmatpush1.msra.mxu0 0.0
        %3632 = vmatprep.subr.mxu0 0.0
        %3633 = vmatpush1.msra.mxu0 0.0
        %3634 = vmatprep.subr.mxu0 0.0
        %3635 = vmatpush1.msra.mxu0 0.0
        %3636 = vmatprep.mubr.f32.mxu0 0.0
        %3637 = vmatmul.mubr.f32.gmra.mrb[0].mxu0 %v1085
        %v3638 = vpop.f32.mrb[0].mxu0
        %v3639 = vadd.f32 0.0, %v3638
        %v3640 = vpop.f32.mrb[0].mxu0
        %3641 = vmatprep.mubr.f32.mxu0 0.0
        %3642 = vmatmul.mubr.f32.gmra.mrb[0].mxu0 %v1088
        %v3643 = vpop.f32.mrb[0].mxu0
        %v3644 = vadd.f32 0.0, %v3643
        %v3645 = vpop.f32.mrb[0].mxu0
        %3646 = vdwg.mxu0
        %3647 = vmatprep.subr.mxu0 0.0
        %3648 = vmatpush1.msra.mxu0 %v3120
        %3649 = vmatprep.subr.mxu0 0.0
        %3650 = vmatpush1.msra.mxu0 %v3121
        %3651 = vmatprep.subr.mxu0 0.0
        %3652 = vmatpush1.msra.mxu0 0.0
        %3653 = vmatprep.subr.mxu0 0.0
        %3654 = vmatpush1.msra.mxu0 0.0
        %3655 = vmatprep.subr.mxu0 0.0
        %3656 = vmatpush1.msra.mxu0 0.0
        %3657 = vmatprep.subr.mxu0 0.0
        %3658 = vmatpush1.msra.mxu0 0.0
        %3659 = vmatprep.subr.mxu0 0.0
        %3660 = vmatpush1.msra.mxu0 0.0
        %3661 = vmatprep.subr.mxu0 0.0
        %3662 = vmatpush1.msra.mxu0 0.0
        %3663 = vmatprep.subr.mxu0 0.0
        %3664 = vmatpush1.msra.mxu0 0.0
        %3665 = vmatprep.subr.mxu0 0.0
        %3666 = vmatpush1.msra.mxu0 0.0
        %3667 = vmatprep.subr.mxu0 0.0
        %3668 = vmatpush1.msra.mxu0 0.0
        %3669 = vmatprep.subr.mxu0 0.0
        %3670 = vmatpush1.msra.mxu0 0.0
        %3671 = vmatprep.subr.mxu0 0.0
        %3672 = vmatpush1.msra.mxu0 0.0
        %3673 = vmatprep.subr.mxu0 0.0
        %3674 = vmatpush1.msra.mxu0 0.0
        %3675 = vmatprep.subr.mxu0 0.0
        %3676 = vmatpush1.msra.mxu0 0.0
        %3677 = vmatprep.subr.mxu0 0.0
        %3678 = vmatpush1.msra.mxu0 0.0
        %3679 = vmatprep.subr.mxu0 0.0
        %3680 = vmatpush1.msra.mxu0 0.0
        %3681 = vmatprep.subr.mxu0 0.0
        %3682 = vmatpush1.msra.mxu0 0.0
        %3683 = vmatprep.subr.mxu0 0.0
        %3684 = vmatpush1.msra.mxu0 0.0
        %3685 = vmatprep.subr.mxu0 0.0
        %3686 = vmatpush1.msra.mxu0 0.0
        %3687 = vmatprep.subr.mxu0 0.0
        %3688 = vmatpush1.msra.mxu0 0.0
        %3689 = vmatprep.subr.mxu0 0.0
        %3690 = vmatpush1.msra.mxu0 0.0
        %3691 = vmatprep.subr.mxu0 0.0
        %3692 = vmatpush1.msra.mxu0 0.0
        %3693 = vmatprep.subr.mxu0 0.0
        %3694 = vmatpush1.msra.mxu0 0.0
        %3695 = vmatprep.subr.mxu0 0.0
        %3696 = vmatpush1.msra.mxu0 0.0
        %3697 = vmatprep.subr.mxu0 0.0
        %3698 = vmatpush1.msra.mxu0 0.0
        %3699 = vmatprep.subr.mxu0 0.0
        %3700 = vmatpush1.msra.mxu0 0.0
        %3701 = vmatprep.subr.mxu0 0.0
        %3702 = vmatpush1.msra.mxu0 0.0
        %3703 = vmatprep.subr.mxu0 0.0
        %3704 = vmatpush1.msra.mxu0 0.0
        %3705 = vmatprep.subr.mxu0 0.0
        %3706 = vmatpush1.msra.mxu0 0.0
        %3707 = vmatprep.subr.mxu0 0.0
        %3708 = vmatpush1.msra.mxu0 0.0
        %3709 = vmatprep.subr.mxu0 0.0
        %3710 = vmatpush1.msra.mxu0 0.0
        %3711 = vmatprep.mubr.f32.mxu0 0.0
        %3712 = vmatmul.mubr.f32.gmra.mrb[0].mxu0 %v1166
        %v3713 = vpop.f32.mrb[0].mxu0
        %v3714 = vadd.f32 0.0, %v3713
        %v3715 = vpop.f32.mrb[0].mxu0
        %3716 = vmatprep.mubr.f32.mxu0 0.0
        %3717 = vmatmul.mubr.f32.gmra.mrb[0].mxu0 %v1169
        %v3718 = vpop.f32.mrb[0].mxu0
        %v3719 = vadd.f32 0.0, %v3718
        %v3720 = vpop.f32.mrb[0].mxu0
        %3721 = vdwg.mxu0
        %v3723 = vsel %vm1246, %v3189, 0
        %v3726 = vsel %vm1246, %v3194, 0
        %v3729 = vsel %vm1246, %v3264, 0
        %v3732 = vsel %vm1246, %v3269, 0
        %v3735 = vsel %vm1246, %v3339, 0
        %v3738 = vsel %vm1246, %v3344, 0
        %v3741 = vsel %vm1246, %v3414, 0
        %v3744 = vsel %vm1246, %v3419, 0
        %v3747 = vsel %vm1246, %v3489, 0
        %v3750 = vsel %vm1246, %v3494, 0
        %v3753 = vsel %vm1246, %v3564, 0
        %v3756 = vsel %vm1246, %v3569, 0
        %v3759 = vsel %vm1246, %v3639, 0
        %v3762 = vsel %vm1246, %v3644, 0
        %v3765 = vsel %vm1246, %v3714, 0
        %v3768 = vsel %vm1246, %v3719, 0
        %3770 = vmatprep.subr.mxu0 0.0
        %3771 = vmatpush1.msra.mxu0 %v383
        %3772 = vmatprep.subr.mxu0 0.0
        %3773 = vmatpush1.msra.mxu0 %v384
        %3774 = vmatprep.subr.mxu0 0.0
        %3775 = vmatpush1.msra.mxu0 %v385
        %3776 = vmatprep.subr.mxu0 0.0
        %3777 = vmatpush1.msra.mxu0 %v386
        %3778 = vmatprep.subr.mxu0 0.0
        %3779 = vmatpush1.msra.mxu0 0.0
        %3780 = vmatprep.subr.mxu0 0.0
        %3781 = vmatpush1.msra.mxu0 0.0
        %3782 = vmatprep.subr.mxu0 0.0
        %3783 = vmatpush1.msra.mxu0 0.0
        %3784 = vmatprep.subr.mxu0 0.0
        %3785 = vmatpush1.msra.mxu0 0.0
        %3786 = vmatprep.subr.mxu0 0.0
        %3787 = vmatpush1.msra.mxu0 0.0
        %3788 = vmatprep.subr.mxu0 0.0
        %3789 = vmatpush1.msra.mxu0 0.0
        %3790 = vmatprep.subr.mxu0 0.0
        %3791 = vmatpush1.msra.mxu0 0.0
        %3792 = vmatprep.subr.mxu0 0.0
        %3793 = vmatpush1.msra.mxu0 0.0
        %3794 = vmatprep.subr.mxu0 0.0
        %3795 = vmatpush1.msra.mxu0 0.0
        %3796 = vmatprep.subr.mxu0 0.0
        %3797 = vmatpush1.msra.mxu0 0.0
        %3798 = vmatprep.subr.mxu0 0.0
        %3799 = vmatpush1.msra.mxu0 0.0
        %3800 = vmatprep.subr.mxu0 0.0
        %3801 = vmatpush1.msra.mxu0 0.0
        %3802 = vmatprep.subr.mxu0 0.0
        %3803 = vmatpush1.msra.mxu0 0.0
        %3804 = vmatprep.subr.mxu0 0.0
        %3805 = vmatpush1.msra.mxu0 0.0
        %3806 = vmatprep.subr.mxu0 0.0
        %3807 = vmatpush1.msra.mxu0 0.0
        %3808 = vmatprep.subr.mxu0 0.0
        %3809 = vmatpush1.msra.mxu0 0.0
        %3810 = vmatprep.subr.mxu0 0.0
        %3811 = vmatpush1.msra.mxu0 0.0
        %3812 = vmatprep.subr.mxu0 0.0
        %3813 = vmatpush1.msra.mxu0 0.0
        %3814 = vmatprep.subr.mxu0 0.0
        %3815 = vmatpush1.msra.mxu0 0.0
        %3816 = vmatprep.subr.mxu0 0.0
        %3817 = vmatpush1.msra.mxu0 0.0
        %3818 = vmatprep.subr.mxu0 0.0
        %3819 = vmatpush1.msra.mxu0 0.0
        %3820 = vmatprep.subr.mxu0 0.0
        %3821 = vmatpush1.msra.mxu0 0.0
        %3822 = vmatprep.subr.mxu0 0.0
        %3823 = vmatpush1.msra.mxu0 0.0
        %3824 = vmatprep.subr.mxu0 0.0
        %3825 = vmatpush1.msra.mxu0 0.0
        %3826 = vmatprep.subr.mxu0 0.0
        %3827 = vmatpush1.msra.mxu0 0.0
        %3828 = vmatprep.subr.mxu0 0.0
        %3829 = vmatpush1.msra.mxu0 0.0
        %3830 = vmatprep.subr.mxu0 0.0
        %3831 = vmatpush1.msra.mxu0 0.0
        %3832 = vmatprep.subr.mxu0 0.0
        %3833 = vmatpush1.msra.mxu0 0.0
        %3834 = vmatprep.mubr.f32.mxu0 0.0
        %3835 = vmatmul.mubr.f32.gmra.mrb[0].mxu0 %v3723
        %v3836 = vpop.f32.mrb[0].mxu0
        %v3837 = vadd.f32 0.0, %v3836
        %v3838 = vpop.f32.mrb[0].mxu0
        %3839 = vmatprep.mubr.f32.mxu0 0.0
        %3840 = vmatmul.mubr.f32.gmra.mrb[0].mxu0 %v3726
        %v3841 = vpop.f32.mrb[0].mxu0
        %v3842 = vadd.f32 0.0, %v3841
        %v3843 = vpop.f32.mrb[0].mxu0
        %3844 = vmatprep.mubr.f32.mxu0 0.0
        %3845 = vmatmul.mubr.f32.gmra.mrb[0].mxu0 %v3729
        %v3846 = vpop.f32.mrb[0].mxu0
        %v3847 = vadd.f32 0.0, %v3846
        %v3848 = vpop.f32.mrb[0].mxu0
        %3849 = vmatprep.mubr.f32.mxu0 0.0
        %3850 = vmatmul.mubr.f32.gmra.mrb[0].mxu0 %v3732
        %v3851 = vpop.f32.mrb[0].mxu0
        %v3852 = vadd.f32 0.0, %v3851
        %v3853 = vpop.f32.mrb[0].mxu0
        %3854 = vmatprep.mubr.f32.mxu0 0.0
        %3855 = vmatmul.mubr.f32.gmra.mrb[0].mxu0 %v3735
        %v3856 = vpop.f32.mrb[0].mxu0
        %v3857 = vadd.f32 0.0, %v3856
        %v3858 = vpop.f32.mrb[0].mxu0
        %3859 = vmatprep.mubr.f32.mxu0 0.0
        %3860 = vmatmul.mubr.f32.gmra.mrb[0].mxu0 %v3738
        %v3861 = vpop.f32.mrb[0].mxu0
        %v3862 = vadd.f32 0.0, %v3861
        %v3863 = vpop.f32.mrb[0].mxu0
        %3864 = vmatprep.mubr.f32.mxu0 0.0
        %3865 = vmatmul.mubr.f32.gmra.mrb[0].mxu0 %v3741
        %v3866 = vpop.f32.mrb[0].mxu0
        %v3867 = vadd.f32 0.0, %v3866
        %v3868 = vpop.f32.mrb[0].mxu0
        %3869 = vmatprep.mubr.f32.mxu0 0.0
        %3870 = vmatmul.mubr.f32.gmra.mrb[0].mxu0 %v3744
        %v3871 = vpop.f32.mrb[0].mxu0
        %v3872 = vadd.f32 0.0, %v3871
        %v3873 = vpop.f32.mrb[0].mxu0
        %3874 = vmatprep.mubr.f32.mxu0 0.0
        %3875 = vmatmul.mubr.f32.gmra.mrb[0].mxu0 %v3747
        %v3876 = vpop.f32.mrb[0].mxu0
        %v3877 = vadd.f32 0.0, %v3876
        %v3878 = vpop.f32.mrb[0].mxu0
        %3879 = vmatprep.mubr.f32.mxu0 0.0
        %3880 = vmatmul.mubr.f32.gmra.mrb[0].mxu0 %v3750
        %v3881 = vpop.f32.mrb[0].mxu0
        %v3882 = vadd.f32 0.0, %v3881
        %v3883 = vpop.f32.mrb[0].mxu0
        %3884 = vmatprep.mubr.f32.mxu0 0.0
        %3885 = vmatmul.mubr.f32.gmra.mrb[0].mxu0 %v3753
        %v3886 = vpop.f32.mrb[0].mxu0
        %v3887 = vadd.f32 0.0, %v3886
        %v3888 = vpop.f32.mrb[0].mxu0
        %3889 = vmatprep.mubr.f32.mxu0 0.0
        %3890 = vmatmul.mubr.f32.gmra.mrb[0].mxu0 %v3756
        %v3891 = vpop.f32.mrb[0].mxu0
        %v3892 = vadd.f32 0.0, %v3891
        %v3893 = vpop.f32.mrb[0].mxu0
        %3894 = vmatprep.mubr.f32.mxu0 0.0
        %3895 = vmatmul.mubr.f32.gmra.mrb[0].mxu0 %v3759
        %v3896 = vpop.f32.mrb[0].mxu0
        %v3897 = vadd.f32 0.0, %v3896
        %v3898 = vpop.f32.mrb[0].mxu0
        %3899 = vmatprep.mubr.f32.mxu0 0.0
        %3900 = vmatmul.mubr.f32.gmra.mrb[0].mxu0 %v3762
        %v3901 = vpop.f32.mrb[0].mxu0
        %v3902 = vadd.f32 0.0, %v3901
        %v3903 = vpop.f32.mrb[0].mxu0
        %3904 = vmatprep.mubr.f32.mxu0 0.0
        %3905 = vmatmul.mubr.f32.gmra.mrb[0].mxu0 %v3765
        %v3906 = vpop.f32.mrb[0].mxu0
        %v3907 = vadd.f32 0.0, %v3906
        %v3908 = vpop.f32.mrb[0].mxu0
        %3909 = vmatprep.mubr.f32.mxu0 0.0
        %3910 = vmatmul.mubr.f32.gmra.mrb[0].mxu0 %v3768
        %v3911 = vpop.f32.mrb[0].mxu0
        %v3912 = vadd.f32 0.0, %v3911
        %v3913 = vpop.f32.mrb[0].mxu0
        %3914 = vdwg.mxu0
        %v3915 = vadd.f32 %v581, %v3837
        %v3916 = vadd.f32 %v582, %v3842
        %v3917 = vadd.f32 %v583, %v3847
        %v3918 = vadd.f32 %v584, %v3852
        %v3919 = vadd.f32 %v585, %v3857
        %v3920 = vadd.f32 %v586, %v3862
        %v3921 = vadd.f32 %v587, %v3867
        %v3922 = vadd.f32 %v588, %v3872
        %v3923 = vadd.f32 %v589, %v3877
        %v3924 = vadd.f32 %v590, %v3882
        %v3925 = vadd.f32 %v591, %v3887
        %v3926 = vadd.f32 %v592, %v3892
        %v3927 = vadd.f32 %v593, %v3897
        %v3928 = vadd.f32 %v594, %v3902
        %v3929 = vadd.f32 %v595, %v3907
        %v3930 = vadd.f32 %v596, %v3912
        %v3931 = vmax.f32 %v3915, 0.0
        %v3932 = vmax.f32 %v3916, 0.0
        %v3933 = vmax.f32 %v3917, 0.0
        %v3934 = vmax.f32 %v3918, 0.0
        %v3935 = vmax.f32 %v3919, 0.0
        %v3936 = vmax.f32 %v3920, 0.0
        %v3937 = vmax.f32 %v3921, 0.0
        %v3938 = vmax.f32 %v3922, 0.0
        %v3939 = vmax.f32 %v3923, 0.0
        %v3940 = vmax.f32 %v3924, 0.0
        %v3941 = vmax.f32 %v3925, 0.0
        %v3942 = vmax.f32 %v3926, 0.0
        %v3943 = vmax.f32 %v3927, 0.0
        %v3944 = vmax.f32 %v3928, 0.0
        %v3945 = vmax.f32 %v3929, 0.0
        %v3946 = vmax.f32 %v3930, 0.0
        %v3947 = vsel %vm1246, %v3931, 0.0
        %v3948 = vsel %vm1246, %v3932, 0.0
        %v3949 = vadd.f32 %v3947, %v3948
        %v3950 = vrot.slane %v3949, 4
        %v3951 = vadd.f32 %v3949, %v3950
        %v3952 = vrot.slane %v3951, 2
        %v3953 = vadd.f32 %v3951, %v3952
        %v3954 = vrot.slane %v3953, 1
        %v3955 = vadd.f32 %v3953, %v3954
        %v3956 = vsel %vm1246, %v3933, 0.0
        %v3957 = vsel %vm1246, %v3934, 0.0
        %v3958 = vadd.f32 %v3956, %v3957
        %v3959 = vrot.slane %v3958, 4
        %v3960 = vadd.f32 %v3958, %v3959
        %v3961 = vrot.slane %v3960, 2
        %v3962 = vadd.f32 %v3960, %v3961
        %v3963 = vrot.slane %v3962, 1
        %v3964 = vadd.f32 %v3962, %v3963
        %v3965 = vsel %vm1246, %v3935, 0.0
        %v3966 = vsel %vm1246, %v3936, 0.0
        %v3967 = vadd.f32 %v3965, %v3966
        %v3968 = vrot.slane %v3967, 4
        %v3969 = vadd.f32 %v3967, %v3968
        %v3970 = vrot.slane %v3969, 2
        %v3971 = vadd.f32 %v3969, %v3970
        %v3972 = vrot.slane %v3971, 1
        %v3973 = vadd.f32 %v3971, %v3972
        %v3974 = vsel %vm1246, %v3937, 0.0
        %v3975 = vsel %vm1246, %v3938, 0.0
        %v3976 = vadd.f32 %v3974, %v3975
        %v3977 = vrot.slane %v3976, 4
        %v3978 = vadd.f32 %v3976, %v3977
        %v3979 = vrot.slane %v3978, 2
        %v3980 = vadd.f32 %v3978, %v3979
        %v3981 = vrot.slane %v3980, 1
        %v3982 = vadd.f32 %v3980, %v3981
        %v3983 = vsel %vm1246, %v3939, 0.0
        %v3984 = vsel %vm1246, %v3940, 0.0
        %v3985 = vadd.f32 %v3983, %v3984
        %v3986 = vrot.slane %v3985, 4
        %v3987 = vadd.f32 %v3985, %v3986
        %v3988 = vrot.slane %v3987, 2
        %v3989 = vadd.f32 %v3987, %v3988
        %v3990 = vrot.slane %v3989, 1
        %v3991 = vadd.f32 %v3989, %v3990
        %v3992 = vsel %vm1246, %v3941, 0.0
        %v3993 = vsel %vm1246, %v3942, 0.0
        %v3994 = vadd.f32 %v3992, %v3993
        %v3995 = vrot.slane %v3994, 4
        %v3996 = vadd.f32 %v3994, %v3995
        %v3997 = vrot.slane %v3996, 2
        %v3998 = vadd.f32 %v3996, %v3997
        %v3999 = vrot.slane %v3998, 1
        %v4000 = vadd.f32 %v3998, %v3999
        %v4001 = vsel %vm1246, %v3943, 0.0
        %v4002 = vsel %vm1246, %v3944, 0.0
        %v4003 = vadd.f32 %v4001, %v4002
        %v4004 = vrot.slane %v4003, 4
        %v4005 = vadd.f32 %v4003, %v4004
        %v4006 = vrot.slane %v4005, 2
        %v4007 = vadd.f32 %v4005, %v4006
        %v4008 = vrot.slane %v4007, 1
        %v4009 = vadd.f32 %v4007, %v4008
        %v4010 = vsel %vm1246, %v3945, 0.0
        %v4011 = vsel %vm1246, %v3946, 0.0
        %v4012 = vadd.f32 %v4010, %v4011
        %v4013 = vrot.slane %v4012, 4
        %v4014 = vadd.f32 %v4012, %v4013
        %v4015 = vrot.slane %v4014, 2
        %v4016 = vadd.f32 %v4014, %v4015
        %v4017 = vrot.slane %v4016, 1
        %v4018 = vadd.f32 %v4016, %v4017
        %vm4027 = vcmask 1041409
        %v4028 = vsel %vm4027, %v3964, %v3955
        %vm4029 = vcmask 1042434
        %v4030 = vsel %vm4029, %v3973, %v4028
        %vm4031 = vcmask 1043459
        %v4032 = vsel %vm4031, %v3982, %v4030
        %vm4033 = vcmask 1044484
        %v4034 = vsel %vm4033, %v3991, %v4032
        %vm4035 = vcmask 1045509
        %v4036 = vsel %vm4035, %v4000, %v4034
        %vm4037 = vcmask 1046534
        %v4038 = vsel %vm4037, %v4009, %v4036
        %vm4039 = vcmask 1047559
        %v4040 = vsel %vm4039, %v4018, %v4038
        %v4041 = vsel %vm1246, %v4040, 0
        %4043 = vmatprep.subr.mxu0 0.0
        %4044 = vmatpush1.msra.mxu0 %v389
        %4045 = vmatprep.subr.mxu0 0.0
        %4046 = vmatpush1.msra.mxu0 %v390
        %4047 = vmatprep.subr.mxu0 0.0
        %4048 = vmatpush1.msra.mxu0 %v391
        %4049 = vmatprep.subr.mxu0 0.0
        %4050 = vmatpush1.msra.mxu0 %v392
        %4051 = vmatprep.subr.mxu0 0.0
        %4052 = vmatpush1.msra.mxu0 0.0
        %4053 = vmatprep.subr.mxu0 0.0
        %4054 = vmatpush1.msra.mxu0 0.0
        %4055 = vmatprep.subr.mxu0 0.0
        %4056 = vmatpush1.msra.mxu0 0.0
        %4057 = vmatprep.subr.mxu0 0.0
        %4058 = vmatpush1.msra.mxu0 0.0
        %4059 = vmatprep.subr.mxu0 0.0
        %4060 = vmatpush1.msra.mxu0 0.0
        %4061 = vmatprep.subr.mxu0 0.0
        %4062 = vmatpush1.msra.mxu0 0.0
        %4063 = vmatprep.subr.mxu0 0.0
        %4064 = vmatpush1.msra.mxu0 0.0
        %4065 = vmatprep.subr.mxu0 0.0
        %4066 = vmatpush1.msra.mxu0 0.0
        %4067 = vmatprep.subr.mxu0 0.0
        %4068 = vmatpush1.msra.mxu0 0.0
        %4069 = vmatprep.subr.mxu0 0.0
        %4070 = vmatpush1.msra.mxu0 0.0
        %4071 = vmatprep.subr.mxu0 0.0
        %4072 = vmatpush1.msra.mxu0 0.0
        %4073 = vmatprep.subr.mxu0 0.0
        %4074 = vmatpush1.msra.mxu0 0.0
        %4075 = vmatprep.subr.mxu0 0.0
        %4076 = vmatpush1.msra.mxu0 0.0
        %4077 = vmatprep.subr.mxu0 0.0
        %4078 = vmatpush1.msra.mxu0 0.0
        %4079 = vmatprep.subr.mxu0 0.0
        %4080 = vmatpush1.msra.mxu0 0.0
        %4081 = vmatprep.subr.mxu0 0.0
        %4082 = vmatpush1.msra.mxu0 0.0
        %4083 = vmatprep.subr.mxu0 0.0
        %4084 = vmatpush1.msra.mxu0 0.0
        %4085 = vmatprep.subr.mxu0 0.0
        %4086 = vmatpush1.msra.mxu0 0.0
        %4087 = vmatprep.subr.mxu0 0.0
        %4088 = vmatpush1.msra.mxu0 0.0
        %4089 = vmatprep.subr.mxu0 0.0
        %4090 = vmatpush1.msra.mxu0 0.0
        %4091 = vmatprep.subr.mxu0 0.0
        %4092 = vmatpush1.msra.mxu0 0.0
        %4093 = vmatprep.subr.mxu0 0.0
        %4094 = vmatpush1.msra.mxu0 0.0
        %4095 = vmatprep.subr.mxu0 0.0
        %4096 = vmatpush1.msra.mxu0 0.0
        %4097 = vmatprep.subr.mxu0 0.0
        %4098 = vmatpush1.msra.mxu0 0.0
        %4099 = vmatprep.subr.mxu0 0.0
        %4100 = vmatpush1.msra.mxu0 0.0
        %4101 = vmatprep.subr.mxu0 0.0
        %4102 = vmatpush1.msra.mxu0 0.0
        %4103 = vmatprep.subr.mxu0 0.0
        %4104 = vmatpush1.msra.mxu0 0.0
        %4105 = vmatprep.subr.mxu0 0.0
        %4106 = vmatpush1.msra.mxu0 0.0
        %4107 = vmatprep.mubr.f32.mxu0 0.0
        %4108 = vmatmul.mubr.f32.gmra.mrb[0].mxu0 %v4041
        %v4109 = vpop.f32.mrb[0].mxu0
        %v4110 = vadd.f32 0.0, %v4109
        %v4111 = vpop.f32.mrb[0].mxu0
        %4112 = vdwg.mxu0
        %v4114 = vsel %vm1246, %v3931, 0
        %v4117 = vsel %vm1246, %v3932, 0
        %v4120 = vsel %vm1246, %v3933, 0
        %v4123 = vsel %vm1246, %v3934, 0
        %v4126 = vsel %vm1246, %v3935, 0
        %v4129 = vsel %vm1246, %v3936, 0
        %v4132 = vsel %vm1246, %v3937, 0
        %v4135 = vsel %vm1246, %v3938, 0
        %v4138 = vsel %vm1246, %v3939, 0
        %v4141 = vsel %vm1246, %v3940, 0
        %v4144 = vsel %vm1246, %v3941, 0
        %v4147 = vsel %vm1246, %v3942, 0
        %v4150 = vsel %vm1246, %v3943, 0
        %v4153 = vsel %vm1246, %v3944, 0
        %v4156 = vsel %vm1246, %v3945, 0
        %v4159 = vsel %vm1246, %v3946, 0
        %4161 = vmatprep.subr.mxu0 0.0
        %4162 = vmatpush1.msra.mxu0 %v393
        %4163 = vmatprep.subr.mxu0 0.0
        %4164 = vmatpush1.msra.mxu0 %v394
        %4165 = vmatprep.subr.mxu0 0.0
        %4166 = vmatpush1.msra.mxu0 %v395
        %4167 = vmatprep.subr.mxu0 0.0
        %4168 = vmatpush1.msra.mxu0 %v396
        %4169 = vmatprep.subr.mxu0 0.0
        %4170 = vmatpush1.msra.mxu0 0.0
        %4171 = vmatprep.subr.mxu0 0.0
        %4172 = vmatpush1.msra.mxu0 0.0
        %4173 = vmatprep.subr.mxu0 0.0
        %4174 = vmatpush1.msra.mxu0 0.0
        %4175 = vmatprep.subr.mxu0 0.0
        %4176 = vmatpush1.msra.mxu0 0.0
        %4177 = vmatprep.subr.mxu0 0.0
        %4178 = vmatpush1.msra.mxu0 0.0
        %4179 = vmatprep.subr.mxu0 0.0
        %4180 = vmatpush1.msra.mxu0 0.0
        %4181 = vmatprep.subr.mxu0 0.0
        %4182 = vmatpush1.msra.mxu0 0.0
        %4183 = vmatprep.subr.mxu0 0.0
        %4184 = vmatpush1.msra.mxu0 0.0
        %4185 = vmatprep.subr.mxu0 0.0
        %4186 = vmatpush1.msra.mxu0 0.0
        %4187 = vmatprep.subr.mxu0 0.0
        %4188 = vmatpush1.msra.mxu0 0.0
        %4189 = vmatprep.subr.mxu0 0.0
        %4190 = vmatpush1.msra.mxu0 0.0
        %4191 = vmatprep.subr.mxu0 0.0
        %4192 = vmatpush1.msra.mxu0 0.0
        %4193 = vmatprep.subr.mxu0 0.0
        %4194 = vmatpush1.msra.mxu0 0.0
        %4195 = vmatprep.subr.mxu0 0.0
        %4196 = vmatpush1.msra.mxu0 0.0
        %4197 = vmatprep.subr.mxu0 0.0
        %4198 = vmatpush1.msra.mxu0 0.0
        %4199 = vmatprep.subr.mxu0 0.0
        %4200 = vmatpush1.msra.mxu0 0.0
        %4201 = vmatprep.subr.mxu0 0.0
        %4202 = vmatpush1.msra.mxu0 0.0
        %4203 = vmatprep.subr.mxu0 0.0
        %4204 = vmatpush1.msra.mxu0 0.0
        %4205 = vmatprep.subr.mxu0 0.0
        %4206 = vmatpush1.msra.mxu0 0.0
        %4207 = vmatprep.subr.mxu0 0.0
        %4208 = vmatpush1.msra.mxu0 0.0
        %4209 = vmatprep.subr.mxu0 0.0
        %4210 = vmatpush1.msra.mxu0 0.0
        %4211 = vmatprep.subr.mxu0 0.0
        %4212 = vmatpush1.msra.mxu0 0.0
        %4213 = vmatprep.subr.mxu0 0.0
        %4214 = vmatpush1.msra.mxu0 0.0
        %4215 = vmatprep.subr.mxu0 0.0
        %4216 = vmatpush1.msra.mxu0 0.0
        %4217 = vmatprep.subr.mxu0 0.0
        %4218 = vmatpush1.msra.mxu0 0.0
        %4219 = vmatprep.subr.mxu0 0.0
        %4220 = vmatpush1.msra.mxu0 0.0
        %4221 = vmatprep.subr.mxu0 0.0
        %4222 = vmatpush1.msra.mxu0 0.0
        %4223 = vmatprep.subr.mxu0 0.0
        %4224 = vmatpush1.msra.mxu0 0.0
        %4225 = vmatprep.mubr.f32.mxu0 0.0
        %4226 = vmatmul.mubr.f32.gmra.mrb[0].mxu0 %v4114
        %v4227 = vpop.f32.mrb[0].mxu0
        %v4228 = vadd.f32 0.0, %v4227
        %v4229 = vpop.f32.mrb[0].mxu0
        %4230 = vmatprep.mubr.f32.mxu0 0.0
        %4231 = vmatmul.mubr.f32.gmra.mrb[0].mxu0 %v4117
        %v4232 = vpop.f32.mrb[0].mxu0
        %v4233 = vadd.f32 0.0, %v4232
        %v4234 = vpop.f32.mrb[0].mxu0
        %4235 = vmatprep.mubr.f32.mxu0 0.0
        %4236 = vmatmul.mubr.f32.gmra.mrb[0].mxu0 %v4120
        %v4237 = vpop.f32.mrb[0].mxu0
        %v4238 = vadd.f32 0.0, %v4237
        %v4239 = vpop.f32.mrb[0].mxu0
        %4240 = vmatprep.mubr.f32.mxu0 0.0
        %4241 = vmatmul.mubr.f32.gmra.mrb[0].mxu0 %v4123
        %v4242 = vpop.f32.mrb[0].mxu0
        %v4243 = vadd.f32 0.0, %v4242
        %v4244 = vpop.f32.mrb[0].mxu0
        %4245 = vmatprep.mubr.f32.mxu0 0.0
        %4246 = vmatmul.mubr.f32.gmra.mrb[0].mxu0 %v4126
        %v4247 = vpop.f32.mrb[0].mxu0
        %v4248 = vadd.f32 0.0, %v4247
        %v4249 = vpop.f32.mrb[0].mxu0
        %4250 = vmatprep.mubr.f32.mxu0 0.0
        %4251 = vmatmul.mubr.f32.gmra.mrb[0].mxu0 %v4129
        %v4252 = vpop.f32.mrb[0].mxu0
        %v4253 = vadd.f32 0.0, %v4252
        %v4254 = vpop.f32.mrb[0].mxu0
        %4255 = vmatprep.mubr.f32.mxu0 0.0
        %4256 = vmatmul.mubr.f32.gmra.mrb[0].mxu0 %v4132
        %v4257 = vpop.f32.mrb[0].mxu0
        %v4258 = vadd.f32 0.0, %v4257
        %v4259 = vpop.f32.mrb[0].mxu0
        %4260 = vmatprep.mubr.f32.mxu0 0.0
        %4261 = vmatmul.mubr.f32.gmra.mrb[0].mxu0 %v4135
        %v4262 = vpop.f32.mrb[0].mxu0
        %v4263 = vadd.f32 0.0, %v4262
        %v4264 = vpop.f32.mrb[0].mxu0
        %4265 = vmatprep.mubr.f32.mxu0 0.0
        %4266 = vmatmul.mubr.f32.gmra.mrb[0].mxu0 %v4138
        %v4267 = vpop.f32.mrb[0].mxu0
        %v4268 = vadd.f32 0.0, %v4267
        %v4269 = vpop.f32.mrb[0].mxu0
        %4270 = vmatprep.mubr.f32.mxu0 0.0
        %4271 = vmatmul.mubr.f32.gmra.mrb[0].mxu0 %v4141
        %v4272 = vpop.f32.mrb[0].mxu0
        %v4273 = vadd.f32 0.0, %v4272
        %v4274 = vpop.f32.mrb[0].mxu0
        %4275 = vmatprep.mubr.f32.mxu0 0.0
        %4276 = vmatmul.mubr.f32.gmra.mrb[0].mxu0 %v4144
        %v4277 = vpop.f32.mrb[0].mxu0
        %v4278 = vadd.f32 0.0, %v4277
        %v4279 = vpop.f32.mrb[0].mxu0
        %4280 = vmatprep.mubr.f32.mxu0 0.0
        %4281 = vmatmul.mubr.f32.gmra.mrb[0].mxu0 %v4147
        %v4282 = vpop.f32.mrb[0].mxu0
        %v4283 = vadd.f32 0.0, %v4282
        %v4284 = vpop.f32.mrb[0].mxu0
        %4285 = vmatprep.mubr.f32.mxu0 0.0
        %4286 = vmatmul.mubr.f32.gmra.mrb[0].mxu0 %v4150
        %v4287 = vpop.f32.mrb[0].mxu0
        %v4288 = vadd.f32 0.0, %v4287
        %v4289 = vpop.f32.mrb[0].mxu0
        %4290 = vmatprep.mubr.f32.mxu0 0.0
        %4291 = vmatmul.mubr.f32.gmra.mrb[0].mxu0 %v4153
        %v4292 = vpop.f32.mrb[0].mxu0
        %v4293 = vadd.f32 0.0, %v4292
        %v4294 = vpop.f32.mrb[0].mxu0
        %4295 = vmatprep.mubr.f32.mxu0 0.0
        %4296 = vmatmul.mubr.f32.gmra.mrb[0].mxu0 %v4156
        %v4297 = vpop.f32.mrb[0].mxu0
        %v4298 = vadd.f32 0.0, %v4297
        %v4299 = vpop.f32.mrb[0].mxu0
        %4300 = vmatprep.mubr.f32.mxu0 0.0
        %4301 = vmatmul.mubr.f32.gmra.mrb[0].mxu0 %v4159
        %v4302 = vpop.f32.mrb[0].mxu0
        %v4303 = vadd.f32 0.0, %v4302
        %v4304 = vpop.f32.mrb[0].mxu0
        %4305 = vdwg.mxu0
        %v4306 = vmax.f32 %v4110, 0.0
        %v4308 = vlaneseq
        %v4309 = vshrl.u32 %v4308, 7
        %v4310 = vsub.s32 0, %v4309
        %v4311 = vrot.slane %v387, %v4310
        %v4313 = vmul.f32 %v4306, %v4311
        %v4314 = vsel %vm1246, %v4313, 0.0
        %4315 = vadd.xlane.f32.xlu0 %v4314
        %v4316 = vpop.xlane.xlu0 %4315
        %v4317 = vmax.f32 %v4228, 0.0
        %v4318 = vmax.f32 %v4233, 0.0
        %v4319 = vmax.f32 %v4238, 0.0
        %v4320 = vmax.f32 %v4243, 0.0
        %v4321 = vmax.f32 %v4248, 0.0
        %v4322 = vmax.f32 %v4253, 0.0
        %v4323 = vmax.f32 %v4258, 0.0
        %v4324 = vmax.f32 %v4263, 0.0
        %v4325 = vmax.f32 %v4268, 0.0
        %v4326 = vmax.f32 %v4273, 0.0
        %v4327 = vmax.f32 %v4278, 0.0
        %v4328 = vmax.f32 %v4283, 0.0
        %v4329 = vmax.f32 %v4288, 0.0
        %v4330 = vmax.f32 %v4293, 0.0
        %v4331 = vmax.f32 %v4298, 0.0
        %v4332 = vmax.f32 %v4303, 0.0
        %v4334 = vlaneseq
        %v4335 = vshrl.u32 %v4334, 7
        %v4336 = vsub.s32 0, %v4335
        %v4337 = vrot.slane %v388, %v4336
        %v4339 = vmul.f32 %v4317, %v4337
        %v4340 = vmul.f32 %v4318, %v4337
        %v4341 = vmul.f32 %v4319, %v4337
        %v4342 = vmul.f32 %v4320, %v4337
        %v4343 = vmul.f32 %v4321, %v4337
        %v4344 = vmul.f32 %v4322, %v4337
        %v4345 = vmul.f32 %v4323, %v4337
        %v4346 = vmul.f32 %v4324, %v4337
        %v4347 = vmul.f32 %v4325, %v4337
        %v4348 = vmul.f32 %v4326, %v4337
        %v4349 = vmul.f32 %v4327, %v4337
        %v4350 = vmul.f32 %v4328, %v4337
        %v4351 = vmul.f32 %v4329, %v4337
        %v4352 = vmul.f32 %v4330, %v4337
        %v4353 = vmul.f32 %v4331, %v4337
        %v4354 = vmul.f32 %v4332, %v4337
        %v4355 = vsel %vm1246, %v4339, 0.0
        %4356 = vadd.xlane.f32.xlu0 %v4355
        %v4357 = vpop.xlane.xlu0 %4356
        %v4358 = vsel %vm1246, %v4340, 0.0
        %4359 = vadd.xlane.f32.xlu0 %v4358
        %v4360 = vpop.xlane.xlu0 %4359
        %v4361 = vsel %vm1246, %v4341, 0.0
        %4362 = vadd.xlane.f32.xlu0 %v4361
        %v4363 = vpop.xlane.xlu0 %4362
        %v4364 = vsel %vm1246, %v4342, 0.0
        %4365 = vadd.xlane.f32.xlu0 %v4364
        %v4366 = vpop.xlane.xlu0 %4365
        %v4367 = vsel %vm1246, %v4343, 0.0
        %4368 = vadd.xlane.f32.xlu0 %v4367
        %v4369 = vpop.xlane.xlu0 %4368
        %v4370 = vsel %vm1246, %v4344, 0.0
        %4371 = vadd.xlane.f32.xlu0 %v4370
        %v4372 = vpop.xlane.xlu0 %4371
        %v4373 = vsel %vm1246, %v4345, 0.0
        %4374 = vadd.xlane.f32.xlu0 %v4373
        %v4375 = vpop.xlane.xlu0 %4374
        %v4376 = vsel %vm1246, %v4346, 0.0
        %4377 = vadd.xlane.f32.xlu0 %v4376
        %v4378 = vpop.xlane.xlu0 %4377
        %v4379 = vsel %vm1246, %v4347, 0.0
        %4380 = vadd.xlane.f32.xlu0 %v4379
        %v4381 = vpop.xlane.xlu0 %4380
        %v4382 = vsel %vm1246, %v4348, 0.0
        %4383 = vadd.xlane.f32.xlu0 %v4382
        %v4384 = vpop.xlane.xlu0 %4383
        %v4385 = vsel %vm1246, %v4349, 0.0
        %4386 = vadd.xlane.f32.xlu0 %v4385
        %v4387 = vpop.xlane.xlu0 %4386
        %v4388 = vsel %vm1246, %v4350, 0.0
        %4389 = vadd.xlane.f32.xlu0 %v4388
        %v4390 = vpop.xlane.xlu0 %4389
        %v4391 = vsel %vm1246, %v4351, 0.0
        %4392 = vadd.xlane.f32.xlu0 %v4391
        %v4393 = vpop.xlane.xlu0 %4392
        %v4394 = vsel %vm1246, %v4352, 0.0
        %4395 = vadd.xlane.f32.xlu0 %v4394
        %v4396 = vpop.xlane.xlu0 %4395
        %v4397 = vsel %vm1246, %v4353, 0.0
        %4398 = vadd.xlane.f32.xlu0 %v4397
        %v4399 = vpop.xlane.xlu0 %4398
        %v4400 = vsel %vm1246, %v4354, 0.0
        %4401 = vadd.xlane.f32.xlu0 %v4400
        %v4402 = vpop.xlane.xlu0 %4401
        %v4404 = vlaneseq
        %v4405 = vshrl.u32 %v4404, 7
        %v4406 = vsub.s32 0, %v4405
        %v4407 = vrot.slane %v4316, %v4406
        %v4408 = vlaneseq
        %v4409 = vshrl.u32 %v4408, 7
        %v4410 = vsub.s32 1, %v4409
        %v4411 = vrot.slane %v4316, %v4410
        %v4412 = vlaneseq
        %v4413 = vshrl.u32 %v4412, 7
        %v4414 = vsub.s32 2, %v4413
        %v4415 = vrot.slane %v4316, %v4414
        %v4416 = vlaneseq
        %v4417 = vshrl.u32 %v4416, 7
        %v4418 = vsub.s32 3, %v4417
        %v4419 = vrot.slane %v4316, %v4418
        %v4420 = vlaneseq
        %v4421 = vshrl.u32 %v4420, 7
        %v4422 = vsub.s32 4, %v4421
        %v4423 = vrot.slane %v4316, %v4422
        %v4424 = vlaneseq
        %v4425 = vshrl.u32 %v4424, 7
        %v4426 = vsub.s32 5, %v4425
        %v4427 = vrot.slane %v4316, %v4426
        %v4428 = vlaneseq
        %v4429 = vshrl.u32 %v4428, 7
        %v4430 = vsub.s32 6, %v4429
        %v4431 = vrot.slane %v4316, %v4430
        %v4432 = vlaneseq
        %v4433 = vshrl.u32 %v4432, 7
        %v4434 = vsub.s32 7, %v4433
        %v4435 = vrot.slane %v4316, %v4434
        %v4444 = vadd.f32 %v4357, %v4407
        %v4445 = vadd.f32 %v4360, %v4407
        %v4446 = vadd.f32 %v4363, %v4411
        %v4447 = vadd.f32 %v4366, %v4411
        %v4448 = vadd.f32 %v4369, %v4415
        %v4449 = vadd.f32 %v4372, %v4415
        %v4450 = vadd.f32 %v4375, %v4419
        %v4451 = vadd.f32 %v4378, %v4419
        %v4452 = vadd.f32 %v4381, %v4423
        %v4453 = vadd.f32 %v4384, %v4423
        %v4454 = vadd.f32 %v4387, %v4427
        %v4455 = vadd.f32 %v4390, %v4427
        %v4456 = vadd.f32 %v4393, %v4431
        %v4457 = vadd.f32 %v4396, %v4431
        %v4458 = vadd.f32 %v4399, %v4435
        %v4459 = vadd.f32 %v4402, %v4435
        %v4460 = vxor.u32 %v4444, 2147483648
        %v4461 = vxor.u32 %v4445, 2147483648
        %v4462 = vxor.u32 %v4446, 2147483648
        %v4463 = vxor.u32 %v4447, 2147483648
        %v4464 = vxor.u32 %v4448, 2147483648
        %v4465 = vxor.u32 %v4449, 2147483648
        %v4466 = vxor.u32 %v4450, 2147483648
        %v4467 = vxor.u32 %v4451, 2147483648
        %v4468 = vxor.u32 %v4452, 2147483648
        %v4469 = vxor.u32 %v4453, 2147483648
        %v4470 = vxor.u32 %v4454, 2147483648
        %v4471 = vxor.u32 %v4455, 2147483648
        %v4472 = vxor.u32 %v4456, 2147483648
        %v4473 = vxor.u32 %v4457, 2147483648
        %v4474 = vxor.u32 %v4458, 2147483648
        %v4475 = vxor.u32 %v4459, 2147483648
        %v4476 = vmul.f32 %v4460, 1.442695
        %v4477 = vpow.pop %v4476
        %v4478 = vmul.f32 %v4461, 1.442695
        %v4479 = vpow.pop %v4478
        %v4480 = vmul.f32 %v4462, 1.442695
        %v4481 = vpow.pop %v4480
        %v4482 = vmul.f32 %v4463, 1.442695
        %v4483 = vpow.pop %v4482
        %v4484 = vmul.f32 %v4464, 1.442695
        %v4485 = vpow.pop %v4484
        %v4486 = vmul.f32 %v4465, 1.442695
        %v4487 = vpow.pop %v4486
        %v4488 = vmul.f32 %v4466, 1.442695
        %v4489 = vpow.pop %v4488
        %v4490 = vmul.f32 %v4467, 1.442695
        %v4491 = vpow.pop %v4490
        %v4492 = vmul.f32 %v4468, 1.442695
        %v4493 = vpow.pop %v4492
        %v4494 = vmul.f32 %v4469, 1.442695
        %v4495 = vpow.pop %v4494
        %v4496 = vmul.f32 %v4470, 1.442695
        %v4497 = vpow.pop %v4496
        %v4498 = vmul.f32 %v4471, 1.442695
        %v4499 = vpow.pop %v4498
        %v4500 = vmul.f32 %v4472, 1.442695
        %v4501 = vpow.pop %v4500
        %v4502 = vmul.f32 %v4473, 1.442695
        %v4503 = vpow.pop %v4502
        %v4504 = vmul.f32 %v4474, 1.442695
        %v4505 = vpow.pop %v4504
        %v4506 = vmul.f32 %v4475, 1.442695
        %v4507 = vpow.pop %v4506
        %v4508 = vadd.f32 %v4477, 1.0
        %v4509 = vadd.f32 %v4479, 1.0
        %v4510 = vadd.f32 %v4481, 1.0
        %v4511 = vadd.f32 %v4483, 1.0
        %v4512 = vadd.f32 %v4485, 1.0
        %v4513 = vadd.f32 %v4487, 1.0
        %v4514 = vadd.f32 %v4489, 1.0
        %v4515 = vadd.f32 %v4491, 1.0
        %v4516 = vadd.f32 %v4493, 1.0
        %v4517 = vadd.f32 %v4495, 1.0
        %v4518 = vadd.f32 %v4497, 1.0
        %v4519 = vadd.f32 %v4499, 1.0
        %v4520 = vadd.f32 %v4501, 1.0
        %v4521 = vadd.f32 %v4503, 1.0
        %v4522 = vadd.f32 %v4505, 1.0
        %v4523 = vadd.f32 %v4507, 1.0
        %v4524 = vrcp.pop %v4508
        %v4525 = vmul.f32 1.0, %v4524
        %v4526 = vrcp.pop %v4509
        %v4527 = vmul.f32 1.0, %v4526
        %v4528 = vrcp.pop %v4510
        %v4529 = vmul.f32 1.0, %v4528
        %v4530 = vrcp.pop %v4511
        %v4531 = vmul.f32 1.0, %v4530
        %v4532 = vrcp.pop %v4512
        %v4533 = vmul.f32 1.0, %v4532
        %v4534 = vrcp.pop %v4513
        %v4535 = vmul.f32 1.0, %v4534
        %v4536 = vrcp.pop %v4514
        %v4537 = vmul.f32 1.0, %v4536
        %v4538 = vrcp.pop %v4515
        %v4539 = vmul.f32 1.0, %v4538
        %v4540 = vrcp.pop %v4516
        %v4541 = vmul.f32 1.0, %v4540
        %v4542 = vrcp.pop %v4517
        %v4543 = vmul.f32 1.0, %v4542
        %v4544 = vrcp.pop %v4518
        %v4545 = vmul.f32 1.0, %v4544
        %v4546 = vrcp.pop %v4519
        %v4547 = vmul.f32 1.0, %v4546
        %v4548 = vrcp.pop %v4520
        %v4549 = vmul.f32 1.0, %v4548
        %v4550 = vrcp.pop %v4521
        %v4551 = vmul.f32 1.0, %v4550
        %v4552 = vrcp.pop %v4522
        %v4553 = vmul.f32 1.0, %v4552
        %v4554 = vrcp.pop %v4523
        %v4555 = vmul.f32 1.0, %v4554
        %4572 = vset.pattern.permute.xlu0 0
        %4573 = vperm.xlu0 %4572, %v4525
        %v4574 = vpop.permute.xlu0 %4573
        %4575 = vset.pattern.permute.xlu0 0
        %4576 = vperm.xlu0 %4575, %v4527
        %v4577 = vpop.permute.xlu0 %4576
        %4578 = vset.pattern.permute.xlu0 0
        %4579 = vperm.xlu0 %4578, %v4529
        %v4580 = vpop.permute.xlu0 %4579
        %4581 = vset.pattern.permute.xlu0 0
        %4582 = vperm.xlu0 %4581, %v4531
        %v4583 = vpop.permute.xlu0 %4582
        %4584 = vset.pattern.permute.xlu0 0
        %4585 = vperm.xlu0 %4584, %v4533
        %v4586 = vpop.permute.xlu0 %4585
        %4587 = vset.pattern.permute.xlu0 0
        %4588 = vperm.xlu0 %4587, %v4535
        %v4589 = vpop.permute.xlu0 %4588
        %4590 = vset.pattern.permute.xlu0 0
        %4591 = vperm.xlu0 %4590, %v4537
        %v4592 = vpop.permute.xlu0 %4591
        %4593 = vset.pattern.permute.xlu0 0
        %4594 = vperm.xlu0 %4593, %v4539
        %v4595 = vpop.permute.xlu0 %4594
        %4596 = vset.pattern.permute.xlu0 0
        %4597 = vperm.xlu0 %4596, %v4541
        %v4598 = vpop.permute.xlu0 %4597
        %4599 = vset.pattern.permute.xlu0 0
        %4600 = vperm.xlu0 %4599, %v4543
        %v4601 = vpop.permute.xlu0 %4600
        %4602 = vset.pattern.permute.xlu0 0
        %4603 = vperm.xlu0 %4602, %v4545
        %v4604 = vpop.permute.xlu0 %4603
        %4605 = vset.pattern.permute.xlu0 0
        %4606 = vperm.xlu0 %4605, %v4547
        %v4607 = vpop.permute.xlu0 %4606
        %4608 = vset.pattern.permute.xlu0 0
        %4609 = vperm.xlu0 %4608, %v4549
        %v4610 = vpop.permute.xlu0 %4609
        %4611 = vset.pattern.permute.xlu0 0
        %4612 = vperm.xlu0 %4611, %v4551
        %v4613 = vpop.permute.xlu0 %4612
        %4614 = vset.pattern.permute.xlu0 0
        %4615 = vperm.xlu0 %4614, %v4553
        %v4616 = vpop.permute.xlu0 %4615
        %4617 = vset.pattern.permute.xlu0 0
        %4618 = vperm.xlu0 %4617, %v4555
        %v4619 = vpop.permute.xlu0 %4618
        %v4620 = vlaneseq
        %v4621 = vand.u32 %v4620, 127
        %v4622 = vlaneseq
        %v4623 = vshrl.u32 %v4622, 7
        %v4624 = vsub.s32 %v4621, %v4623
        %v4625 = vrot.slane %v4574, %v4624
        %v4626 = vadd.s32 %v4621, 4294967288
        %v4627 = vlaneseq
        %v4628 = vshrl.u32 %v4627, 7
        %v4629 = vsub.s32 %v4626, %v4628
        %v4630 = vrot.slane %v4577, %v4629
        %vm4631 = vcmask 130112
        %v4632 = vsel %vm4631, %v4630, %v4625
        %v4633 = vlaneseq
        %v4634 = vshrl.u32 %v4633, 7
        %v4635 = vsub.s32 %v4621, %v4634
        %v4636 = vrot.slane %v4580, %v4635
        %v4637 = vlaneseq
        %v4638 = vshrl.u32 %v4637, 7
        %v4639 = vsub.s32 %v4626, %v4638
        %v4640 = vrot.slane %v4583, %v4639
        %v4641 = vsel %vm4631, %v4640, %v4636
        %v4642 = vlaneseq
        %v4643 = vshrl.u32 %v4642, 7
        %v4644 = vsub.s32 %v4621, %v4643
        %v4645 = vrot.slane %v4586, %v4644
        %v4646 = vlaneseq
        %v4647 = vshrl.u32 %v4646, 7
        %v4648 = vsub.s32 %v4626, %v4647
        %v4649 = vrot.slane %v4589, %v4648
        %v4650 = vsel %vm4631, %v4649, %v4645
        %v4651 = vlaneseq
        %v4652 = vshrl.u32 %v4651, 7
        %v4653 = vsub.s32 %v4621, %v4652
        %v4654 = vrot.slane %v4592, %v4653
        %v4655 = vlaneseq
        %v4656 = vshrl.u32 %v4655, 7
        %v4657 = vsub.s32 %v4626, %v4656
        %v4658 = vrot.slane %v4595, %v4657
        %v4659 = vsel %vm4631, %v4658, %v4654
        %v4660 = vlaneseq
        %v4661 = vshrl.u32 %v4660, 7
        %v4662 = vsub.s32 %v4621, %v4661
        %v4663 = vrot.slane %v4598, %v4662
        %v4664 = vlaneseq
        %v4665 = vshrl.u32 %v4664, 7
        %v4666 = vsub.s32 %v4626, %v4665
        %v4667 = vrot.slane %v4601, %v4666
        %v4668 = vsel %vm4631, %v4667, %v4663
        %v4669 = vlaneseq
        %v4670 = vshrl.u32 %v4669, 7
        %v4671 = vsub.s32 %v4621, %v4670
        %v4672 = vrot.slane %v4604, %v4671
        %v4673 = vlaneseq
        %v4674 = vshrl.u32 %v4673, 7
        %v4675 = vsub.s32 %v4626, %v4674
        %v4676 = vrot.slane %v4607, %v4675
        %v4677 = vsel %vm4631, %v4676, %v4672
        %v4678 = vlaneseq
        %v4679 = vshrl.u32 %v4678, 7
        %v4680 = vsub.s32 %v4621, %v4679
        %v4681 = vrot.slane %v4610, %v4680
        %v4682 = vlaneseq
        %v4683 = vshrl.u32 %v4682, 7
        %v4684 = vsub.s32 %v4626, %v4683
        %v4685 = vrot.slane %v4613, %v4684
        %v4686 = vsel %vm4631, %v4685, %v4681
        %v4687 = vlaneseq
        %v4688 = vshrl.u32 %v4687, 7
        %v4689 = vsub.s32 %v4621, %v4688
        %v4690 = vrot.slane %v4616, %v4689
        %v4691 = vlaneseq
        %v4692 = vshrl.u32 %v4691, 7
        %v4693 = vsub.s32 %v4626, %v4692
        %v4694 = vrot.slane %v4619, %v4693
        %v4695 = vsel %vm4631, %v4694, %v4690
        %v4696 = vsel %vm4027, %v4641, %v4632
        %v4697 = vsel %vm4029, %v4650, %v4696
        %v4698 = vsel %vm4031, %v4659, %v4697
        %v4699 = vsel %vm4033, %v4668, %v4698
        %v4700 = vsel %vm4035, %v4677, %v4699
        %v4701 = vsel %vm4037, %v4686, %v4700
        %v4702 = vsel %vm4039, %v4695, %v4701
        %4704 = vst.msk [vmem:[%s319] sm:$0xff] %vm597, %v4702
        %s4705 = sand.u32 %s208, 1
        %s4706 = scalar_lea.sflag [#allocation3], %s4705
        %s4707 = sand.u32 %s208, 1
        %s4708 = smul.addr %s4707, 8
        %s4709 = scalar_lea.vmem [#allocation2], %s4708
        // Predicated region
        $region53: #{tpu_custom_call.1} parent=51 // pred_check
          %p4710 = pneg %p218
        $region54: #{tpu_custom_call.1} parent=51 // pred_check_branch
          %4712 = sbr.rel (%p4710) target = $region56
        $region55: #{tpu_custom_call.1} parent=51 // pred_region
          %s4714 = ssub.s32 128, 128
          %4715 = vsyncadd %s4706, %s4714
          %s4716 = smul.addr %s22, 128
          %s4717 = scalar_lea.hbm %s8, %s4716
          %s4719 = sshll.u32 %s4709, 4
          %s4720 = int_to_ptr.vmem [resolvable:$true] %s4719
          %4722 = dma.vmem_to_hbm [thread:$0]  %s4720, 128, %s4717, %s4706
        $region56: #{tpu_custom_call.1} parent=51 // pred_fallthru
          _
      $region52: #{tpu_custom_call.1} parent=5 // pred_fallthru
        _
      %p4723 = scmp.le.s32.totalorder 2, %s17
      // Predicated region
      $region57: #{tpu_custom_call.1} parent=5 // pred_check
        %p4724 = pneg %p4723
      $region58: #{tpu_custom_call.1} parent=5 // pred_check_branch
        %4726 = sbr.rel (%p4724) target = $region60
      $region59: #{tpu_custom_call.1} parent=5 // pred_region
        %s4727 = ssub.s32 %s17, 2
        // Predicated region
        $region61: #{tpu_custom_call.1} parent=59 // pred_check
          %p4728 = pneg %p224
        $region62: #{tpu_custom_call.1} parent=59 // pred_check_branch
          %4730 = sbr.rel (%p4728) target = $region64
        $region63: #{tpu_custom_call.1} parent=59 // pred_region
          %s4731 = sand.u32 %s209, 1
          %s4732 = scalar_lea.sflag [#allocation3], %s4731
          %s4733 = sand.u32 %s209, 1
          %s4734 = smul.addr %s4733, 8
          %s4735 = scalar_lea.vmem [#allocation2], %s4734
          %4736 = dma.done %s4732, 128
        $region64: #{tpu_custom_call.1} parent=59 // pred_fallthru
          _
      $region60: #{tpu_custom_call.1} parent=5 // pred_fallthru
        _
    $region6: #{tpu_custom_call.1} parent=1 // loop_footer
      %s21 = sadd.s32 1, %s17
    $region7: #{tpu_custom_call.1} parent=1 // loop_footer_branch
      %16 = sbr.rel target = $region3
    $region8: #{tpu_custom_call.1} parent=1 // loop_exit
      _
    %4737 = vsyncpa [#allocation3], 1
    %s4738 = scalar_lea.sflag [#allocation3], 1
    %4739 = vsyncpa %s4738, 1

</llo_original>
